<compile_context>
chip_gen: v7x
topology: tpu7x:2x2x1
jax: 0.10.0
libtpu: 0.0.40
codegen_flags: <defaults>
</compile_context>

<pallas_src>
import math

import jax
import jax.numpy as jnp
import numpy as np
from jax.experimental import pallas as pl
from jax.experimental.pallas import tpu as pltpu  # noqa: F401  (TPU backend)


def conv_cfgs(raw_ni):
    """(in_ch, out_ch, kernel, stride, pad) of the 7 SepConv1d blocks in `self.raw`."""
    return [
        (raw_ni, 32, 5, 2, 3),
        (32, 32, 3, 1, 1),
        (32, 64, 5, 4, 3),
        (64, 64, 3, 1, 1),
        (64, 128, 5, 4, 1),
        (128, 128, 3, 1, 1),
        (128, 256, 1, 4, 2),
    ]


def _conv_out_len(L, k, s, p):
    return (L + 2 * p - k) // s + 1


def _gather_mats(batch, L_in, L_out, K, stride, pad):
    """Constant 0/1 matrices G[k]: (B*L_out, B*L_in) with
    (G[k] @ x)[b*L_out + j] = x[b*L_in + (k + stride*j - pad)]  (0 if padded).

    They fold zero-padding, stride and the batch-merged row layout of the
    depthwise conv into one tiny MXU operand per tap (exact Conv1d indexing,
    no reliance on slice clamping)."""
    G = np.zeros((K, batch * L_out, batch * L_in), np.float32)
    for k in range(K):
        for b in range(batch):
            for j in range(L_out):
                i = k + stride * j - pad
                if 0 <= i < L_in:
                    G[k, b * L_out + j, b * L_in + i] = 1.0
    return jnp.asarray(G)


def fused_classifier_kernel(*refs):
    """Entire Classifier3LV1 forward (eval mode) in a single kernel.

    refs = [x] + [G, dw_w, pw_w, aff] * n_layers + [sel, w1, b1, w2, b2, out]
      x    : (B*L0, C0)        f32   batch-merged rows, channels on lanes
      G    : (K, B*Lo, B*Li)   f32   depthwise gather (pad + stride folded in)
      dw_w : (K, 1, Ci)        f32   depthwise weights (per channel)
      pw_w : (Ci, Co)          bf16  pointwise (1x1) weights  (MXU operand)
      aff  : (4, 1, Co)        f32   [pw_bias + dw_bias @ pw_w, bn_scale,
                                      prelu_alpha * bn_scale, bn_shift]
      sel  : (L, B, B*L)       f32   per-position row selector (flatten order)
      w1   : (L, C, 64)        bf16  head Linear 1, rows regrouped per position
      b1   : (1, 64)           f32
      w2   : (64, n_classes)   bf16  head Linear 2
      b2   : (1, n_classes)    f32
      out  : (B, n_classes)    f32
    """
    x_ref, out_ref = refs[0], refs[-1]
    sel_ref, w1_ref, b1_ref, w2_ref, b2_ref = refs[-6:-1]
    layer_refs = refs[1:-6]
    assert len(layer_refs) % 4 == 0

    a = x_ref[...]                                               # (B*L0, C0) f32
    for i in range(0, len(layer_refs), 4):
        g_ref, dww_ref, pww_ref, aff_ref = layer_refs[i:i + 4]
        # Depthwise conv: static unrolled tap loop; each tap is a gather matmul.
        acc = jnp.dot(g_ref[0], a, preferred_element_type=jnp.float32) * dww_ref[0]
        for k in range(1, g_ref.shape[0]):
            acc = acc + jnp.dot(g_ref[k], a,
                                preferred_element_type=jnp.float32) * dww_ref[k]
        # Pointwise 1x1 conv: all B*L_out rows in one MXU dot (bf16 in, f32 acc).
        z = jnp.dot(acc.astype(pww_ref.dtype), pww_ref[...],
                    preferred_element_type=jnp.float32)
        z = z + aff_ref[0]                                       # folded biases
        # PReLU + eval-mode BatchNorm folded to pos/neg scale + shift (f32 VPU).
        a = jnp.where(z >= 0.0, z * aff_ref[1], z * aff_ref[2]) + aff_ref[3]

    # Head: Linear -> ReLU -> Linear, reproducing PyTorch's channel-major
    # flatten of the NCL conv output via per-position selection + w1 slabs
    # (no in-kernel reshape/transpose needed).
    h = None
    for l in range(sel_ref.shape[0]):
        rows = jnp.dot(sel_ref[l], a, preferred_element_type=jnp.float32)   # (B, C)
        part = jnp.dot(rows.astype(w1_ref.dtype), w1_ref[l],
                       preferred_element_type=jnp.float32)                  # (B, 64)
        h = part if h is None else h + part
    h = jnp.maximum(h + b1_ref[...], 0.0)
    o = jnp.dot(h.astype(w2_ref.dtype), w2_ref[...],
                preferred_element_type=jnp.float32) + b2_ref[...]
    out_ref[...] = o.astype(out_ref.dtype)


def init_params(key, raw_ni, no_classes, seq_len, batch):
    """Random parameters plus the folded constants consumed by the fused kernel.
    Eval-mode semantics: BatchNorm uses (default) running stats, Dropout is identity."""
    eps = 1e-5
    conv_params = []
    L = seq_len
    for (ci, co, k, s, pad) in conv_cfgs(raw_ni):
        key, k1, k2, k3, k4 = jax.random.split(key, 5)
        L_out = _conv_out_len(L, k, s, pad)
        dw_w = jax.random.normal(k1, (k, 1, ci), jnp.float32) / math.sqrt(k)
        dw_b = jax.random.uniform(k2, (1, ci), jnp.float32, -1.0, 1.0) / math.sqrt(k)
        pw_w = jax.random.normal(k3, (ci, co), jnp.float32) / math.sqrt(ci)
        pw_b = jax.random.uniform(k4, (1, co), jnp.float32, -1.0, 1.0) / math.sqrt(ci)
        alpha = jnp.float32(0.25)                      # PReLU default slope
        # TODO(synk): eval-mode BatchNorm1d with default stats (mean 0, var 1,
        # gamma 1, beta 0); training-mode batch statistics are not implemented.
        bn_scale = jnp.full((1, co), 1.0 / math.sqrt(1.0 + eps), jnp.float32)
        bn_shift = jnp.zeros((1, co), jnp.float32)
        # Fold depthwise bias into the pointwise bias, and PReLU + BN into
        # per-channel (pos_scale, neg_scale, shift).
        pw_b_folded = pw_b + dw_b @ pw_w               # (1, co)
        aff = jnp.stack([pw_b_folded, bn_scale, alpha * bn_scale, bn_shift], axis=0)
        conv_params.append(dict(
            gather=_gather_mats(batch, L, L_out, k, s, pad),
            dw_w=dw_w,
            pw_w=pw_w.astype(jnp.bfloat16),
            aff=aff,
        ))
        L = L_out

    c_last = conv_cfgs(raw_ni)[-1][1]
    flat_dim = c_last * L
    key, k5, k6, k7, k8 = jax.random.split(key, 5)
    # TODO(synk): the source module declares nn.Linear(128 + num_positions, 64)
    # but its forward feeds the flattened conv output directly (a shape mismatch
    # in the original code); we size that Linear to the actual flattened dim so
    # the written forward path is runnable.
    w1 = jax.random.uniform(k5, (flat_dim, 64), jnp.float32, 0.0, 1.0) / flat_dim
    b1 = jax.random.uniform(k6, (1, 64), jnp.float32, -1.0, 1.0) / math.sqrt(flat_dim)
    w2 = jax.random.normal(k7, (64, no_classes), jnp.float32) / math.sqrt(64)
    b2 = jax.random.uniform(k8, (1, no_classes), jnp.float32, -1.0, 1.0) / math.sqrt(64)
    # Re-group w1 rows by time position l so the kernel never has to reshape:
    # PyTorch flattens the NCL conv output channel-major (flat index c*L + l);
    # w1_stack[l, c, :] == w1[c*L + l, :].
    w1_stack = jnp.transpose(w1.reshape(c_last, L, 64), (1, 0, 2))
    # Row selector pulling, for each position l, the (B, C) slab out of the
    # batch-merged (B*L, C) activation.
    sel = np.zeros((L, batch, batch * L), np.float32)
    for l in range(L):
        for b in range(batch):
            sel[l, b, b * L + l] = 1.0
    head_params = dict(
        sel=jnp.asarray(sel),
        w1=w1_stack.astype(jnp.bfloat16),
        b1=b1,
        w2=w2.astype(jnp.bfloat16),
        b2=b2,
    )
    return dict(conv=conv_params, head=head_params), flat_dim


def classifier3l_forward(t_raw, n_raw, params):
    """Classifier3LV1.forward: self.out(self.raw(t_raw)); n_raw is unused by the
    reference forward.  Dropout layers are eval-mode identity."""
    del n_raw
    B, ci, L0 = t_raw.shape
    no_classes = params["head"]["w2"].shape[-1]
    # NCL -> batch-merged NLC rows (channels on TPU lanes): the only wrapper glue.
    x = jnp.transpose(t_raw, (0, 2, 1)).reshape(B * L0, ci).astype(jnp.float32)
    args = [x]
    for p in params["conv"]:
        args += [p["gather"], p["dw_w"], p["pw_w"], p["aff"]]
    hp = params["head"]
    args += [hp["sel"], hp["w1"], hp["b1"], hp["w2"], hp["b2"]]
    # Single fused pallas_call; every operand is a whole-array VMEM block
    # (total weights + activations are a few hundred KB, far under the VMEM
    # budget of any TPU generation).
    # TODO(synk): for large batch, add a leading "parallel" batch-chunk grid
    # axis so v7x's two TensorCores split the work; at B=2 one program is best.
    # TODO(synk): the get_feat=True path (also returning raw_out) is not wired up.
    return pl.pallas_call(
        fused_classifier_kernel,
        out_shape=jax.ShapeDtypeStruct((B, no_classes), jnp.float32),
    )(*args)


if __name__ == "__main__":
    B, raw_ni, seq_len, no_classes = 2, 4, 16, 8
    key = jax.random.PRNGKey(0)
    kx, kn, kp = jax.random.split(key, 3)
    t_raw = jax.random.normal(kx, (B, raw_ni, seq_len), jnp.float32)
    n_raw = jax.random.normal(kn, (B, raw_ni, seq_len), jnp.float32)
    params, _flat_dim = init_params(kp, raw_ni, no_classes, seq_len, B)
    fwd = jax.jit(classifier3l_forward)
    out = jax.block_until_ready(fwd(t_raw, n_raw, params))
    assert out.shape == (B, no_classes), out.shape
    assert bool(jnp.all(jnp.isfinite(out)))
    print("KERNEL_OK")
</pallas_src>

<mosaic_0001>
module attributes {stable_mosaic.version = 11 : i64} {
  func.func @fused_classifier_kernel(%arg0: memref<32x4xf32, #tpu.memory_space<vmem>>, %arg1: memref<5x18x32xf32, #tpu.memory_space<vmem>>, %arg2: memref<5x1x4xf32, #tpu.memory_space<vmem>>, %arg3: memref<4x32xbf16, #tpu.memory_space<vmem>>, %arg4: memref<4x1x32xf32, #tpu.memory_space<vmem>>, %arg5: memref<3x18x18xf32, #tpu.memory_space<vmem>>, %arg6: memref<3x1x32xf32, #tpu.memory_space<vmem>>, %arg7: memref<32x32xbf16, #tpu.memory_space<vmem>>, %arg8: memref<4x1x32xf32, #tpu.memory_space<vmem>>, %arg9: memref<5x6x18xf32, #tpu.memory_space<vmem>>, %arg10: memref<5x1x32xf32, #tpu.memory_space<vmem>>, %arg11: memref<32x64xbf16, #tpu.memory_space<vmem>>, %arg12: memref<4x1x64xf32, #tpu.memory_space<vmem>>, %arg13: memref<3x6x6xf32, #tpu.memory_space<vmem>>, %arg14: memref<3x1x64xf32, #tpu.memory_space<vmem>>, %arg15: memref<64x64xbf16, #tpu.memory_space<vmem>>, %arg16: memref<4x1x64xf32, #tpu.memory_space<vmem>>, %arg17: memref<5x2x6xf32, #tpu.memory_space<vmem>>, %arg18: memref<5x1x64xf32, #tpu.memory_space<vmem>>, %arg19: memref<64x128xbf16, #tpu.memory_space<vmem>>, %arg20: memref<4x1x128xf32, #tpu.memory_space<vmem>>, %arg21: memref<3x2x2xf32, #tpu.memory_space<vmem>>, %arg22: memref<3x1x128xf32, #tpu.memory_space<vmem>>, %arg23: memref<128x128xbf16, #tpu.memory_space<vmem>>, %arg24: memref<4x1x128xf32, #tpu.memory_space<vmem>>, %arg25: memref<1x4x2xf32, #tpu.memory_space<vmem>>, %arg26: memref<1x1x128xf32, #tpu.memory_space<vmem>>, %arg27: memref<128x256xbf16, #tpu.memory_space<vmem>>, %arg28: memref<4x1x256xf32, #tpu.memory_space<vmem>>, %arg29: memref<2x2x4xf32, #tpu.memory_space<vmem>>, %arg30: memref<2x256x64xbf16, #tpu.memory_space<vmem>>, %arg31: memref<1x64xf32, #tpu.memory_space<vmem>>, %arg32: memref<64x8xbf16, #tpu.memory_space<vmem>>, %arg33: memref<1x8xf32, #tpu.memory_space<vmem>>, %arg34: memref<2x8xf32, #tpu.memory_space<vmem>>) attributes {dimension_semantics = [], scalar_prefetch = 0 : i64, scratch_operands = 0 : i64, tpu.core_type = #tpu.core_type<tc>} {
    %c0 = arith.constant 0 : index
    %c0_0 = arith.constant 0 : index
    %0 = vector.load %arg0[%c0, %c0_0] : memref<32x4xf32, #tpu.memory_space<vmem>>, vector<32x4xf32>
    %c0_1 = arith.constant 0 : index
    %c0_2 = arith.constant 0 : index
    %c0_3 = arith.constant 0 : index
    %1 = vector.load %arg1[%c0_1, %c0_2, %c0_3] : memref<5x18x32xf32, #tpu.memory_space<vmem>>, vector<1x18x32xf32>
    %2 = vector.shape_cast %1 : vector<1x18x32xf32> to vector<18x32xf32>
    %cst = arith.constant dense<0.000000e+00> : vector<18x4xf32>
    %3 = tpu.matmul %2, %0, %cst {dimension_numbers = #tpu.dot_dimension_numbers<[1], [0], [0], [1], [0, 0, 1, 1], [], []>} : vector<18x32xf32>, vector<32x4xf32>, vector<18x4xf32> -> vector<18x4xf32>
    %c0_4 = arith.constant 0 : index
    %c0_5 = arith.constant 0 : index
    %c0_6 = arith.constant 0 : index
    %4 = vector.load %arg2[%c0_4, %c0_5, %c0_6] : memref<5x1x4xf32, #tpu.memory_space<vmem>>, vector<1x1x4xf32>
    %5 = vector.shape_cast %4 : vector<1x1x4xf32> to vector<1x4xf32>
    %6 = vector.broadcast %5 : vector<1x4xf32> to vector<18x4xf32>
    %7 = arith.mulf %3, %6 : vector<18x4xf32>
    %c1 = arith.constant 1 : index
    %c0_7 = arith.constant 0 : index
    %c0_8 = arith.constant 0 : index
    %8 = vector.load %arg1[%c1, %c0_7, %c0_8] : memref<5x18x32xf32, #tpu.memory_space<vmem>>, vector<1x18x32xf32>
    %9 = vector.shape_cast %8 : vector<1x18x32xf32> to vector<18x32xf32>
    %cst_9 = arith.constant dense<0.000000e+00> : vector<18x4xf32>
    %10 = tpu.matmul %9, %0, %cst_9 {dimension_numbers = #tpu.dot_dimension_numbers<[1], [0], [0], [1], [0, 0, 1, 1], [], []>} : vector<18x32xf32>, vector<32x4xf32>, vector<18x4xf32> -> vector<18x4xf32>
    %c1_10 = arith.constant 1 : index
    %c0_11 = arith.constant 0 : index
    %c0_12 = arith.constant 0 : index
    %11 = vector.load %arg2[%c1_10, %c0_11, %c0_12] : memref<5x1x4xf32, #tpu.memory_space<vmem>>, vector<1x1x4xf32>
    %12 = vector.shape_cast %11 : vector<1x1x4xf32> to vector<1x4xf32>
    %13 = vector.broadcast %12 : vector<1x4xf32> to vector<18x4xf32>
    %14 = arith.mulf %10, %13 : vector<18x4xf32>
    %15 = arith.addf %7, %14 : vector<18x4xf32>
    %c2 = arith.constant 2 : index
    %c0_13 = arith.constant 0 : index
    %c0_14 = arith.constant 0 : index
    %16 = vector.load %arg1[%c2, %c0_13, %c0_14] : memref<5x18x32xf32, #tpu.memory_space<vmem>>, vector<1x18x32xf32>
    %17 = vector.shape_cast %16 : vector<1x18x32xf32> to vector<18x32xf32>
    %cst_15 = arith.constant dense<0.000000e+00> : vector<18x4xf32>
    %18 = tpu.matmul %17, %0, %cst_15 {dimension_numbers = #tpu.dot_dimension_numbers<[1], [0], [0], [1], [0, 0, 1, 1], [], []>} : vector<18x32xf32>, vector<32x4xf32>, vector<18x4xf32> -> vector<18x4xf32>
    %c2_16 = arith.constant 2 : index
    %c0_17 = arith.constant 0 : index
    %c0_18 = arith.constant 0 : index
    %19 = vector.load %arg2[%c2_16, %c0_17, %c0_18] : memref<5x1x4xf32, #tpu.memory_space<vmem>>, vector<1x1x4xf32>
    %20 = vector.shape_cast %19 : vector<1x1x4xf32> to vector<1x4xf32>
    %21 = vector.broadcast %20 : vector<1x4xf32> to vector<18x4xf32>
    %22 = arith.mulf %18, %21 : vector<18x4xf32>
    %23 = arith.addf %15, %22 : vector<18x4xf32>
    %c3 = arith.constant 3 : index
    %c0_19 = arith.constant 0 : index
    %c0_20 = arith.constant 0 : index
    %24 = vector.load %arg1[%c3, %c0_19, %c0_20] : memref<5x18x32xf32, #tpu.memory_space<vmem>>, vector<1x18x32xf32>
    %25 = vector.shape_cast %24 : vector<1x18x32xf32> to vector<18x32xf32>
    %cst_21 = arith.constant dense<0.000000e+00> : vector<18x4xf32>
    %26 = tpu.matmul %25, %0, %cst_21 {dimension_numbers = #tpu.dot_dimension_numbers<[1], [0], [0], [1], [0, 0, 1, 1], [], []>} : vector<18x32xf32>, vector<32x4xf32>, vector<18x4xf32> -> vector<18x4xf32>
    %c3_22 = arith.constant 3 : index
    %c0_23 = arith.constant 0 : index
    %c0_24 = arith.constant 0 : index
    %27 = vector.load %arg2[%c3_22, %c0_23, %c0_24] : memref<5x1x4xf32, #tpu.memory_space<vmem>>, vector<1x1x4xf32>
    %28 = vector.shape_cast %27 : vector<1x1x4xf32> to vector<1x4xf32>
    %29 = vector.broadcast %28 : vector<1x4xf32> to vector<18x4xf32>
    %30 = arith.mulf %26, %29 : vector<18x4xf32>
    %31 = arith.addf %23, %30 : vector<18x4xf32>
    %c4 = arith.constant 4 : index
    %c0_25 = arith.constant 0 : index
    %c0_26 = arith.constant 0 : index
    %32 = vector.load %arg1[%c4, %c0_25, %c0_26] : memref<5x18x32xf32, #tpu.memory_space<vmem>>, vector<1x18x32xf32>
    %33 = vector.shape_cast %32 : vector<1x18x32xf32> to vector<18x32xf32>
    %cst_27 = arith.constant dense<0.000000e+00> : vector<18x4xf32>
    %34 = tpu.matmul %33, %0, %cst_27 {dimension_numbers = #tpu.dot_dimension_numbers<[1], [0], [0], [1], [0, 0, 1, 1], [], []>} : vector<18x32xf32>, vector<32x4xf32>, vector<18x4xf32> -> vector<18x4xf32>
    %c4_28 = arith.constant 4 : index
    %c0_29 = arith.constant 0 : index
    %c0_30 = arith.constant 0 : index
    %35 = vector.load %arg2[%c4_28, %c0_29, %c0_30] : memref<5x1x4xf32, #tpu.memory_space<vmem>>, vector<1x1x4xf32>
    %36 = vector.shape_cast %35 : vector<1x1x4xf32> to vector<1x4xf32>
    %37 = vector.broadcast %36 : vector<1x4xf32> to vector<18x4xf32>
    %38 = arith.mulf %34, %37 : vector<18x4xf32>
    %39 = arith.addf %31, %38 : vector<18x4xf32>
    %40 = arith.truncf %39 : vector<18x4xf32> to vector<18x4xbf16>
    %c0_31 = arith.constant 0 : index
    %c0_32 = arith.constant 0 : index
    %41 = vector.load %arg3[%c0_31, %c0_32] : memref<4x32xbf16, #tpu.memory_space<vmem>>, vector<4x32xbf16>
    %cst_33 = arith.constant dense<0.000000e+00> : vector<18x32xf32>
    %42 = tpu.matmul %40, %41, %cst_33 {dimension_numbers = #tpu.dot_dimension_numbers<[1], [0], [0], [1], [0, 0, 1, 1], [], []>} : vector<18x4xbf16>, vector<4x32xbf16>, vector<18x32xf32> -> vector<18x32xf32>
    %c0_34 = arith.constant 0 : index
    %c0_35 = arith.constant 0 : index
    %c0_36 = arith.constant 0 : index
    %43 = vector.load %arg4[%c0_34, %c0_35, %c0_36] : memref<4x1x32xf32, #tpu.memory_space<vmem>>, vector<1x1x32xf32>
    %44 = vector.shape_cast %43 : vector<1x1x32xf32> to vector<1x32xf32>
    %45 = vector.broadcast %44 : vector<1x32xf32> to vector<18x32xf32>
    %46 = arith.addf %42, %45 : vector<18x32xf32>
    %cst_37 = arith.constant 0.000000e+00 : f32
    %47 = vector.broadcast %cst_37 : f32 to vector<18x32xf32>
    %48 = arith.cmpf oge, %46, %47 : vector<18x32xf32>
    %c1_38 = arith.constant 1 : index
    %c0_39 = arith.constant 0 : index
    %c0_40 = arith.constant 0 : index
    %49 = vector.load %arg4[%c1_38, %c0_39, %c0_40] : memref<4x1x32xf32, #tpu.memory_space<vmem>>, vector<1x1x32xf32>
    %50 = vector.shape_cast %49 : vector<1x1x32xf32> to vector<1x32xf32>
    %51 = vector.broadcast %50 : vector<1x32xf32> to vector<18x32xf32>
    %52 = arith.mulf %46, %51 : vector<18x32xf32>
    %c2_41 = arith.constant 2 : index
    %c0_42 = arith.constant 0 : index
    %c0_43 = arith.constant 0 : index
    %53 = vector.load %arg4[%c2_41, %c0_42, %c0_43] : memref<4x1x32xf32, #tpu.memory_space<vmem>>, vector<1x1x32xf32>
    %54 = vector.shape_cast %53 : vector<1x1x32xf32> to vector<1x32xf32>
    %55 = vector.broadcast %54 : vector<1x32xf32> to vector<18x32xf32>
    %56 = arith.mulf %46, %55 : vector<18x32xf32>
    %57 = arith.select %48, %52, %56 : vector<18x32xi1>, vector<18x32xf32>
    %c3_44 = arith.constant 3 : index
    %c0_45 = arith.constant 0 : index
    %c0_46 = arith.constant 0 : index
    %58 = vector.load %arg4[%c3_44, %c0_45, %c0_46] : memref<4x1x32xf32, #tpu.memory_space<vmem>>, vector<1x1x32xf32>
    %59 = vector.shape_cast %58 : vector<1x1x32xf32> to vector<1x32xf32>
    %60 = vector.broadcast %59 : vector<1x32xf32> to vector<18x32xf32>
    %61 = arith.addf %57, %60 : vector<18x32xf32>
    %c0_47 = arith.constant 0 : index
    %c0_48 = arith.constant 0 : index
    %c0_49 = arith.constant 0 : index
    %62 = vector.load %arg5[%c0_47, %c0_48, %c0_49] : memref<3x18x18xf32, #tpu.memory_space<vmem>>, vector<1x18x18xf32>
    %63 = vector.shape_cast %62 : vector<1x18x18xf32> to vector<18x18xf32>
    %cst_50 = arith.constant dense<0.000000e+00> : vector<18x32xf32>
    %64 = tpu.matmul %63, %61, %cst_50 {dimension_numbers = #tpu.dot_dimension_numbers<[1], [0], [0], [1], [0, 0, 1, 1], [], []>} : vector<18x18xf32>, vector<18x32xf32>, vector<18x32xf32> -> vector<18x32xf32>
    %c0_51 = arith.constant 0 : index
    %c0_52 = arith.constant 0 : index
    %c0_53 = arith.constant 0 : index
    %65 = vector.load %arg6[%c0_51, %c0_52, %c0_53] : memref<3x1x32xf32, #tpu.memory_space<vmem>>, vector<1x1x32xf32>
    %66 = vector.shape_cast %65 : vector<1x1x32xf32> to vector<1x32xf32>
    %67 = vector.broadcast %66 : vector<1x32xf32> to vector<18x32xf32>
    %68 = arith.mulf %64, %67 : vector<18x32xf32>
    %c1_54 = arith.constant 1 : index
    %c0_55 = arith.constant 0 : index
    %c0_56 = arith.constant 0 : index
    %69 = vector.load %arg5[%c1_54, %c0_55, %c0_56] : memref<3x18x18xf32, #tpu.memory_space<vmem>>, vector<1x18x18xf32>
    %70 = vector.shape_cast %69 : vector<1x18x18xf32> to vector<18x18xf32>
    %cst_57 = arith.constant dense<0.000000e+00> : vector<18x32xf32>
    %71 = tpu.matmul %70, %61, %cst_57 {dimension_numbers = #tpu.dot_dimension_numbers<[1], [0], [0], [1], [0, 0, 1, 1], [], []>} : vector<18x18xf32>, vector<18x32xf32>, vector<18x32xf32> -> vector<18x32xf32>
    %c1_58 = arith.constant 1 : index
    %c0_59 = arith.constant 0 : index
    %c0_60 = arith.constant 0 : index
    %72 = vector.load %arg6[%c1_58, %c0_59, %c0_60] : memref<3x1x32xf32, #tpu.memory_space<vmem>>, vector<1x1x32xf32>
    %73 = vector.shape_cast %72 : vector<1x1x32xf32> to vector<1x32xf32>
    %74 = vector.broadcast %73 : vector<1x32xf32> to vector<18x32xf32>
    %75 = arith.mulf %71, %74 : vector<18x32xf32>
    %76 = arith.addf %68, %75 : vector<18x32xf32>
    %c2_61 = arith.constant 2 : index
    %c0_62 = arith.constant 0 : index
    %c0_63 = arith.constant 0 : index
    %77 = vector.load %arg5[%c2_61, %c0_62, %c0_63] : memref<3x18x18xf32, #tpu.memory_space<vmem>>, vector<1x18x18xf32>
    %78 = vector.shape_cast %77 : vector<1x18x18xf32> to vector<18x18xf32>
    %cst_64 = arith.constant dense<0.000000e+00> : vector<18x32xf32>
    %79 = tpu.matmul %78, %61, %cst_64 {dimension_numbers = #tpu.dot_dimension_numbers<[1], [0], [0], [1], [0, 0, 1, 1], [], []>} : vector<18x18xf32>, vector<18x32xf32>, vector<18x32xf32> -> vector<18x32xf32>
    %c2_65 = arith.constant 2 : index
    %c0_66 = arith.constant 0 : index
    %c0_67 = arith.constant 0 : index
    %80 = vector.load %arg6[%c2_65, %c0_66, %c0_67] : memref<3x1x32xf32, #tpu.memory_space<vmem>>, vector<1x1x32xf32>
    %81 = vector.shape_cast %80 : vector<1x1x32xf32> to vector<1x32xf32>
    %82 = vector.broadcast %81 : vector<1x32xf32> to vector<18x32xf32>
    %83 = arith.mulf %79, %82 : vector<18x32xf32>
    %84 = arith.addf %76, %83 : vector<18x32xf32>
    %85 = arith.truncf %84 : vector<18x32xf32> to vector<18x32xbf16>
    %c0_68 = arith.constant 0 : index
    %c0_69 = arith.constant 0 : index
    %86 = vector.load %arg7[%c0_68, %c0_69] : memref<32x32xbf16, #tpu.memory_space<vmem>>, vector<32x32xbf16>
    %cst_70 = arith.constant dense<0.000000e+00> : vector<18x32xf32>
    %87 = tpu.matmul %85, %86, %cst_70 {dimension_numbers = #tpu.dot_dimension_numbers<[1], [0], [0], [1], [0, 0, 1, 1], [], []>} : vector<18x32xbf16>, vector<32x32xbf16>, vector<18x32xf32> -> vector<18x32xf32>
    %c0_71 = arith.constant 0 : index
    %c0_72 = arith.constant 0 : index
    %c0_73 = arith.constant 0 : index
    %88 = vector.load %arg8[%c0_71, %c0_72, %c0_73] : memref<4x1x32xf32, #tpu.memory_space<vmem>>, vector<1x1x32xf32>
    %89 = vector.shape_cast %88 : vector<1x1x32xf32> to vector<1x32xf32>
    %90 = vector.broadcast %89 : vector<1x32xf32> to vector<18x32xf32>
    %91 = arith.addf %87, %90 : vector<18x32xf32>
    %cst_74 = arith.constant 0.000000e+00 : f32
    %92 = vector.broadcast %cst_74 : f32 to vector<18x32xf32>
    %93 = arith.cmpf oge, %91, %92 : vector<18x32xf32>
    %c1_75 = arith.constant 1 : index
    %c0_76 = arith.constant 0 : index
    %c0_77 = arith.constant 0 : index
    %94 = vector.load %arg8[%c1_75, %c0_76, %c0_77] : memref<4x1x32xf32, #tpu.memory_space<vmem>>, vector<1x1x32xf32>
    %95 = vector.shape_cast %94 : vector<1x1x32xf32> to vector<1x32xf32>
    %96 = vector.broadcast %95 : vector<1x32xf32> to vector<18x32xf32>
    %97 = arith.mulf %91, %96 : vector<18x32xf32>
    %c2_78 = arith.constant 2 : index
    %c0_79 = arith.constant 0 : index
    %c0_80 = arith.constant 0 : index
    %98 = vector.load %arg8[%c2_78, %c0_79, %c0_80] : memref<4x1x32xf32, #tpu.memory_space<vmem>>, vector<1x1x32xf32>
    %99 = vector.shape_cast %98 : vector<1x1x32xf32> to vector<1x32xf32>
    %100 = vector.broadcast %99 : vector<1x32xf32> to vector<18x32xf32>
    %101 = arith.mulf %91, %100 : vector<18x32xf32>
    %102 = arith.select %93, %97, %101 : vector<18x32xi1>, vector<18x32xf32>
    %c3_81 = arith.constant 3 : index
    %c0_82 = arith.constant 0 : index
    %c0_83 = arith.constant 0 : index
    %103 = vector.load %arg8[%c3_81, %c0_82, %c0_83] : memref<4x1x32xf32, #tpu.memory_space<vmem>>, vector<1x1x32xf32>
    %104 = vector.shape_cast %103 : vector<1x1x32xf32> to vector<1x32xf32>
    %105 = vector.broadcast %104 : vector<1x32xf32> to vector<18x32xf32>
    %106 = arith.addf %102, %105 : vector<18x32xf32>
    %c0_84 = arith.constant 0 : index
    %c0_85 = arith.constant 0 : index
    %c0_86 = arith.constant 0 : index
    %107 = vector.load %arg9[%c0_84, %c0_85, %c0_86] : memref<5x6x18xf32, #tpu.memory_space<vmem>>, vector<1x6x18xf32>
    %108 = vector.shape_cast %107 : vector<1x6x18xf32> to vector<6x18xf32>
    %cst_87 = arith.constant dense<0.000000e+00> : vector<6x32xf32>
    %109 = tpu.matmul %108, %106, %cst_87 {dimension_numbers = #tpu.dot_dimension_numbers<[1], [0], [0], [1], [0, 0, 1, 1], [], []>} : vector<6x18xf32>, vector<18x32xf32>, vector<6x32xf32> -> vector<6x32xf32>
    %c0_88 = arith.constant 0 : index
    %c0_89 = arith.constant 0 : index
    %c0_90 = arith.constant 0 : index
    %110 = vector.load %arg10[%c0_88, %c0_89, %c0_90] : memref<5x1x32xf32, #tpu.memory_space<vmem>>, vector<1x1x32xf32>
    %111 = vector.shape_cast %110 : vector<1x1x32xf32> to vector<1x32xf32>
    %112 = vector.broadcast %111 : vector<1x32xf32> to vector<6x32xf32>
    %113 = arith.mulf %109, %112 : vector<6x32xf32>
    %c1_91 = arith.constant 1 : index
    %c0_92 = arith.constant 0 : index
    %c0_93 = arith.constant 0 : index
    %114 = vector.load %arg9[%c1_91, %c0_92, %c0_93] : memref<5x6x18xf32, #tpu.memory_space<vmem>>, vector<1x6x18xf32>
    %115 = vector.shape_cast %114 : vector<1x6x18xf32> to vector<6x18xf32>
    %cst_94 = arith.constant dense<0.000000e+00> : vector<6x32xf32>
    %116 = tpu.matmul %115, %106, %cst_94 {dimension_numbers = #tpu.dot_dimension_numbers<[1], [0], [0], [1], [0, 0, 1, 1], [], []>} : vector<6x18xf32>, vector<18x32xf32>, vector<6x32xf32> -> vector<6x32xf32>
    %c1_95 = arith.constant 1 : index
    %c0_96 = arith.constant 0 : index
    %c0_97 = arith.constant 0 : index
    %117 = vector.load %arg10[%c1_95, %c0_96, %c0_97] : memref<5x1x32xf32, #tpu.memory_space<vmem>>, vector<1x1x32xf32>
    %118 = vector.shape_cast %117 : vector<1x1x32xf32> to vector<1x32xf32>
    %119 = vector.broadcast %118 : vector<1x32xf32> to vector<6x32xf32>
    %120 = arith.mulf %116, %119 : vector<6x32xf32>
    %121 = arith.addf %113, %120 : vector<6x32xf32>
    %c2_98 = arith.constant 2 : index
    %c0_99 = arith.constant 0 : index
    %c0_100 = arith.constant 0 : index
    %122 = vector.load %arg9[%c2_98, %c0_99, %c0_100] : memref<5x6x18xf32, #tpu.memory_space<vmem>>, vector<1x6x18xf32>
    %123 = vector.shape_cast %122 : vector<1x6x18xf32> to vector<6x18xf32>
    %cst_101 = arith.constant dense<0.000000e+00> : vector<6x32xf32>
    %124 = tpu.matmul %123, %106, %cst_101 {dimension_numbers = #tpu.dot_dimension_numbers<[1], [0], [0], [1], [0, 0, 1, 1], [], []>} : vector<6x18xf32>, vector<18x32xf32>, vector<6x32xf32> -> vector<6x32xf32>
    %c2_102 = arith.constant 2 : index
    %c0_103 = arith.constant 0 : index
    %c0_104 = arith.constant 0 : index
    %125 = vector.load %arg10[%c2_102, %c0_103, %c0_104] : memref<5x1x32xf32, #tpu.memory_space<vmem>>, vector<1x1x32xf32>
    %126 = vector.shape_cast %125 : vector<1x1x32xf32> to vector<1x32xf32>
    %127 = vector.broadcast %126 : vector<1x32xf32> to vector<6x32xf32>
    %128 = arith.mulf %124, %127 : vector<6x32xf32>
    %129 = arith.addf %121, %128 : vector<6x32xf32>
    %c3_105 = arith.constant 3 : index
    %c0_106 = arith.constant 0 : index
    %c0_107 = arith.constant 0 : index
    %130 = vector.load %arg9[%c3_105, %c0_106, %c0_107] : memref<5x6x18xf32, #tpu.memory_space<vmem>>, vector<1x6x18xf32>
    %131 = vector.shape_cast %130 : vector<1x6x18xf32> to vector<6x18xf32>
    %cst_108 = arith.constant dense<0.000000e+00> : vector<6x32xf32>
    %132 = tpu.matmul %131, %106, %cst_108 {dimension_numbers = #tpu.dot_dimension_numbers<[1], [0], [0], [1], [0, 0, 1, 1], [], []>} : vector<6x18xf32>, vector<18x32xf32>, vector<6x32xf32> -> vector<6x32xf32>
    %c3_109 = arith.constant 3 : index
    %c0_110 = arith.constant 0 : index
    %c0_111 = arith.constant 0 : index
    %133 = vector.load %arg10[%c3_109, %c0_110, %c0_111] : memref<5x1x32xf32, #tpu.memory_space<vmem>>, vector<1x1x32xf32>
    %134 = vector.shape_cast %133 : vector<1x1x32xf32> to vector<1x32xf32>
    %135 = vector.broadcast %134 : vector<1x32xf32> to vector<6x32xf32>
    %136 = arith.mulf %132, %135 : vector<6x32xf32>
    %137 = arith.addf %129, %136 : vector<6x32xf32>
    %c4_112 = arith.constant 4 : index
    %c0_113 = arith.constant 0 : index
    %c0_114 = arith.constant 0 : index
    %138 = vector.load %arg9[%c4_112, %c0_113, %c0_114] : memref<5x6x18xf32, #tpu.memory_space<vmem>>, vector<1x6x18xf32>
    %139 = vector.shape_cast %138 : vector<1x6x18xf32> to vector<6x18xf32>
    %cst_115 = arith.constant dense<0.000000e+00> : vector<6x32xf32>
    %140 = tpu.matmul %139, %106, %cst_115 {dimension_numbers = #tpu.dot_dimension_numbers<[1], [0], [0], [1], [0, 0, 1, 1], [], []>} : vector<6x18xf32>, vector<18x32xf32>, vector<6x32xf32> -> vector<6x32xf32>
    %c4_116 = arith.constant 4 : index
    %c0_117 = arith.constant 0 : index
    %c0_118 = arith.constant 0 : index
    %141 = vector.load %arg10[%c4_116, %c0_117, %c0_118] : memref<5x1x32xf32, #tpu.memory_space<vmem>>, vector<1x1x32xf32>
    %142 = vector.shape_cast %141 : vector<1x1x32xf32> to vector<1x32xf32>
    %143 = vector.broadcast %142 : vector<1x32xf32> to vector<6x32xf32>
    %144 = arith.mulf %140, %143 : vector<6x32xf32>
    %145 = arith.addf %137, %144 : vector<6x32xf32>
    %146 = arith.truncf %145 : vector<6x32xf32> to vector<6x32xbf16>
    %c0_119 = arith.constant 0 : index
    %c0_120 = arith.constant 0 : index
    %147 = vector.load %arg11[%c0_119, %c0_120] : memref<32x64xbf16, #tpu.memory_space<vmem>>, vector<32x64xbf16>
    %cst_121 = arith.constant dense<0.000000e+00> : vector<6x64xf32>
    %148 = tpu.matmul %146, %147, %cst_121 {dimension_numbers = #tpu.dot_dimension_numbers<[1], [0], [0], [1], [0, 0, 1, 1], [], []>} : vector<6x32xbf16>, vector<32x64xbf16>, vector<6x64xf32> -> vector<6x64xf32>
    %c0_122 = arith.constant 0 : index
    %c0_123 = arith.constant 0 : index
    %c0_124 = arith.constant 0 : index
    %149 = vector.load %arg12[%c0_122, %c0_123, %c0_124] : memref<4x1x64xf32, #tpu.memory_space<vmem>>, vector<1x1x64xf32>
    %150 = vector.shape_cast %149 : vector<1x1x64xf32> to vector<1x64xf32>
    %151 = vector.broadcast %150 : vector<1x64xf32> to vector<6x64xf32>
    %152 = arith.addf %148, %151 : vector<6x64xf32>
    %cst_125 = arith.constant 0.000000e+00 : f32
    %153 = vector.broadcast %cst_125 : f32 to vector<6x64xf32>
    %154 = arith.cmpf oge, %152, %153 : vector<6x64xf32>
    %c1_126 = arith.constant 1 : index
    %c0_127 = arith.constant 0 : index
    %c0_128 = arith.constant 0 : index
    %155 = vector.load %arg12[%c1_126, %c0_127, %c0_128] : memref<4x1x64xf32, #tpu.memory_space<vmem>>, vector<1x1x64xf32>
    %156 = vector.shape_cast %155 : vector<1x1x64xf32> to vector<1x64xf32>
    %157 = vector.broadcast %156 : vector<1x64xf32> to vector<6x64xf32>
    %158 = arith.mulf %152, %157 : vector<6x64xf32>
    %c2_129 = arith.constant 2 : index
    %c0_130 = arith.constant 0 : index
    %c0_131 = arith.constant 0 : index
    %159 = vector.load %arg12[%c2_129, %c0_130, %c0_131] : memref<4x1x64xf32, #tpu.memory_space<vmem>>, vector<1x1x64xf32>
    %160 = vector.shape_cast %159 : vector<1x1x64xf32> to vector<1x64xf32>
    %161 = vector.broadcast %160 : vector<1x64xf32> to vector<6x64xf32>
    %162 = arith.mulf %152, %161 : vector<6x64xf32>
    %163 = arith.select %154, %158, %162 : vector<6x64xi1>, vector<6x64xf32>
    %c3_132 = arith.constant 3 : index
    %c0_133 = arith.constant 0 : index
    %c0_134 = arith.constant 0 : index
    %164 = vector.load %arg12[%c3_132, %c0_133, %c0_134] : memref<4x1x64xf32, #tpu.memory_space<vmem>>, vector<1x1x64xf32>
    %165 = vector.shape_cast %164 : vector<1x1x64xf32> to vector<1x64xf32>
    %166 = vector.broadcast %165 : vector<1x64xf32> to vector<6x64xf32>
    %167 = arith.addf %163, %166 : vector<6x64xf32>
    %c0_135 = arith.constant 0 : index
    %c0_136 = arith.constant 0 : index
    %c0_137 = arith.constant 0 : index
    %168 = vector.load %arg13[%c0_135, %c0_136, %c0_137] : memref<3x6x6xf32, #tpu.memory_space<vmem>>, vector<1x6x6xf32>
    %169 = vector.shape_cast %168 : vector<1x6x6xf32> to vector<6x6xf32>
    %cst_138 = arith.constant dense<0.000000e+00> : vector<6x64xf32>
    %170 = tpu.matmul %169, %167, %cst_138 {dimension_numbers = #tpu.dot_dimension_numbers<[1], [0], [0], [1], [0, 0, 1, 1], [], []>} : vector<6x6xf32>, vector<6x64xf32>, vector<6x64xf32> -> vector<6x64xf32>
    %c0_139 = arith.constant 0 : index
    %c0_140 = arith.constant 0 : index
    %c0_141 = arith.constant 0 : index
    %171 = vector.load %arg14[%c0_139, %c0_140, %c0_141] : memref<3x1x64xf32, #tpu.memory_space<vmem>>, vector<1x1x64xf32>
    %172 = vector.shape_cast %171 : vector<1x1x64xf32> to vector<1x64xf32>
    %173 = vector.broadcast %172 : vector<1x64xf32> to vector<6x64xf32>
    %174 = arith.mulf %170, %173 : vector<6x64xf32>
    %c1_142 = arith.constant 1 : index
    %c0_143 = arith.constant 0 : index
    %c0_144 = arith.constant 0 : index
    %175 = vector.load %arg13[%c1_142, %c0_143, %c0_144] : memref<3x6x6xf32, #tpu.memory_space<vmem>>, vector<1x6x6xf32>
    %176 = vector.shape_cast %175 : vector<1x6x6xf32> to vector<6x6xf32>
    %cst_145 = arith.constant dense<0.000000e+00> : vector<6x64xf32>
    %177 = tpu.matmul %176, %167, %cst_145 {dimension_numbers = #tpu.dot_dimension_numbers<[1], [0], [0], [1], [0, 0, 1, 1], [], []>} : vector<6x6xf32>, vector<6x64xf32>, vector<6x64xf32> -> vector<6x64xf32>
    %c1_146 = arith.constant 1 : index
    %c0_147 = arith.constant 0 : index
    %c0_148 = arith.constant 0 : index
    %178 = vector.load %arg14[%c1_146, %c0_147, %c0_148] : memref<3x1x64xf32, #tpu.memory_space<vmem>>, vector<1x1x64xf32>
    %179 = vector.shape_cast %178 : vector<1x1x64xf32> to vector<1x64xf32>
    %180 = vector.broadcast %179 : vector<1x64xf32> to vector<6x64xf32>
    %181 = arith.mulf %177, %180 : vector<6x64xf32>
    %182 = arith.addf %174, %181 : vector<6x64xf32>
    %c2_149 = arith.constant 2 : index
    %c0_150 = arith.constant 0 : index
    %c0_151 = arith.constant 0 : index
    %183 = vector.load %arg13[%c2_149, %c0_150, %c0_151] : memref<3x6x6xf32, #tpu.memory_space<vmem>>, vector<1x6x6xf32>
    %184 = vector.shape_cast %183 : vector<1x6x6xf32> to vector<6x6xf32>
    %cst_152 = arith.constant dense<0.000000e+00> : vector<6x64xf32>
    %185 = tpu.matmul %184, %167, %cst_152 {dimension_numbers = #tpu.dot_dimension_numbers<[1], [0], [0], [1], [0, 0, 1, 1], [], []>} : vector<6x6xf32>, vector<6x64xf32>, vector<6x64xf32> -> vector<6x64xf32>
    %c2_153 = arith.constant 2 : index
    %c0_154 = arith.constant 0 : index
    %c0_155 = arith.constant 0 : index
    %186 = vector.load %arg14[%c2_153, %c0_154, %c0_155] : memref<3x1x64xf32, #tpu.memory_space<vmem>>, vector<1x1x64xf32>
    %187 = vector.shape_cast %186 : vector<1x1x64xf32> to vector<1x64xf32>
    %188 = vector.broadcast %187 : vector<1x64xf32> to vector<6x64xf32>
    %189 = arith.mulf %185, %188 : vector<6x64xf32>
    %190 = arith.addf %182, %189 : vector<6x64xf32>
    %191 = arith.truncf %190 : vector<6x64xf32> to vector<6x64xbf16>
    %c0_156 = arith.constant 0 : index
    %c0_157 = arith.constant 0 : index
    %192 = vector.load %arg15[%c0_156, %c0_157] : memref<64x64xbf16, #tpu.memory_space<vmem>>, vector<64x64xbf16>
    %cst_158 = arith.constant dense<0.000000e+00> : vector<6x64xf32>
    %193 = tpu.matmul %191, %192, %cst_158 {dimension_numbers = #tpu.dot_dimension_numbers<[1], [0], [0], [1], [0, 0, 1, 1], [], []>} : vector<6x64xbf16>, vector<64x64xbf16>, vector<6x64xf32> -> vector<6x64xf32>
    %c0_159 = arith.constant 0 : index
    %c0_160 = arith.constant 0 : index
    %c0_161 = arith.constant 0 : index
    %194 = vector.load %arg16[%c0_159, %c0_160, %c0_161] : memref<4x1x64xf32, #tpu.memory_space<vmem>>, vector<1x1x64xf32>
    %195 = vector.shape_cast %194 : vector<1x1x64xf32> to vector<1x64xf32>
    %196 = vector.broadcast %195 : vector<1x64xf32> to vector<6x64xf32>
    %197 = arith.addf %193, %196 : vector<6x64xf32>
    %cst_162 = arith.constant 0.000000e+00 : f32
    %198 = vector.broadcast %cst_162 : f32 to vector<6x64xf32>
    %199 = arith.cmpf oge, %197, %198 : vector<6x64xf32>
    %c1_163 = arith.constant 1 : index
    %c0_164 = arith.constant 0 : index
    %c0_165 = arith.constant 0 : index
    %200 = vector.load %arg16[%c1_163, %c0_164, %c0_165] : memref<4x1x64xf32, #tpu.memory_space<vmem>>, vector<1x1x64xf32>
    %201 = vector.shape_cast %200 : vector<1x1x64xf32> to vector<1x64xf32>
    %202 = vector.broadcast %201 : vector<1x64xf32> to vector<6x64xf32>
    %203 = arith.mulf %197, %202 : vector<6x64xf32>
    %c2_166 = arith.constant 2 : index
    %c0_167 = arith.constant 0 : index
    %c0_168 = arith.constant 0 : index
    %204 = vector.load %arg16[%c2_166, %c0_167, %c0_168] : memref<4x1x64xf32, #tpu.memory_space<vmem>>, vector<1x1x64xf32>
    %205 = vector.shape_cast %204 : vector<1x1x64xf32> to vector<1x64xf32>
    %206 = vector.broadcast %205 : vector<1x64xf32> to vector<6x64xf32>
    %207 = arith.mulf %197, %206 : vector<6x64xf32>
    %208 = arith.select %199, %203, %207 : vector<6x64xi1>, vector<6x64xf32>
    %c3_169 = arith.constant 3 : index
    %c0_170 = arith.constant 0 : index
    %c0_171 = arith.constant 0 : index
    %209 = vector.load %arg16[%c3_169, %c0_170, %c0_171] : memref<4x1x64xf32, #tpu.memory_space<vmem>>, vector<1x1x64xf32>
    %210 = vector.shape_cast %209 : vector<1x1x64xf32> to vector<1x64xf32>
    %211 = vector.broadcast %210 : vector<1x64xf32> to vector<6x64xf32>
    %212 = arith.addf %208, %211 : vector<6x64xf32>
    %c0_172 = arith.constant 0 : index
    %c0_173 = arith.constant 0 : index
    %c0_174 = arith.constant 0 : index
    %213 = vector.load %arg17[%c0_172, %c0_173, %c0_174] : memref<5x2x6xf32, #tpu.memory_space<vmem>>, vector<1x2x6xf32>
    %214 = vector.shape_cast %213 : vector<1x2x6xf32> to vector<2x6xf32>
    %cst_175 = arith.constant dense<0.000000e+00> : vector<2x64xf32>
    %215 = tpu.matmul %214, %212, %cst_175 {dimension_numbers = #tpu.dot_dimension_numbers<[1], [0], [0], [1], [0, 0, 1, 1], [], []>} : vector<2x6xf32>, vector<6x64xf32>, vector<2x64xf32> -> vector<2x64xf32>
    %c0_176 = arith.constant 0 : index
    %c0_177 = arith.constant 0 : index
    %c0_178 = arith.constant 0 : index
    %216 = vector.load %arg18[%c0_176, %c0_177, %c0_178] : memref<5x1x64xf32, #tpu.memory_space<vmem>>, vector<1x1x64xf32>
    %217 = vector.shape_cast %216 : vector<1x1x64xf32> to vector<1x64xf32>
    %218 = vector.broadcast %217 : vector<1x64xf32> to vector<2x64xf32>
    %219 = arith.mulf %215, %218 : vector<2x64xf32>
    %c1_179 = arith.constant 1 : index
    %c0_180 = arith.constant 0 : index
    %c0_181 = arith.constant 0 : index
    %220 = vector.load %arg17[%c1_179, %c0_180, %c0_181] : memref<5x2x6xf32, #tpu.memory_space<vmem>>, vector<1x2x6xf32>
    %221 = vector.shape_cast %220 : vector<1x2x6xf32> to vector<2x6xf32>
    %cst_182 = arith.constant dense<0.000000e+00> : vector<2x64xf32>
    %222 = tpu.matmul %221, %212, %cst_182 {dimension_numbers = #tpu.dot_dimension_numbers<[1], [0], [0], [1], [0, 0, 1, 1], [], []>} : vector<2x6xf32>, vector<6x64xf32>, vector<2x64xf32> -> vector<2x64xf32>
    %c1_183 = arith.constant 1 : index
    %c0_184 = arith.constant 0 : index
    %c0_185 = arith.constant 0 : index
    %223 = vector.load %arg18[%c1_183, %c0_184, %c0_185] : memref<5x1x64xf32, #tpu.memory_space<vmem>>, vector<1x1x64xf32>
    %224 = vector.shape_cast %223 : vector<1x1x64xf32> to vector<1x64xf32>
    %225 = vector.broadcast %224 : vector<1x64xf32> to vector<2x64xf32>
    %226 = arith.mulf %222, %225 : vector<2x64xf32>
    %227 = arith.addf %219, %226 : vector<2x64xf32>
    %c2_186 = arith.constant 2 : index
    %c0_187 = arith.constant 0 : index
    %c0_188 = arith.constant 0 : index
    %228 = vector.load %arg17[%c2_186, %c0_187, %c0_188] : memref<5x2x6xf32, #tpu.memory_space<vmem>>, vector<1x2x6xf32>
    %229 = vector.shape_cast %228 : vector<1x2x6xf32> to vector<2x6xf32>
    %cst_189 = arith.constant dense<0.000000e+00> : vector<2x64xf32>
    %230 = tpu.matmul %229, %212, %cst_189 {dimension_numbers = #tpu.dot_dimension_numbers<[1], [0], [0], [1], [0, 0, 1, 1], [], []>} : vector<2x6xf32>, vector<6x64xf32>, vector<2x64xf32> -> vector<2x64xf32>
    %c2_190 = arith.constant 2 : index
    %c0_191 = arith.constant 0 : index
    %c0_192 = arith.constant 0 : index
    %231 = vector.load %arg18[%c2_190, %c0_191, %c0_192] : memref<5x1x64xf32, #tpu.memory_space<vmem>>, vector<1x1x64xf32>
    %232 = vector.shape_cast %231 : vector<1x1x64xf32> to vector<1x64xf32>
    %233 = vector.broadcast %232 : vector<1x64xf32> to vector<2x64xf32>
    %234 = arith.mulf %230, %233 : vector<2x64xf32>
    %235 = arith.addf %227, %234 : vector<2x64xf32>
    %c3_193 = arith.constant 3 : index
    %c0_194 = arith.constant 0 : index
    %c0_195 = arith.constant 0 : index
    %236 = vector.load %arg17[%c3_193, %c0_194, %c0_195] : memref<5x2x6xf32, #tpu.memory_space<vmem>>, vector<1x2x6xf32>
    %237 = vector.shape_cast %236 : vector<1x2x6xf32> to vector<2x6xf32>
    %cst_196 = arith.constant dense<0.000000e+00> : vector<2x64xf32>
    %238 = tpu.matmul %237, %212, %cst_196 {dimension_numbers = #tpu.dot_dimension_numbers<[1], [0], [0], [1], [0, 0, 1, 1], [], []>} : vector<2x6xf32>, vector<6x64xf32>, vector<2x64xf32> -> vector<2x64xf32>
    %c3_197 = arith.constant 3 : index
    %c0_198 = arith.constant 0 : index
    %c0_199 = arith.constant 0 : index
    %239 = vector.load %arg18[%c3_197, %c0_198, %c0_199] : memref<5x1x64xf32, #tpu.memory_space<vmem>>, vector<1x1x64xf32>
    %240 = vector.shape_cast %239 : vector<1x1x64xf32> to vector<1x64xf32>
    %241 = vector.broadcast %240 : vector<1x64xf32> to vector<2x64xf32>
    %242 = arith.mulf %238, %241 : vector<2x64xf32>
    %243 = arith.addf %235, %242 : vector<2x64xf32>
    %c4_200 = arith.constant 4 : index
    %c0_201 = arith.constant 0 : index
    %c0_202 = arith.constant 0 : index
    %244 = vector.load %arg17[%c4_200, %c0_201, %c0_202] : memref<5x2x6xf32, #tpu.memory_space<vmem>>, vector<1x2x6xf32>
    %245 = vector.shape_cast %244 : vector<1x2x6xf32> to vector<2x6xf32>
    %cst_203 = arith.constant dense<0.000000e+00> : vector<2x64xf32>
    %246 = tpu.matmul %245, %212, %cst_203 {dimension_numbers = #tpu.dot_dimension_numbers<[1], [0], [0], [1], [0, 0, 1, 1], [], []>} : vector<2x6xf32>, vector<6x64xf32>, vector<2x64xf32> -> vector<2x64xf32>
    %c4_204 = arith.constant 4 : index
    %c0_205 = arith.constant 0 : index
    %c0_206 = arith.constant 0 : index
    %247 = vector.load %arg18[%c4_204, %c0_205, %c0_206] : memref<5x1x64xf32, #tpu.memory_space<vmem>>, vector<1x1x64xf32>
    %248 = vector.shape_cast %247 : vector<1x1x64xf32> to vector<1x64xf32>
    %249 = vector.broadcast %248 : vector<1x64xf32> to vector<2x64xf32>
    %250 = arith.mulf %246, %249 : vector<2x64xf32>
    %251 = arith.addf %243, %250 : vector<2x64xf32>
    %252 = arith.truncf %251 : vector<2x64xf32> to vector<2x64xbf16>
    %c0_207 = arith.constant 0 : index
    %c0_208 = arith.constant 0 : index
    %253 = vector.load %arg19[%c0_207, %c0_208] : memref<64x128xbf16, #tpu.memory_space<vmem>>, vector<64x128xbf16>
    %cst_209 = arith.constant dense<0.000000e+00> : vector<2x128xf32>
    %254 = tpu.matmul %252, %253, %cst_209 {dimension_numbers = #tpu.dot_dimension_numbers<[1], [0], [0], [1], [0, 0, 1, 1], [], []>} : vector<2x64xbf16>, vector<64x128xbf16>, vector<2x128xf32> -> vector<2x128xf32>
    %c0_210 = arith.constant 0 : index
    %c0_211 = arith.constant 0 : index
    %c0_212 = arith.constant 0 : index
    %255 = vector.load %arg20[%c0_210, %c0_211, %c0_212] : memref<4x1x128xf32, #tpu.memory_space<vmem>>, vector<1x1x128xf32>
    %256 = vector.shape_cast %255 : vector<1x1x128xf32> to vector<1x128xf32>
    %257 = vector.broadcast %256 : vector<1x128xf32> to vector<2x128xf32>
    %258 = arith.addf %254, %257 : vector<2x128xf32>
    %cst_213 = arith.constant 0.000000e+00 : f32
    %259 = vector.broadcast %cst_213 : f32 to vector<2x128xf32>
    %260 = arith.cmpf oge, %258, %259 : vector<2x128xf32>
    %c1_214 = arith.constant 1 : index
    %c0_215 = arith.constant 0 : index
    %c0_216 = arith.constant 0 : index
    %261 = vector.load %arg20[%c1_214, %c0_215, %c0_216] : memref<4x1x128xf32, #tpu.memory_space<vmem>>, vector<1x1x128xf32>
    %262 = vector.shape_cast %261 : vector<1x1x128xf32> to vector<1x128xf32>
    %263 = vector.broadcast %262 : vector<1x128xf32> to vector<2x128xf32>
    %264 = arith.mulf %258, %263 : vector<2x128xf32>
    %c2_217 = arith.constant 2 : index
    %c0_218 = arith.constant 0 : index
    %c0_219 = arith.constant 0 : index
    %265 = vector.load %arg20[%c2_217, %c0_218, %c0_219] : memref<4x1x128xf32, #tpu.memory_space<vmem>>, vector<1x1x128xf32>
    %266 = vector.shape_cast %265 : vector<1x1x128xf32> to vector<1x128xf32>
    %267 = vector.broadcast %266 : vector<1x128xf32> to vector<2x128xf32>
    %268 = arith.mulf %258, %267 : vector<2x128xf32>
    %269 = arith.select %260, %264, %268 : vector<2x128xi1>, vector<2x128xf32>
    %c3_220 = arith.constant 3 : index
    %c0_221 = arith.constant 0 : index
    %c0_222 = arith.constant 0 : index
    %270 = vector.load %arg20[%c3_220, %c0_221, %c0_222] : memref<4x1x128xf32, #tpu.memory_space<vmem>>, vector<1x1x128xf32>
    %271 = vector.shape_cast %270 : vector<1x1x128xf32> to vector<1x128xf32>
    %272 = vector.broadcast %271 : vector<1x128xf32> to vector<2x128xf32>
    %273 = arith.addf %269, %272 : vector<2x128xf32>
    %c0_223 = arith.constant 0 : index
    %c0_224 = arith.constant 0 : index
    %c0_225 = arith.constant 0 : index
    %274 = vector.load %arg21[%c0_223, %c0_224, %c0_225] : memref<3x2x2xf32, #tpu.memory_space<vmem>>, vector<1x2x2xf32>
    %275 = vector.shape_cast %274 : vector<1x2x2xf32> to vector<2x2xf32>
    %cst_226 = arith.constant dense<0.000000e+00> : vector<2x128xf32>
    %276 = tpu.matmul %275, %273, %cst_226 {dimension_numbers = #tpu.dot_dimension_numbers<[1], [0], [0], [1], [0, 0, 1, 1], [], []>} : vector<2x2xf32>, vector<2x128xf32>, vector<2x128xf32> -> vector<2x128xf32>
    %c0_227 = arith.constant 0 : index
    %c0_228 = arith.constant 0 : index
    %c0_229 = arith.constant 0 : index
    %277 = vector.load %arg22[%c0_227, %c0_228, %c0_229] : memref<3x1x128xf32, #tpu.memory_space<vmem>>, vector<1x1x128xf32>
    %278 = vector.shape_cast %277 : vector<1x1x128xf32> to vector<1x128xf32>
    %279 = vector.broadcast %278 : vector<1x128xf32> to vector<2x128xf32>
    %280 = arith.mulf %276, %279 : vector<2x128xf32>
    %c1_230 = arith.constant 1 : index
    %c0_231 = arith.constant 0 : index
    %c0_232 = arith.constant 0 : index
    %281 = vector.load %arg21[%c1_230, %c0_231, %c0_232] : memref<3x2x2xf32, #tpu.memory_space<vmem>>, vector<1x2x2xf32>
    %282 = vector.shape_cast %281 : vector<1x2x2xf32> to vector<2x2xf32>
    %cst_233 = arith.constant dense<0.000000e+00> : vector<2x128xf32>
    %283 = tpu.matmul %282, %273, %cst_233 {dimension_numbers = #tpu.dot_dimension_numbers<[1], [0], [0], [1], [0, 0, 1, 1], [], []>} : vector<2x2xf32>, vector<2x128xf32>, vector<2x128xf32> -> vector<2x128xf32>
    %c1_234 = arith.constant 1 : index
    %c0_235 = arith.constant 0 : index
    %c0_236 = arith.constant 0 : index
    %284 = vector.load %arg22[%c1_234, %c0_235, %c0_236] : memref<3x1x128xf32, #tpu.memory_space<vmem>>, vector<1x1x128xf32>
    %285 = vector.shape_cast %284 : vector<1x1x128xf32> to vector<1x128xf32>
    %286 = vector.broadcast %285 : vector<1x128xf32> to vector<2x128xf32>
    %287 = arith.mulf %283, %286 : vector<2x128xf32>
    %288 = arith.addf %280, %287 : vector<2x128xf32>
    %c2_237 = arith.constant 2 : index
    %c0_238 = arith.constant 0 : index
    %c0_239 = arith.constant 0 : index
    %289 = vector.load %arg21[%c2_237, %c0_238, %c0_239] : memref<3x2x2xf32, #tpu.memory_space<vmem>>, vector<1x2x2xf32>
    %290 = vector.shape_cast %289 : vector<1x2x2xf32> to vector<2x2xf32>
    %cst_240 = arith.constant dense<0.000000e+00> : vector<2x128xf32>
    %291 = tpu.matmul %290, %273, %cst_240 {dimension_numbers = #tpu.dot_dimension_numbers<[1], [0], [0], [1], [0, 0, 1, 1], [], []>} : vector<2x2xf32>, vector<2x128xf32>, vector<2x128xf32> -> vector<2x128xf32>
    %c2_241 = arith.constant 2 : index
    %c0_242 = arith.constant 0 : index
    %c0_243 = arith.constant 0 : index
    %292 = vector.load %arg22[%c2_241, %c0_242, %c0_243] : memref<3x1x128xf32, #tpu.memory_space<vmem>>, vector<1x1x128xf32>
    %293 = vector.shape_cast %292 : vector<1x1x128xf32> to vector<1x128xf32>
    %294 = vector.broadcast %293 : vector<1x128xf32> to vector<2x128xf32>
    %295 = arith.mulf %291, %294 : vector<2x128xf32>
    %296 = arith.addf %288, %295 : vector<2x128xf32>
    %297 = arith.truncf %296 : vector<2x128xf32> to vector<2x128xbf16>
    %c0_244 = arith.constant 0 : index
    %c0_245 = arith.constant 0 : index
    %298 = vector.load %arg23[%c0_244, %c0_245] : memref<128x128xbf16, #tpu.memory_space<vmem>>, vector<128x128xbf16>
    %cst_246 = arith.constant dense<0.000000e+00> : vector<2x128xf32>
    %299 = tpu.matmul %297, %298, %cst_246 {dimension_numbers = #tpu.dot_dimension_numbers<[1], [0], [0], [1], [0, 0, 1, 1], [], []>} : vector<2x128xbf16>, vector<128x128xbf16>, vector<2x128xf32> -> vector<2x128xf32>
    %c0_247 = arith.constant 0 : index
    %c0_248 = arith.constant 0 : index
    %c0_249 = arith.constant 0 : index
    %300 = vector.load %arg24[%c0_247, %c0_248, %c0_249] : memref<4x1x128xf32, #tpu.memory_space<vmem>>, vector<1x1x128xf32>
    %301 = vector.shape_cast %300 : vector<1x1x128xf32> to vector<1x128xf32>
    %302 = vector.broadcast %301 : vector<1x128xf32> to vector<2x128xf32>
    %303 = arith.addf %299, %302 : vector<2x128xf32>
    %cst_250 = arith.constant 0.000000e+00 : f32
    %304 = vector.broadcast %cst_250 : f32 to vector<2x128xf32>
    %305 = arith.cmpf oge, %303, %304 : vector<2x128xf32>
    %c1_251 = arith.constant 1 : index
    %c0_252 = arith.constant 0 : index
    %c0_253 = arith.constant 0 : index
    %306 = vector.load %arg24[%c1_251, %c0_252, %c0_253] : memref<4x1x128xf32, #tpu.memory_space<vmem>>, vector<1x1x128xf32>
    %307 = vector.shape_cast %306 : vector<1x1x128xf32> to vector<1x128xf32>
    %308 = vector.broadcast %307 : vector<1x128xf32> to vector<2x128xf32>
    %309 = arith.mulf %303, %308 : vector<2x128xf32>
    %c2_254 = arith.constant 2 : index
    %c0_255 = arith.constant 0 : index
    %c0_256 = arith.constant 0 : index
    %310 = vector.load %arg24[%c2_254, %c0_255, %c0_256] : memref<4x1x128xf32, #tpu.memory_space<vmem>>, vector<1x1x128xf32>
    %311 = vector.shape_cast %310 : vector<1x1x128xf32> to vector<1x128xf32>
    %312 = vector.broadcast %311 : vector<1x128xf32> to vector<2x128xf32>
    %313 = arith.mulf %303, %312 : vector<2x128xf32>
    %314 = arith.select %305, %309, %313 : vector<2x128xi1>, vector<2x128xf32>
    %c3_257 = arith.constant 3 : index
    %c0_258 = arith.constant 0 : index
    %c0_259 = arith.constant 0 : index
    %315 = vector.load %arg24[%c3_257, %c0_258, %c0_259] : memref<4x1x128xf32, #tpu.memory_space<vmem>>, vector<1x1x128xf32>
    %316 = vector.shape_cast %315 : vector<1x1x128xf32> to vector<1x128xf32>
    %317 = vector.broadcast %316 : vector<1x128xf32> to vector<2x128xf32>
    %318 = arith.addf %314, %317 : vector<2x128xf32>
    %c0_260 = arith.constant 0 : index
    %c0_261 = arith.constant 0 : index
    %c0_262 = arith.constant 0 : index
    %319 = vector.load %arg25[%c0_260, %c0_261, %c0_262] : memref<1x4x2xf32, #tpu.memory_space<vmem>>, vector<1x4x2xf32>
    %320 = vector.shape_cast %319 : vector<1x4x2xf32> to vector<4x2xf32>
    %cst_263 = arith.constant dense<0.000000e+00> : vector<4x128xf32>
    %321 = tpu.matmul %320, %318, %cst_263 {dimension_numbers = #tpu.dot_dimension_numbers<[1], [0], [0], [1], [0, 0, 1, 1], [], []>} : vector<4x2xf32>, vector<2x128xf32>, vector<4x128xf32> -> vector<4x128xf32>
    %c0_264 = arith.constant 0 : index
    %c0_265 = arith.constant 0 : index
    %c0_266 = arith.constant 0 : index
    %322 = vector.load %arg26[%c0_264, %c0_265, %c0_266] : memref<1x1x128xf32, #tpu.memory_space<vmem>>, vector<1x1x128xf32>
    %323 = vector.shape_cast %322 : vector<1x1x128xf32> to vector<1x128xf32>
    %324 = vector.broadcast %323 : vector<1x128xf32> to vector<4x128xf32>
    %325 = arith.mulf %321, %324 : vector<4x128xf32>
    %326 = arith.truncf %325 : vector<4x128xf32> to vector<4x128xbf16>
    %c0_267 = arith.constant 0 : index
    %c0_268 = arith.constant 0 : index
    %327 = vector.load %arg27[%c0_267, %c0_268] : memref<128x256xbf16, #tpu.memory_space<vmem>>, vector<128x256xbf16>
    %cst_269 = arith.constant dense<0.000000e+00> : vector<4x256xf32>
    %328 = tpu.matmul %326, %327, %cst_269 {dimension_numbers = #tpu.dot_dimension_numbers<[1], [0], [0], [1], [0, 0, 1, 1], [], []>} : vector<4x128xbf16>, vector<128x256xbf16>, vector<4x256xf32> -> vector<4x256xf32>
    %c0_270 = arith.constant 0 : index
    %c0_271 = arith.constant 0 : index
    %c0_272 = arith.constant 0 : index
    %329 = vector.load %arg28[%c0_270, %c0_271, %c0_272] : memref<4x1x256xf32, #tpu.memory_space<vmem>>, vector<1x1x256xf32>
    %330 = vector.shape_cast %329 : vector<1x1x256xf32> to vector<1x256xf32>
    %331 = vector.broadcast %330 : vector<1x256xf32> to vector<4x256xf32>
    %332 = arith.addf %328, %331 : vector<4x256xf32>
    %cst_273 = arith.constant 0.000000e+00 : f32
    %333 = vector.broadcast %cst_273 : f32 to vector<4x256xf32>
    %334 = arith.cmpf oge, %332, %333 : vector<4x256xf32>
    %c1_274 = arith.constant 1 : index
    %c0_275 = arith.constant 0 : index
    %c0_276 = arith.constant 0 : index
    %335 = vector.load %arg28[%c1_274, %c0_275, %c0_276] : memref<4x1x256xf32, #tpu.memory_space<vmem>>, vector<1x1x256xf32>
    %336 = vector.shape_cast %335 : vector<1x1x256xf32> to vector<1x256xf32>
    %337 = vector.broadcast %336 : vector<1x256xf32> to vector<4x256xf32>
    %338 = arith.mulf %332, %337 : vector<4x256xf32>
    %c2_277 = arith.constant 2 : index
    %c0_278 = arith.constant 0 : index
    %c0_279 = arith.constant 0 : index
    %339 = vector.load %arg28[%c2_277, %c0_278, %c0_279] : memref<4x1x256xf32, #tpu.memory_space<vmem>>, vector<1x1x256xf32>
    %340 = vector.shape_cast %339 : vector<1x1x256xf32> to vector<1x256xf32>
    %341 = vector.broadcast %340 : vector<1x256xf32> to vector<4x256xf32>
    %342 = arith.mulf %332, %341 : vector<4x256xf32>
    %343 = arith.select %334, %338, %342 : vector<4x256xi1>, vector<4x256xf32>
    %c3_280 = arith.constant 3 : index
    %c0_281 = arith.constant 0 : index
    %c0_282 = arith.constant 0 : index
    %344 = vector.load %arg28[%c3_280, %c0_281, %c0_282] : memref<4x1x256xf32, #tpu.memory_space<vmem>>, vector<1x1x256xf32>
    %345 = vector.shape_cast %344 : vector<1x1x256xf32> to vector<1x256xf32>
    %346 = vector.broadcast %345 : vector<1x256xf32> to vector<4x256xf32>
    %347 = arith.addf %343, %346 : vector<4x256xf32>
    %c0_283 = arith.constant 0 : index
    %c0_284 = arith.constant 0 : index
    %c0_285 = arith.constant 0 : index
    %348 = vector.load %arg29[%c0_283, %c0_284, %c0_285] : memref<2x2x4xf32, #tpu.memory_space<vmem>>, vector<1x2x4xf32>
    %349 = vector.shape_cast %348 : vector<1x2x4xf32> to vector<2x4xf32>
    %cst_286 = arith.constant dense<0.000000e+00> : vector<2x256xf32>
    %350 = tpu.matmul %349, %347, %cst_286 {dimension_numbers = #tpu.dot_dimension_numbers<[1], [0], [0], [1], [0, 0, 1, 1], [], []>} : vector<2x4xf32>, vector<4x256xf32>, vector<2x256xf32> -> vector<2x256xf32>
    %351 = arith.truncf %350 : vector<2x256xf32> to vector<2x256xbf16>
    %c0_287 = arith.constant 0 : index
    %c0_288 = arith.constant 0 : index
    %c0_289 = arith.constant 0 : index
    %352 = vector.load %arg30[%c0_287, %c0_288, %c0_289] : memref<2x256x64xbf16, #tpu.memory_space<vmem>>, vector<1x256x64xbf16>
    %353 = vector.shape_cast %352 : vector<1x256x64xbf16> to vector<256x64xbf16>
    %cst_290 = arith.constant dense<0.000000e+00> : vector<2x64xf32>
    %354 = tpu.matmul %351, %353, %cst_290 {dimension_numbers = #tpu.dot_dimension_numbers<[1], [0], [0], [1], [0, 0, 1, 1], [], []>} : vector<2x256xbf16>, vector<256x64xbf16>, vector<2x64xf32> -> vector<2x64xf32>
    %c1_291 = arith.constant 1 : index
    %c0_292 = arith.constant 0 : index
    %c0_293 = arith.constant 0 : index
    %355 = vector.load %arg29[%c1_291, %c0_292, %c0_293] : memref<2x2x4xf32, #tpu.memory_space<vmem>>, vector<1x2x4xf32>
    %356 = vector.shape_cast %355 : vector<1x2x4xf32> to vector<2x4xf32>
    %cst_294 = arith.constant dense<0.000000e+00> : vector<2x256xf32>
    %357 = tpu.matmul %356, %347, %cst_294 {dimension_numbers = #tpu.dot_dimension_numbers<[1], [0], [0], [1], [0, 0, 1, 1], [], []>} : vector<2x4xf32>, vector<4x256xf32>, vector<2x256xf32> -> vector<2x256xf32>
    %358 = arith.truncf %357 : vector<2x256xf32> to vector<2x256xbf16>
    %c1_295 = arith.constant 1 : index
    %c0_296 = arith.constant 0 : index
    %c0_297 = arith.constant 0 : index
    %359 = vector.load %arg30[%c1_295, %c0_296, %c0_297] : memref<2x256x64xbf16, #tpu.memory_space<vmem>>, vector<1x256x64xbf16>
    %360 = vector.shape_cast %359 : vector<1x256x64xbf16> to vector<256x64xbf16>
    %cst_298 = arith.constant dense<0.000000e+00> : vector<2x64xf32>
    %361 = tpu.matmul %358, %360, %cst_298 {dimension_numbers = #tpu.dot_dimension_numbers<[1], [0], [0], [1], [0, 0, 1, 1], [], []>} : vector<2x256xbf16>, vector<256x64xbf16>, vector<2x64xf32> -> vector<2x64xf32>
    %362 = arith.addf %354, %361 : vector<2x64xf32>
    %c0_299 = arith.constant 0 : index
    %c0_300 = arith.constant 0 : index
    %363 = vector.load %arg31[%c0_299, %c0_300] : memref<1x64xf32, #tpu.memory_space<vmem>>, vector<1x64xf32>
    %364 = vector.broadcast %363 : vector<1x64xf32> to vector<2x64xf32>
    %365 = arith.addf %362, %364 : vector<2x64xf32>
    %cst_301 = arith.constant 0.000000e+00 : f32
    %366 = vector.broadcast %cst_301 : f32 to vector<2x64xf32>
    %367 = arith.maximumf %365, %366 : vector<2x64xf32>
    %368 = arith.truncf %367 : vector<2x64xf32> to vector<2x64xbf16>
    %c0_302 = arith.constant 0 : index
    %c0_303 = arith.constant 0 : index
    %369 = vector.load %arg32[%c0_302, %c0_303] : memref<64x8xbf16, #tpu.memory_space<vmem>>, vector<64x8xbf16>
    %cst_304 = arith.constant dense<0.000000e+00> : vector<2x8xf32>
    %370 = tpu.matmul %368, %369, %cst_304 {dimension_numbers = #tpu.dot_dimension_numbers<[1], [0], [0], [1], [0, 0, 1, 1], [], []>} : vector<2x64xbf16>, vector<64x8xbf16>, vector<2x8xf32> -> vector<2x8xf32>
    %c0_305 = arith.constant 0 : index
    %c0_306 = arith.constant 0 : index
    %371 = vector.load %arg33[%c0_305, %c0_306] : memref<1x8xf32, #tpu.memory_space<vmem>>, vector<1x8xf32>
    %372 = vector.broadcast %371 : vector<1x8xf32> to vector<2x8xf32>
    %373 = arith.addf %370, %372 : vector<2x8xf32>
    %c0_307 = arith.constant 0 : index
    %c0_308 = arith.constant 0 : index
    %374 = vector.load %arg34[%c0_307, %c0_308] : memref<2x8xf32, #tpu.memory_space<vmem>>, vector<2x8xf32>
    tpu.vector_store %arg34[%c0_307, %c0_308], %373 {strides = array<i32>} : memref<2x8xf32, #tpu.memory_space<vmem>>, vector<2x8xf32>,
    return
  }
}

</mosaic_0001>

<llo_original>
// kernel: classifier3l_forward.1
$region0: #{classifier3l_forward.1}
  #allocation0 [shape = 'u32[]', space=smem, size = 0x4, offset = 0x4, fixed_abs, tag = 'smem constant byte address 0x4 - core index']
  #allocation1 [shape = 'u32[144,128]{1,0:T(1,128)}', space=vmem, size = 0x12000, scoped, tag = 'internal scratch']
  %s0 = inlined_call_operand.smem [shape: u32[35], index: -1, kind: input, shape index: {}]
  %s1 = sld [smem:[%s0]]
  %s2 = scalar_lea.smem %s0, 1
  %s3 = sld [smem:[%s2]]
  %s4 = scalar_lea.smem %s0, 2
  %s5 = sld [smem:[%s4]]
  %s6 = scalar_lea.smem %s0, 3
  %s7 = sld [smem:[%s6]]
  %s8 = scalar_lea.smem %s0, 4
  %s9 = sld [smem:[%s8]]
  %s10 = scalar_lea.smem %s0, 5
  %s11 = sld [smem:[%s10]]
  %s12 = scalar_lea.smem %s0, 6
  %s13 = sld [smem:[%s12]]
  %s14 = scalar_lea.smem %s0, 7
  %s15 = sld [smem:[%s14]]
  %s16 = scalar_lea.smem %s0, 8
  %s17 = sld [smem:[%s16]]
  %s18 = scalar_lea.smem %s0, 9
  %s19 = sld [smem:[%s18]]
  %s20 = scalar_lea.smem %s0, 10
  %s21 = sld [smem:[%s20]]
  %s22 = scalar_lea.smem %s0, 11
  %s23 = sld [smem:[%s22]]
  %s24 = scalar_lea.smem %s0, 12
  %s25 = sld [smem:[%s24]]
  %s26 = scalar_lea.smem %s0, 13
  %s27 = sld [smem:[%s26]]
  %s28 = scalar_lea.smem %s0, 14
  %s29 = sld [smem:[%s28]]
  %s30 = scalar_lea.smem %s0, 15
  %s31 = sld [smem:[%s30]]
  %s32 = scalar_lea.smem %s0, 16
  %s33 = sld [smem:[%s32]]
  %s34 = scalar_lea.smem %s0, 17
  %s35 = sld [smem:[%s34]]
  %s36 = scalar_lea.smem %s0, 18
  %s37 = sld [smem:[%s36]]
  %s38 = scalar_lea.smem %s0, 19
  %s39 = sld [smem:[%s38]]
  %s40 = scalar_lea.smem %s0, 20
  %s41 = sld [smem:[%s40]]
  %s42 = scalar_lea.smem %s0, 21
  %s43 = sld [smem:[%s42]]
  %s44 = scalar_lea.smem %s0, 22
  %s45 = sld [smem:[%s44]]
  %s46 = scalar_lea.smem %s0, 23
  %s47 = sld [smem:[%s46]]
  %s48 = scalar_lea.smem %s0, 24
  %s49 = sld [smem:[%s48]]
  %s50 = scalar_lea.smem %s0, 25
  %s51 = sld [smem:[%s50]]
  %s52 = scalar_lea.smem %s0, 26
  %s53 = sld [smem:[%s52]]
  %s54 = scalar_lea.smem %s0, 27
  %s55 = sld [smem:[%s54]]
  %s56 = scalar_lea.smem %s0, 28
  %s57 = sld [smem:[%s56]]
  %s58 = scalar_lea.smem %s0, 29
  %s59 = sld [smem:[%s58]]
  %s60 = scalar_lea.smem %s0, 30
  %s61 = sld [smem:[%s60]]
  %s62 = scalar_lea.smem %s0, 31
  %s63 = sld [smem:[%s62]]
  %s64 = scalar_lea.smem %s0, 32
  %s65 = sld [smem:[%s64]]
  %s66 = scalar_lea.smem %s0, 33
  %s67 = sld [smem:[%s66]]
  %s68 = scalar_lea.smem %s0, 34
  %s69 = sld [smem:[%s68]]
  %s70 = sld [smem:[#allocation0]]
  $region226: #{classifier3l_forward.1} parent=0
    _
  %s72 = ssub.s32 1, %s70
  %s73 = scalar_select 0, %s72, %s70
  $region1: #{classifier3l_forward.1} parent=0
    #allocation2 [shape = 'u8[1024]{0}', space=vmem, size = 0x400, scoped, tag = 'input window, operand 3, single buffered']
    #allocation3 [shape = 's32[1]{0}', space=sflag, size = 0x4, scoped, tag = 'scoped memory for classifier3l_forward.1']
    #allocation4 [shape = 's32[1]{0}', space=sflag, size = 0x4, scoped, tag = 'scoped memory for classifier3l_forward.1']
    #allocation5 [shape = 'u8[2048]{0}', space=vmem, size = 0x800, scoped, tag = 'input window, operand 4, single buffered']
    #allocation6 [shape = 's32[1]{0}', space=sflag, size = 0x4, scoped, tag = 'scoped memory for classifier3l_forward.1']
    #allocation7 [shape = 'u8[1536]{0}', space=vmem, size = 0x800, scoped, tag = 'input window, operand 6, single buffered']
    #allocation8 [shape = 'u8[8192]{0}', space=vmem, size = 0x2000, scoped, tag = 'input window, operand 7, single buffered']
    #allocation9 [shape = 's32[1]{0}', space=sflag, size = 0x4, scoped, tag = 'scoped memory for classifier3l_forward.1']
    #allocation10 [shape = 'u8[2048]{0}', space=vmem, size = 0x800, scoped, tag = 'input window, operand 8, single buffered']
    #allocation11 [shape = 'u8[8192]{0}', space=vmem, size = 0x2000, scoped, tag = 'input window, operand 11, single buffered']
    #allocation12 [shape = 's32[1]{0}', space=sflag, size = 0x4, scoped, tag = 'scoped memory for classifier3l_forward.1']
    #allocation13 [shape = 'u8[2048]{0}', space=vmem, size = 0x800, scoped, tag = 'input window, operand 12, single buffered']
    #allocation14 [shape = 'u8[1536]{0}', space=vmem, size = 0x800, scoped, tag = 'input window, operand 14, single buffered']
    #allocation15 [shape = 's32[1]{0}', space=sflag, size = 0x4, scoped, tag = 'scoped memory for classifier3l_forward.1']
    #allocation16 [shape = 'u8[2048]{0}', space=vmem, size = 0x800, scoped, tag = 'input window, operand 16, single buffered']
    #allocation17 [shape = 'u8[5120]{0}', space=vmem, size = 0x1400, scoped, tag = 'input window, operand 17, single buffered']
    #allocation18 [shape = 's32[1]{0}', space=sflag, size = 0x4, scoped, tag = 'scoped memory for classifier3l_forward.1']
    #allocation19 [shape = 'u8[2560]{0}', space=vmem, size = 0xc00, scoped, tag = 'input window, operand 18, single buffered']
    #allocation20 [shape = 'u8[16384]{0}', space=vmem, size = 0x4000, scoped, tag = 'input window, operand 19, single buffered']
    #allocation21 [shape = 's32[1]{0}', space=sflag, size = 0x4, scoped, tag = 'scoped memory for classifier3l_forward.1']
    #allocation22 [shape = 'u8[2048]{0}', space=vmem, size = 0x800, scoped, tag = 'input window, operand 20, single buffered']
    #allocation23 [shape = 'u8[1536]{0}', space=vmem, size = 0x800, scoped, tag = 'input window, operand 22, single buffered']
    #allocation24 [shape = 's32[1]{0}', space=sflag, size = 0x4, scoped, tag = 'scoped memory for classifier3l_forward.1']
    #allocation25 [shape = 'u8[2048]{0}', space=vmem, size = 0x800, scoped, tag = 'input window, operand 24, single buffered']
    #allocation26 [shape = 'u8[512]{0}', space=vmem, size = 0x400, scoped, tag = 'input window, operand 26, single buffered']
    #allocation27 [shape = 's32[1]{0}', space=sflag, size = 0x4, scoped, tag = 'scoped memory for classifier3l_forward.1']
    #allocation28 [shape = 'u8[4096]{0}', space=vmem, size = 0x1000, scoped, tag = 'input window, operand 28, single buffered']
    #allocation29 [shape = 'u8[2048]{0}', space=vmem, size = 0x800, scoped, tag = 'input window, operand 29, single buffered']
    #allocation30 [shape = 's32[1]{0}', space=sflag, size = 0x4, scoped, tag = 'scoped memory for classifier3l_forward.1']
    #allocation31 [shape = 'u8[512]{0}', space=vmem, size = 0x400, scoped, tag = 'input window, operand 31, single buffered']
    #allocation32 [shape = 'u8[512]{0}', space=vmem, size = 0x400, scoped, tag = 'input window, operand 33, single buffered']
    #allocation33 [shape = 's32[1]{0}', space=sflag, size = 0x4, scoped, tag = 'scoped memory for classifier3l_forward.1']
    #allocation34 [shape = 'u8[1024]{0}', space=vmem, size = 0x400, scoped, tag = 'output window, operand 0, single buffered']
    %74 = vsyncpa [#allocation3], 0
    %75 = vsyncpa [#allocation6], 0
    %76 = vsyncpa [#allocation9], 0
    %77 = vsyncpa [#allocation12], 0
    %78 = vsyncpa [#allocation15], 0
    %79 = vsyncpa [#allocation18], 0
    %80 = vsyncpa [#allocation21], 0
    %81 = vsyncpa [#allocation24], 0
    %82 = vsyncpa [#allocation27], 0
    %83 = vsyncpa [#allocation30], 0
    %84 = vsyncpa [#allocation33], 0
    %85 = vsyncpa [#allocation4], 0
    // Predicated region
    $region2: #{classifier3l_forward.1} parent=1 // pred_check
      _
    $region3: #{classifier3l_forward.1} parent=1 // pred_check_branch
      %87 = sbr.rel (0) target = $region5
    $region4: #{classifier3l_forward.1} parent=1 // pred_region
      _
    $region5: #{classifier3l_forward.1} parent=1 // pred_fallthru
      _
    // Predicated region
    $region6: #{classifier3l_forward.1} parent=1 // pred_check
      _
    $region7: #{classifier3l_forward.1} parent=1 // pred_check_branch
      %89 = sbr.rel (0) target = $region9
    $region8: #{classifier3l_forward.1} parent=1 // pred_region
      _
    $region9: #{classifier3l_forward.1} parent=1 // pred_fallthru
      _
    // Predicated region
    $region10: #{classifier3l_forward.1} parent=1 // pred_check
      _
    $region11: #{classifier3l_forward.1} parent=1 // pred_check_branch
      %91 = sbr.rel (0) target = $region13
    $region12: #{classifier3l_forward.1} parent=1 // pred_region
      _
    $region13: #{classifier3l_forward.1} parent=1 // pred_fallthru
      _
    // Predicated region
    $region14: #{classifier3l_forward.1} parent=1 // pred_check
      _
    $region15: #{classifier3l_forward.1} parent=1 // pred_check_branch
      %93 = sbr.rel (0) target = $region17
    $region16: #{classifier3l_forward.1} parent=1 // pred_region
      %s95 = ssub.s32 32, 32
      %96 = vsyncadd [#allocation3], %s95
      %s98 = sshll.u32 [#allocation2], 4
      %s99 = int_to_ptr.vmem [resolvable:$true] %s98
      %101 = dma.hbm_to_vmem [thread:$0]  %s7, 32, %s99, [#allocation3]
    $region17: #{classifier3l_forward.1} parent=1 // pred_fallthru
      _
    // Predicated region
    $region18: #{classifier3l_forward.1} parent=1 // pred_check
      _
    $region19: #{classifier3l_forward.1} parent=1 // pred_check_branch
      %103 = sbr.rel (0) target = $region21
    $region20: #{classifier3l_forward.1} parent=1 // pred_region
      %s105 = ssub.s32 64, 64
      %106 = vsyncadd [#allocation6], %s105
      %s107 = sshll.u32 [#allocation5], 4
      %s108 = int_to_ptr.vmem [resolvable:$true] %s107
      %113 = dma.hbm_to_vmem [thread:$0]  %s9, 64, %s108, [#allocation6], 16, 16, 1
    $region21: #{classifier3l_forward.1} parent=1 // pred_fallthru
      _
    // Predicated region
    $region22: #{classifier3l_forward.1} parent=1 // pred_check
      _
    $region23: #{classifier3l_forward.1} parent=1 // pred_check_branch
      %115 = sbr.rel (0) target = $region25
    $region24: #{classifier3l_forward.1} parent=1 // pred_region
      _
    $region25: #{classifier3l_forward.1} parent=1 // pred_fallthru
      _
    // Predicated region
    $region26: #{classifier3l_forward.1} parent=1 // pred_check
      _
    $region27: #{classifier3l_forward.1} parent=1 // pred_check_branch
      %117 = sbr.rel (0) target = $region29
    $region28: #{classifier3l_forward.1} parent=1 // pred_region
      %s119 = ssub.s32 48, 48
      %120 = vsyncadd [#allocation6], %s119
      %s121 = sshll.u32 [#allocation7], 4
      %s122 = int_to_ptr.vmem [resolvable:$true] %s121
      %127 = dma.hbm_to_vmem [thread:$0]  %s13, 48, %s122, [#allocation6], 16, 16, 1
    $region29: #{classifier3l_forward.1} parent=1 // pred_fallthru
      _
    // Predicated region
    $region30: #{classifier3l_forward.1} parent=1 // pred_check
      _
    $region31: #{classifier3l_forward.1} parent=1 // pred_check_branch
      %129 = sbr.rel (0) target = $region33
    $region32: #{classifier3l_forward.1} parent=1 // pred_region
      %s131 = ssub.s32 256, 256
      %132 = vsyncadd [#allocation9], %s131
      %s133 = sshll.u32 [#allocation8], 4
      %s134 = int_to_ptr.vmem [resolvable:$true] %s133
      %139 = dma.hbm_to_vmem [thread:$0]  %s15, 256, %s134, [#allocation9], 64, 64, 4
    $region33: #{classifier3l_forward.1} parent=1 // pred_fallthru
      _
    // Predicated region
    $region34: #{classifier3l_forward.1} parent=1 // pred_check
      _
    $region35: #{classifier3l_forward.1} parent=1 // pred_check_branch
      %141 = sbr.rel (0) target = $region37
    $region36: #{classifier3l_forward.1} parent=1 // pred_region
      %s143 = ssub.s32 64, 64
      %144 = vsyncadd [#allocation9], %s143
      %s145 = sshll.u32 [#allocation10], 4
      %s146 = int_to_ptr.vmem [resolvable:$true] %s145
      %151 = dma.hbm_to_vmem [thread:$0]  %s17, 64, %s146, [#allocation9], 16, 16, 1
    $region37: #{classifier3l_forward.1} parent=1 // pred_fallthru
      _
    // Predicated region
    $region38: #{classifier3l_forward.1} parent=1 // pred_check
      _
    $region39: #{classifier3l_forward.1} parent=1 // pred_check_branch
      %153 = sbr.rel (0) target = $region41
    $region40: #{classifier3l_forward.1} parent=1 // pred_region
      _
    $region41: #{classifier3l_forward.1} parent=1 // pred_fallthru
      _
    // Predicated region
    $region42: #{classifier3l_forward.1} parent=1 // pred_check
      _
    $region43: #{classifier3l_forward.1} parent=1 // pred_check_branch
      %155 = sbr.rel (0) target = $region45
    $region44: #{classifier3l_forward.1} parent=1 // pred_region
      _
    $region45: #{classifier3l_forward.1} parent=1 // pred_fallthru
      _
    // Predicated region
    $region46: #{classifier3l_forward.1} parent=1 // pred_check
      _
    $region47: #{classifier3l_forward.1} parent=1 // pred_check_branch
      %157 = sbr.rel (0) target = $region49
    $region48: #{classifier3l_forward.1} parent=1 // pred_region
      %s159 = ssub.s32 256, 256
      %160 = vsyncadd [#allocation12], %s159
      %s161 = sshll.u32 [#allocation11], 4
      %s162 = int_to_ptr.vmem [resolvable:$true] %s161
      %167 = dma.hbm_to_vmem [thread:$0]  %s23, 256, %s162, [#allocation12], 64, 64, 4
    $region49: #{classifier3l_forward.1} parent=1 // pred_fallthru
      _
    // Predicated region
    $region50: #{classifier3l_forward.1} parent=1 // pred_check
      _
    $region51: #{classifier3l_forward.1} parent=1 // pred_check_branch
      %169 = sbr.rel (0) target = $region53
    $region52: #{classifier3l_forward.1} parent=1 // pred_region
      %s171 = ssub.s32 64, 64
      %172 = vsyncadd [#allocation12], %s171
      %s173 = sshll.u32 [#allocation13], 4
      %s174 = int_to_ptr.vmem [resolvable:$true] %s173
      %179 = dma.hbm_to_vmem [thread:$0]  %s25, 64, %s174, [#allocation12], 16, 16, 1
    $region53: #{classifier3l_forward.1} parent=1 // pred_fallthru
      _
    // Predicated region
    $region54: #{classifier3l_forward.1} parent=1 // pred_check
      _
    $region55: #{classifier3l_forward.1} parent=1 // pred_check_branch
      %181 = sbr.rel (0) target = $region57
    $region56: #{classifier3l_forward.1} parent=1 // pred_region
      _
    $region57: #{classifier3l_forward.1} parent=1 // pred_fallthru
      _
    // Predicated region
    $region58: #{classifier3l_forward.1} parent=1 // pred_check
      _
    $region59: #{classifier3l_forward.1} parent=1 // pred_check_branch
      %183 = sbr.rel (0) target = $region61
    $region60: #{classifier3l_forward.1} parent=1 // pred_region
      %s185 = ssub.s32 48, 48
      %186 = vsyncadd [#allocation15], %s185
      %s187 = sshll.u32 [#allocation14], 4
      %s188 = int_to_ptr.vmem [resolvable:$true] %s187
      %193 = dma.hbm_to_vmem [thread:$0]  %s29, 48, %s188, [#allocation15], 16, 16, 1
    $region61: #{classifier3l_forward.1} parent=1 // pred_fallthru
      _
    // Predicated region
    $region62: #{classifier3l_forward.1} parent=1 // pred_check
      _
    $region63: #{classifier3l_forward.1} parent=1 // pred_check_branch
      %195 = sbr.rel (0) target = $region65
    $region64: #{classifier3l_forward.1} parent=1 // pred_region
      _
    $region65: #{classifier3l_forward.1} parent=1 // pred_fallthru
      _
    // Predicated region
    $region66: #{classifier3l_forward.1} parent=1 // pred_check
      _
    $region67: #{classifier3l_forward.1} parent=1 // pred_check_branch
      %197 = sbr.rel (0) target = $region69
    $region68: #{classifier3l_forward.1} parent=1 // pred_region
      %s199 = ssub.s32 64, 64
      %200 = vsyncadd [#allocation15], %s199
      %s201 = sshll.u32 [#allocation16], 4
      %s202 = int_to_ptr.vmem [resolvable:$true] %s201
      %207 = dma.hbm_to_vmem [thread:$0]  %s33, 64, %s202, [#allocation15], 16, 16, 1
    $region69: #{classifier3l_forward.1} parent=1 // pred_fallthru
      _
    // Predicated region
    $region70: #{classifier3l_forward.1} parent=1 // pred_check
      _
    $region71: #{classifier3l_forward.1} parent=1 // pred_check_branch
      %209 = sbr.rel (0) target = $region73
    $region72: #{classifier3l_forward.1} parent=1 // pred_region
      %s211 = ssub.s32 160, 160
      %212 = vsyncadd [#allocation18], %s211
      %s213 = sshll.u32 [#allocation17], 4
      %s214 = int_to_ptr.vmem [resolvable:$true] %s213
      %219 = dma.hbm_to_vmem [thread:$0]  %s35, 160, %s214, [#allocation18], 32, 32, 2
    $region73: #{classifier3l_forward.1} parent=1 // pred_fallthru
      _
    // Predicated region
    $region74: #{classifier3l_forward.1} parent=1 // pred_check
      _
    $region75: #{classifier3l_forward.1} parent=1 // pred_check_branch
      %221 = sbr.rel (0) target = $region77
    $region76: #{classifier3l_forward.1} parent=1 // pred_region
      %s223 = ssub.s32 80, 80
      %224 = vsyncadd [#allocation18], %s223
      %s225 = sshll.u32 [#allocation19], 4
      %s226 = int_to_ptr.vmem [resolvable:$true] %s225
      %231 = dma.hbm_to_vmem [thread:$0]  %s37, 80, %s226, [#allocation18], 16, 16, 1
    $region77: #{classifier3l_forward.1} parent=1 // pred_fallthru
      _
    // Predicated region
    $region78: #{classifier3l_forward.1} parent=1 // pred_check
      _
    $region79: #{classifier3l_forward.1} parent=1 // pred_check_branch
      %233 = sbr.rel (0) target = $region81
    $region80: #{classifier3l_forward.1} parent=1 // pred_region
      %s235 = ssub.s32 512, 512
      %236 = vsyncadd [#allocation21], %s235
      %s237 = sshll.u32 [#allocation20], 4
      %s238 = int_to_ptr.vmem [resolvable:$true] %s237
      %243 = dma.hbm_to_vmem [thread:$0]  %s39, 512, %s238, [#allocation21], 64, 64, 4
    $region81: #{classifier3l_forward.1} parent=1 // pred_fallthru
      _
    // Predicated region
    $region82: #{classifier3l_forward.1} parent=1 // pred_check
      _
    $region83: #{classifier3l_forward.1} parent=1 // pred_check_branch
      %245 = sbr.rel (0) target = $region85
    $region84: #{classifier3l_forward.1} parent=1 // pred_region
      %s247 = ssub.s32 64, 64
      %248 = vsyncadd [#allocation21], %s247
      %s249 = sshll.u32 [#allocation22], 4
      %s250 = int_to_ptr.vmem [resolvable:$true] %s249
      %255 = dma.hbm_to_vmem [thread:$0]  %s41, 64, %s250, [#allocation21], 16, 16, 1
    $region85: #{classifier3l_forward.1} parent=1 // pred_fallthru
      _
    // Predicated region
    $region86: #{classifier3l_forward.1} parent=1 // pred_check
      _
    $region87: #{classifier3l_forward.1} parent=1 // pred_check_branch
      %257 = sbr.rel (0) target = $region89
    $region88: #{classifier3l_forward.1} parent=1 // pred_region
      _
    $region89: #{classifier3l_forward.1} parent=1 // pred_fallthru
      _
    // Predicated region
    $region90: #{classifier3l_forward.1} parent=1 // pred_check
      _
    $region91: #{classifier3l_forward.1} parent=1 // pred_check_branch
      %259 = sbr.rel (0) target = $region93
    $region92: #{classifier3l_forward.1} parent=1 // pred_region
      %s261 = ssub.s32 48, 48
      %262 = vsyncadd [#allocation24], %s261
      %s263 = sshll.u32 [#allocation23], 4
      %s264 = int_to_ptr.vmem [resolvable:$true] %s263
      %269 = dma.hbm_to_vmem [thread:$0]  %s45, 48, %s264, [#allocation24], 16, 16, 1
    $region93: #{classifier3l_forward.1} parent=1 // pred_fallthru
      _
    // Predicated region
    $region94: #{classifier3l_forward.1} parent=1 // pred_check
      _
    $region95: #{classifier3l_forward.1} parent=1 // pred_check_branch
      %271 = sbr.rel (0) target = $region97
    $region96: #{classifier3l_forward.1} parent=1 // pred_region
      _
    $region97: #{classifier3l_forward.1} parent=1 // pred_fallthru
      _
    // Predicated region
    $region98: #{classifier3l_forward.1} parent=1 // pred_check
      _
    $region99: #{classifier3l_forward.1} parent=1 // pred_check_branch
      %273 = sbr.rel (0) target = $region101
    $region100: #{classifier3l_forward.1} parent=1 // pred_region
      %s275 = ssub.s32 64, 64
      %276 = vsyncadd [#allocation24], %s275
      %s277 = sshll.u32 [#allocation25], 4
      %s278 = int_to_ptr.vmem [resolvable:$true] %s277
      %283 = dma.hbm_to_vmem [thread:$0]  %s49, 64, %s278, [#allocation24], 16, 16, 1
    $region101: #{classifier3l_forward.1} parent=1 // pred_fallthru
      _
    // Predicated region
    $region102: #{classifier3l_forward.1} parent=1 // pred_check
      _
    $region103: #{classifier3l_forward.1} parent=1 // pred_check_branch
      %285 = sbr.rel (0) target = $region105
    $region104: #{classifier3l_forward.1} parent=1 // pred_region
      _
    $region105: #{classifier3l_forward.1} parent=1 // pred_fallthru
      _
    // Predicated region
    $region106: #{classifier3l_forward.1} parent=1 // pred_check
      _
    $region107: #{classifier3l_forward.1} parent=1 // pred_check_branch
      %287 = sbr.rel (0) target = $region109
    $region108: #{classifier3l_forward.1} parent=1 // pred_region
      %s289 = ssub.s32 16, 16
      %290 = vsyncadd [#allocation27], %s289
      %s292 = sshll.u32 [#allocation26], 4
      %s293 = int_to_ptr.vmem [resolvable:$true] %s292
      %295 = dma.hbm_to_vmem [thread:$0]  %s53, 16, %s293, [#allocation27]
    $region109: #{classifier3l_forward.1} parent=1 // pred_fallthru
      _
    // Predicated region
    $region110: #{classifier3l_forward.1} parent=1 // pred_check
      _
    $region111: #{classifier3l_forward.1} parent=1 // pred_check_branch
      %297 = sbr.rel (0) target = $region113
    $region112: #{classifier3l_forward.1} parent=1 // pred_region
      _
    $region113: #{classifier3l_forward.1} parent=1 // pred_fallthru
      _
    // Predicated region
    $region114: #{classifier3l_forward.1} parent=1 // pred_check
      _
    $region115: #{classifier3l_forward.1} parent=1 // pred_check_branch
      %299 = sbr.rel (0) target = $region117
    $region116: #{classifier3l_forward.1} parent=1 // pred_region
      %s301 = ssub.s32 128, 128
      %302 = vsyncadd [#allocation27], %s301
      %s303 = sshll.u32 [#allocation28], 4
      %s304 = int_to_ptr.vmem [resolvable:$true] %s303
      %309 = dma.hbm_to_vmem [thread:$0]  %s57, 128, %s304, [#allocation27], 32, 32, 2
    $region117: #{classifier3l_forward.1} parent=1 // pred_fallthru
      _
    // Predicated region
    $region118: #{classifier3l_forward.1} parent=1 // pred_check
      _
    $region119: #{classifier3l_forward.1} parent=1 // pred_check_branch
      %311 = sbr.rel (0) target = $region121
    $region120: #{classifier3l_forward.1} parent=1 // pred_region
      %s313 = ssub.s32 64, 64
      %314 = vsyncadd [#allocation30], %s313
      %s315 = sshll.u32 [#allocation29], 4
      %s316 = int_to_ptr.vmem [resolvable:$true] %s315
      %321 = dma.hbm_to_vmem [thread:$0]  %s59, 64, %s316, [#allocation30], 32, 32, 2
    $region121: #{classifier3l_forward.1} parent=1 // pred_fallthru
      _
    // Predicated region
    $region122: #{classifier3l_forward.1} parent=1 // pred_check
      _
    $region123: #{classifier3l_forward.1} parent=1 // pred_check_branch
      %323 = sbr.rel (0) target = $region125
    $region124: #{classifier3l_forward.1} parent=1 // pred_region
      _
    $region125: #{classifier3l_forward.1} parent=1 // pred_fallthru
      _
    // Predicated region
    $region126: #{classifier3l_forward.1} parent=1 // pred_check
      _
    $region127: #{classifier3l_forward.1} parent=1 // pred_check_branch
      %325 = sbr.rel (0) target = $region129
    $region128: #{classifier3l_forward.1} parent=1 // pred_region
      %s327 = ssub.s32 16, 16
      %328 = vsyncadd [#allocation30], %s327
      %s330 = sshll.u32 [#allocation31], 4
      %s331 = int_to_ptr.vmem [resolvable:$true] %s330
      %333 = dma.hbm_to_vmem [thread:$0]  %s63, 16, %s331, [#allocation30]
    $region129: #{classifier3l_forward.1} parent=1 // pred_fallthru
      _
    // Predicated region
    $region130: #{classifier3l_forward.1} parent=1 // pred_check
      _
    $region131: #{classifier3l_forward.1} parent=1 // pred_check_branch
      %335 = sbr.rel (0) target = $region133
    $region132: #{classifier3l_forward.1} parent=1 // pred_region
      _
    $region133: #{classifier3l_forward.1} parent=1 // pred_fallthru
      _
    // Predicated region
    $region134: #{classifier3l_forward.1} parent=1 // pred_check
      _
    $region135: #{classifier3l_forward.1} parent=1 // pred_check_branch
      %337 = sbr.rel (0) target = $region137
    $region136: #{classifier3l_forward.1} parent=1 // pred_region
      %s339 = ssub.s32 16, 16
      %340 = vsyncadd [#allocation33], %s339
      %s342 = sshll.u32 [#allocation32], 4
      %s343 = int_to_ptr.vmem [resolvable:$true] %s342
      %345 = dma.hbm_to_vmem [thread:$0]  %s67, 16, %s343, [#allocation33]
    $region137: #{classifier3l_forward.1} parent=1 // pred_fallthru
      _
    // Predicated region
    $region138: #{classifier3l_forward.1} parent=1 // pred_check
      _
    $region139: #{classifier3l_forward.1} parent=1 // pred_check_branch
      %347 = sbr.rel (0) target = $region141
    $region140: #{classifier3l_forward.1} parent=1 // pred_region
      %348 = dma.done [#allocation3], 32
    $region141: #{classifier3l_forward.1} parent=1 // pred_fallthru
      _
    // Predicated region
    $region142: #{classifier3l_forward.1} parent=1 // pred_check
      _
    $region143: #{classifier3l_forward.1} parent=1 // pred_check_branch
      %350 = sbr.rel (0) target = $region145
    $region144: #{classifier3l_forward.1} parent=1 // pred_region
      %351 = dma.done [#allocation6], 64
    $region145: #{classifier3l_forward.1} parent=1 // pred_fallthru
      _
    // Predicated region
    $region146: #{classifier3l_forward.1} parent=1 // pred_check
      _
    $region147: #{classifier3l_forward.1} parent=1 // pred_check_branch
      %353 = sbr.rel (0) target = $region149
    $region148: #{classifier3l_forward.1} parent=1 // pred_region
      %354 = dma.done [#allocation6], 48
    $region149: #{classifier3l_forward.1} parent=1 // pred_fallthru
      _
    // Predicated region
    $region150: #{classifier3l_forward.1} parent=1 // pred_check
      _
    $region151: #{classifier3l_forward.1} parent=1 // pred_check_branch
      %356 = sbr.rel (0) target = $region153
    $region152: #{classifier3l_forward.1} parent=1 // pred_region
      %357 = dma.done [#allocation9], 256
    $region153: #{classifier3l_forward.1} parent=1 // pred_fallthru
      _
    // Predicated region
    $region154: #{classifier3l_forward.1} parent=1 // pred_check
      _
    $region155: #{classifier3l_forward.1} parent=1 // pred_check_branch
      %359 = sbr.rel (0) target = $region157
    $region156: #{classifier3l_forward.1} parent=1 // pred_region
      %360 = dma.done [#allocation9], 64
    $region157: #{classifier3l_forward.1} parent=1 // pred_fallthru
      _
    // Predicated region
    $region158: #{classifier3l_forward.1} parent=1 // pred_check
      _
    $region159: #{classifier3l_forward.1} parent=1 // pred_check_branch
      %362 = sbr.rel (0) target = $region161
    $region160: #{classifier3l_forward.1} parent=1 // pred_region
      %363 = dma.done [#allocation12], 256
    $region161: #{classifier3l_forward.1} parent=1 // pred_fallthru
      _
    // Predicated region
    $region162: #{classifier3l_forward.1} parent=1 // pred_check
      _
    $region163: #{classifier3l_forward.1} parent=1 // pred_check_branch
      %365 = sbr.rel (0) target = $region165
    $region164: #{classifier3l_forward.1} parent=1 // pred_region
      %366 = dma.done [#allocation12], 64
    $region165: #{classifier3l_forward.1} parent=1 // pred_fallthru
      _
    // Predicated region
    $region166: #{classifier3l_forward.1} parent=1 // pred_check
      _
    $region167: #{classifier3l_forward.1} parent=1 // pred_check_branch
      %368 = sbr.rel (0) target = $region169
    $region168: #{classifier3l_forward.1} parent=1 // pred_region
      %369 = dma.done [#allocation15], 48
    $region169: #{classifier3l_forward.1} parent=1 // pred_fallthru
      _
    // Predicated region
    $region170: #{classifier3l_forward.1} parent=1 // pred_check
      _
    $region171: #{classifier3l_forward.1} parent=1 // pred_check_branch
      %371 = sbr.rel (0) target = $region173
    $region172: #{classifier3l_forward.1} parent=1 // pred_region
      %372 = dma.done [#allocation15], 64
    $region173: #{classifier3l_forward.1} parent=1 // pred_fallthru
      _
    // Predicated region
    $region174: #{classifier3l_forward.1} parent=1 // pred_check
      _
    $region175: #{classifier3l_forward.1} parent=1 // pred_check_branch
      %374 = sbr.rel (0) target = $region177
    $region176: #{classifier3l_forward.1} parent=1 // pred_region
      %375 = dma.done [#allocation18], 160
    $region177: #{classifier3l_forward.1} parent=1 // pred_fallthru
      _
    // Predicated region
    $region178: #{classifier3l_forward.1} parent=1 // pred_check
      _
    $region179: #{classifier3l_forward.1} parent=1 // pred_check_branch
      %377 = sbr.rel (0) target = $region181
    $region180: #{classifier3l_forward.1} parent=1 // pred_region
      %378 = dma.done [#allocation18], 80
    $region181: #{classifier3l_forward.1} parent=1 // pred_fallthru
      _
    // Predicated region
    $region182: #{classifier3l_forward.1} parent=1 // pred_check
      _
    $region183: #{classifier3l_forward.1} parent=1 // pred_check_branch
      %380 = sbr.rel (0) target = $region185
    $region184: #{classifier3l_forward.1} parent=1 // pred_region
      %381 = dma.done [#allocation21], 512
    $region185: #{classifier3l_forward.1} parent=1 // pred_fallthru
      _
    // Predicated region
    $region186: #{classifier3l_forward.1} parent=1 // pred_check
      _
    $region187: #{classifier3l_forward.1} parent=1 // pred_check_branch
      %383 = sbr.rel (0) target = $region189
    $region188: #{classifier3l_forward.1} parent=1 // pred_region
      %384 = dma.done [#allocation21], 64
    $region189: #{classifier3l_forward.1} parent=1 // pred_fallthru
      _
    // Predicated region
    $region190: #{classifier3l_forward.1} parent=1 // pred_check
      _
    $region191: #{classifier3l_forward.1} parent=1 // pred_check_branch
      %386 = sbr.rel (0) target = $region193
    $region192: #{classifier3l_forward.1} parent=1 // pred_region
      %387 = dma.done [#allocation24], 48
    $region193: #{classifier3l_forward.1} parent=1 // pred_fallthru
      _
    // Predicated region
    $region194: #{classifier3l_forward.1} parent=1 // pred_check
      _
    $region195: #{classifier3l_forward.1} parent=1 // pred_check_branch
      %389 = sbr.rel (0) target = $region197
    $region196: #{classifier3l_forward.1} parent=1 // pred_region
      %390 = dma.done [#allocation24], 64
    $region197: #{classifier3l_forward.1} parent=1 // pred_fallthru
      _
    // Predicated region
    $region198: #{classifier3l_forward.1} parent=1 // pred_check
      _
    $region199: #{classifier3l_forward.1} parent=1 // pred_check_branch
      %392 = sbr.rel (0) target = $region201
    $region200: #{classifier3l_forward.1} parent=1 // pred_region
      %393 = dma.done [#allocation27], 16
    $region201: #{classifier3l_forward.1} parent=1 // pred_fallthru
      _
    // Predicated region
    $region202: #{classifier3l_forward.1} parent=1 // pred_check
      _
    $region203: #{classifier3l_forward.1} parent=1 // pred_check_branch
      %395 = sbr.rel (0) target = $region205
    $region204: #{classifier3l_forward.1} parent=1 // pred_region
      %396 = dma.done [#allocation27], 128
    $region205: #{classifier3l_forward.1} parent=1 // pred_fallthru
      _
    // Predicated region
    $region206: #{classifier3l_forward.1} parent=1 // pred_check
      _
    $region207: #{classifier3l_forward.1} parent=1 // pred_check_branch
      %398 = sbr.rel (0) target = $region209
    $region208: #{classifier3l_forward.1} parent=1 // pred_region
      %399 = dma.done [#allocation30], 64
    $region209: #{classifier3l_forward.1} parent=1 // pred_fallthru
      _
    // Predicated region
    $region210: #{classifier3l_forward.1} parent=1 // pred_check
      _
    $region211: #{classifier3l_forward.1} parent=1 // pred_check_branch
      %401 = sbr.rel (0) target = $region213
    $region212: #{classifier3l_forward.1} parent=1 // pred_region
      %402 = dma.done [#allocation30], 16
    $region213: #{classifier3l_forward.1} parent=1 // pred_fallthru
      _
    // Predicated region
    $region214: #{classifier3l_forward.1} parent=1 // pred_check
      _
    $region215: #{classifier3l_forward.1} parent=1 // pred_check_branch
      %404 = sbr.rel (0) target = $region217
    $region216: #{classifier3l_forward.1} parent=1 // pred_region
      %405 = dma.done [#allocation33], 16
    $region217: #{classifier3l_forward.1} parent=1 // pred_fallthru
      _
    %v407 = vld [vmem:[%s1] sm:$0xff]
    %v408 = vld [vmem:[%s1 + $0x8] sm:$0xff]
    %v409 = vld [vmem:[%s1 + $0x10] sm:$0xff]
    %v410 = vld [vmem:[%s1 + $0x18] sm:$0xff]
    %v411 = vld [vmem:[%s3] sm:$0xff]
    %v412 = vld [vmem:[%s3 + $0x8] sm:$0xff]
    %v413 = vld [vmem:[%s3 + $0x10] sm:$0x3]
    %vm414 = vcmask 261120
    %v416 = vsel %vm414, %v411, 0
    %v419 = vsel %vm414, %v412, 0
    %v422 = vsel %vm414, %v413, 0
    %424 = vmatprep.subr.mxu0 0.0
    %425 = vmatpush1.msra.mxu0 %v407
    %426 = vmatprep.subr.mxu0 0.0
    %427 = vmatpush1.msra.mxu0 %v408
    %428 = vmatprep.subr.mxu0 0.0
    %429 = vmatpush1.msra.mxu0 %v409
    %430 = vmatprep.subr.mxu0 0.0
    %431 = vmatpush1.msra.mxu0 %v410
    %432 = vmatprep.subr.mxu0 0.0
    %433 = vmatpush1.msra.mxu0 0.0
    %434 = vmatprep.subr.mxu0 0.0
    %435 = vmatpush1.msra.mxu0 0.0
    %436 = vmatprep.subr.mxu0 0.0
    %437 = vmatpush1.msra.mxu0 0.0
    %438 = vmatprep.subr.mxu0 0.0
    %439 = vmatpush1.msra.mxu0 0.0
    %440 = vmatprep.subr.mxu0 0.0
    %441 = vmatpush1.msra.mxu0 0.0
    %442 = vmatprep.subr.mxu0 0.0
    %443 = vmatpush1.msra.mxu0 0.0
    %444 = vmatprep.subr.mxu0 0.0
    %445 = vmatpush1.msra.mxu0 0.0
    %446 = vmatprep.subr.mxu0 0.0
    %447 = vmatpush1.msra.mxu0 0.0
    %448 = vmatprep.subr.mxu0 0.0
    %449 = vmatpush1.msra.mxu0 0.0
    %450 = vmatprep.subr.mxu0 0.0
    %451 = vmatpush1.msra.mxu0 0.0
    %452 = vmatprep.subr.mxu0 0.0
    %453 = vmatpush1.msra.mxu0 0.0
    %454 = vmatprep.subr.mxu0 0.0
    %455 = vmatpush1.msra.mxu0 0.0
    %456 = vmatprep.subr.mxu0 0.0
    %457 = vmatpush1.msra.mxu0 0.0
    %458 = vmatprep.subr.mxu0 0.0
    %459 = vmatpush1.msra.mxu0 0.0
    %460 = vmatprep.subr.mxu0 0.0
    %461 = vmatpush1.msra.mxu0 0.0
    %462 = vmatprep.subr.mxu0 0.0
    %463 = vmatpush1.msra.mxu0 0.0
    %464 = vmatprep.subr.mxu0 0.0
    %465 = vmatpush1.msra.mxu0 0.0
    %466 = vmatprep.subr.mxu0 0.0
    %467 = vmatpush1.msra.mxu0 0.0
    %468 = vmatprep.subr.mxu0 0.0
    %469 = vmatpush1.msra.mxu0 0.0
    %470 = vmatprep.subr.mxu0 0.0
    %471 = vmatpush1.msra.mxu0 0.0
    %472 = vmatprep.subr.mxu0 0.0
    %473 = vmatpush1.msra.mxu0 0.0
    %474 = vmatprep.subr.mxu0 0.0
    %475 = vmatpush1.msra.mxu0 0.0
    %476 = vmatprep.subr.mxu0 0.0
    %477 = vmatpush1.msra.mxu0 0.0
    %478 = vmatprep.subr.mxu0 0.0
    %479 = vmatpush1.msra.mxu0 0.0
    %480 = vmatprep.subr.mxu0 0.0
    %481 = vmatpush1.msra.mxu0 0.0
    %482 = vmatprep.subr.mxu0 0.0
    %483 = vmatpush1.msra.mxu0 0.0
    %484 = vmatprep.subr.mxu0 0.0
    %485 = vmatpush1.msra.mxu0 0.0
    %486 = vmatprep.subr.mxu0 0.0
    %487 = vmatpush1.msra.mxu0 0.0
    %488 = vmatprep.mubr.f32.mxu0 0.0
    %489 = vmatmul.mubr.f32.gmra.mrb[0].mxu0 %v416
    %v490 = vpop.f32.mrb[0].mxu0
    %v491 = vadd.f32 0.0, %v490
    %v492 = vpop.f32.mrb[0].mxu0
    %493 = vmatprep.mubr.f32.mxu0 0.0
    %494 = vmatmul.mubr.f32.gmra.mrb[0].mxu0 %v419
    %v495 = vpop.f32.mrb[0].mxu0
    %v496 = vadd.f32 0.0, %v495
    %v497 = vpop.f32.mrb[0].mxu0
    %498 = vmatprep.mubr.f32.mxu0 0.0
    %499 = vmatmul.mubr.f32.gmra.mrb[0].mxu0 %v422
    %v500 = vpop.f32.mrb[0].mxu0
    %v501 = vadd.f32 0.0, %v500
    %v502 = vpop.f32.mrb[0].mxu0
    %503 = vdwg.mxu0
    %v504 = vld [vmem:[%s5] sm:$0x1]
    %v506 = vlaneseq
    %v507 = vshrl.u32 %v506, 7
    %v508 = vsub.s32 0, %v507
    %v509 = vrot.slane %v504, %v508
    %v511 = vmul.f32 %v491, %v509
    %v512 = vmul.f32 %v496, %v509
    %v513 = vmul.f32 %v501, %v509
    %s514 = scalar_lea.vmem %s3, 24
    %v515 = vld [vmem:[%s514] sm:$0xff]
    %v516 = vld [vmem:[%s514 + $0x8] sm:$0xff]
    %v517 = vld [vmem:[%s514 + $0x10] sm:$0x3]
    %v519 = vsel %vm414, %v515, 0
    %v522 = vsel %vm414, %v516, 0
    %v525 = vsel %vm414, %v517, 0
    %527 = vmatprep.subr.mxu0 0.0
    %528 = vmatpush1.msra.mxu0 %v407
    %529 = vmatprep.subr.mxu0 0.0
    %530 = vmatpush1.msra.mxu0 %v408
    %531 = vmatprep.subr.mxu0 0.0
    %532 = vmatpush1.msra.mxu0 %v409
    %533 = vmatprep.subr.mxu0 0.0
    %534 = vmatpush1.msra.mxu0 %v410
    %535 = vmatprep.subr.mxu0 0.0
    %536 = vmatpush1.msra.mxu0 0.0
    %537 = vmatprep.subr.mxu0 0.0
    %538 = vmatpush1.msra.mxu0 0.0
    %539 = vmatprep.subr.mxu0 0.0
    %540 = vmatpush1.msra.mxu0 0.0
    %541 = vmatprep.subr.mxu0 0.0
    %542 = vmatpush1.msra.mxu0 0.0
    %543 = vmatprep.subr.mxu0 0.0
    %544 = vmatpush1.msra.mxu0 0.0
    %545 = vmatprep.subr.mxu0 0.0
    %546 = vmatpush1.msra.mxu0 0.0
    %547 = vmatprep.subr.mxu0 0.0
    %548 = vmatpush1.msra.mxu0 0.0
    %549 = vmatprep.subr.mxu0 0.0
    %550 = vmatpush1.msra.mxu0 0.0
    %551 = vmatprep.subr.mxu0 0.0
    %552 = vmatpush1.msra.mxu0 0.0
    %553 = vmatprep.subr.mxu0 0.0
    %554 = vmatpush1.msra.mxu0 0.0
    %555 = vmatprep.subr.mxu0 0.0
    %556 = vmatpush1.msra.mxu0 0.0
    %557 = vmatprep.subr.mxu0 0.0
    %558 = vmatpush1.msra.mxu0 0.0
    %559 = vmatprep.subr.mxu0 0.0
    %560 = vmatpush1.msra.mxu0 0.0
    %561 = vmatprep.subr.mxu0 0.0
    %562 = vmatpush1.msra.mxu0 0.0
    %563 = vmatprep.subr.mxu0 0.0
    %564 = vmatpush1.msra.mxu0 0.0
    %565 = vmatprep.subr.mxu0 0.0
    %566 = vmatpush1.msra.mxu0 0.0
    %567 = vmatprep.subr.mxu0 0.0
    %568 = vmatpush1.msra.mxu0 0.0
    %569 = vmatprep.subr.mxu0 0.0
    %570 = vmatpush1.msra.mxu0 0.0
    %571 = vmatprep.subr.mxu0 0.0
    %572 = vmatpush1.msra.mxu0 0.0
    %573 = vmatprep.subr.mxu0 0.0
    %574 = vmatpush1.msra.mxu0 0.0
    %575 = vmatprep.subr.mxu0 0.0
    %576 = vmatpush1.msra.mxu0 0.0
    %577 = vmatprep.subr.mxu0 0.0
    %578 = vmatpush1.msra.mxu0 0.0
    %579 = vmatprep.subr.mxu0 0.0
    %580 = vmatpush1.msra.mxu0 0.0
    %581 = vmatprep.subr.mxu0 0.0
    %582 = vmatpush1.msra.mxu0 0.0
    %583 = vmatprep.subr.mxu0 0.0
    %584 = vmatpush1.msra.mxu0 0.0
    %585 = vmatprep.subr.mxu0 0.0
    %586 = vmatpush1.msra.mxu0 0.0
    %587 = vmatprep.subr.mxu0 0.0
    %588 = vmatpush1.msra.mxu0 0.0
    %589 = vmatprep.subr.mxu0 0.0
    %590 = vmatpush1.msra.mxu0 0.0
    %591 = vmatprep.mubr.f32.mxu0 0.0
    %592 = vmatmul.mubr.f32.gmra.mrb[0].mxu0 %v519
    %v593 = vpop.f32.mrb[0].mxu0
    %v594 = vadd.f32 0.0, %v593
    %v595 = vpop.f32.mrb[0].mxu0
    %596 = vmatprep.mubr.f32.mxu0 0.0
    %597 = vmatmul.mubr.f32.gmra.mrb[0].mxu0 %v522
    %v598 = vpop.f32.mrb[0].mxu0
    %v599 = vadd.f32 0.0, %v598
    %v600 = vpop.f32.mrb[0].mxu0
    %601 = vmatprep.mubr.f32.mxu0 0.0
    %602 = vmatmul.mubr.f32.gmra.mrb[0].mxu0 %v525
    %v603 = vpop.f32.mrb[0].mxu0
    %v604 = vadd.f32 0.0, %v603
    %v605 = vpop.f32.mrb[0].mxu0
    %606 = vdwg.mxu0
    %s607 = scalar_lea.vmem %s5, 1
    %v608 = vld [vmem:[%s607] sm:$0x1]
    %v610 = vlaneseq
    %v611 = vshrl.u32 %v610, 7
    %v612 = vsub.s32 0, %v611
    %v613 = vrot.slane %v608, %v612
    %v615 = vmul.f32 %v594, %v613
    %v616 = vmul.f32 %v599, %v613
    %v617 = vmul.f32 %v604, %v613
    %v618 = vadd.f32 %v511, %v615
    %v619 = vadd.f32 %v512, %v616
    %v620 = vadd.f32 %v513, %v617
    %s621 = scalar_lea.vmem %s3, 48
    %v622 = vld [vmem:[%s621] sm:$0xff]
    %v623 = vld [vmem:[%s621 + $0x8] sm:$0xff]
    %v624 = vld [vmem:[%s621 + $0x10] sm:$0x3]
    %v626 = vsel %vm414, %v622, 0
    %v629 = vsel %vm414, %v623, 0
    %v632 = vsel %vm414, %v624, 0
    %634 = vmatprep.subr.mxu0 0.0
    %635 = vmatpush1.msra.mxu0 %v407
    %636 = vmatprep.subr.mxu0 0.0
    %637 = vmatpush1.msra.mxu0 %v408
    %638 = vmatprep.subr.mxu0 0.0
    %639 = vmatpush1.msra.mxu0 %v409
    %640 = vmatprep.subr.mxu0 0.0
    %641 = vmatpush1.msra.mxu0 %v410
    %642 = vmatprep.subr.mxu0 0.0
    %643 = vmatpush1.msra.mxu0 0.0
    %644 = vmatprep.subr.mxu0 0.0
    %645 = vmatpush1.msra.mxu0 0.0
    %646 = vmatprep.subr.mxu0 0.0
    %647 = vmatpush1.msra.mxu0 0.0
    %648 = vmatprep.subr.mxu0 0.0
    %649 = vmatpush1.msra.mxu0 0.0
    %650 = vmatprep.subr.mxu0 0.0
    %651 = vmatpush1.msra.mxu0 0.0
    %652 = vmatprep.subr.mxu0 0.0
    %653 = vmatpush1.msra.mxu0 0.0
    %654 = vmatprep.subr.mxu0 0.0
    %655 = vmatpush1.msra.mxu0 0.0
    %656 = vmatprep.subr.mxu0 0.0
    %657 = vmatpush1.msra.mxu0 0.0
    %658 = vmatprep.subr.mxu0 0.0
    %659 = vmatpush1.msra.mxu0 0.0
    %660 = vmatprep.subr.mxu0 0.0
    %661 = vmatpush1.msra.mxu0 0.0
    %662 = vmatprep.subr.mxu0 0.0
    %663 = vmatpush1.msra.mxu0 0.0
    %664 = vmatprep.subr.mxu0 0.0
    %665 = vmatpush1.msra.mxu0 0.0
    %666 = vmatprep.subr.mxu0 0.0
    %667 = vmatpush1.msra.mxu0 0.0
    %668 = vmatprep.subr.mxu0 0.0
    %669 = vmatpush1.msra.mxu0 0.0
    %670 = vmatprep.subr.mxu0 0.0
    %671 = vmatpush1.msra.mxu0 0.0
    %672 = vmatprep.subr.mxu0 0.0
    %673 = vmatpush1.msra.mxu0 0.0
    %674 = vmatprep.subr.mxu0 0.0
    %675 = vmatpush1.msra.mxu0 0.0
    %676 = vmatprep.subr.mxu0 0.0
    %677 = vmatpush1.msra.mxu0 0.0
    %678 = vmatprep.subr.mxu0 0.0
    %679 = vmatpush1.msra.mxu0 0.0
    %680 = vmatprep.subr.mxu0 0.0
    %681 = vmatpush1.msra.mxu0 0.0
    %682 = vmatprep.subr.mxu0 0.0
    %683 = vmatpush1.msra.mxu0 0.0
    %684 = vmatprep.subr.mxu0 0.0
    %685 = vmatpush1.msra.mxu0 0.0
    %686 = vmatprep.subr.mxu0 0.0
    %687 = vmatpush1.msra.mxu0 0.0
    %688 = vmatprep.subr.mxu0 0.0
    %689 = vmatpush1.msra.mxu0 0.0
    %690 = vmatprep.subr.mxu0 0.0
    %691 = vmatpush1.msra.mxu0 0.0
    %692 = vmatprep.subr.mxu0 0.0
    %693 = vmatpush1.msra.mxu0 0.0
    %694 = vmatprep.subr.mxu0 0.0
    %695 = vmatpush1.msra.mxu0 0.0
    %696 = vmatprep.subr.mxu0 0.0
    %697 = vmatpush1.msra.mxu0 0.0
    %698 = vmatprep.mubr.f32.mxu0 0.0
    %699 = vmatmul.mubr.f32.gmra.mrb[0].mxu0 %v626
    %v700 = vpop.f32.mrb[0].mxu0
    %v701 = vadd.f32 0.0, %v700
    %v702 = vpop.f32.mrb[0].mxu0
    %703 = vmatprep.mubr.f32.mxu0 0.0
    %704 = vmatmul.mubr.f32.gmra.mrb[0].mxu0 %v629
    %v705 = vpop.f32.mrb[0].mxu0
    %v706 = vadd.f32 0.0, %v705
    %v707 = vpop.f32.mrb[0].mxu0
    %708 = vmatprep.mubr.f32.mxu0 0.0
    %709 = vmatmul.mubr.f32.gmra.mrb[0].mxu0 %v632
    %v710 = vpop.f32.mrb[0].mxu0
    %v711 = vadd.f32 0.0, %v710
    %v712 = vpop.f32.mrb[0].mxu0
    %713 = vdwg.mxu0
    %s714 = scalar_lea.vmem %s5, 2
    %v715 = vld [vmem:[%s714] sm:$0x1]
    %v717 = vlaneseq
    %v718 = vshrl.u32 %v717, 7
    %v719 = vsub.s32 0, %v718
    %v720 = vrot.slane %v715, %v719
    %v722 = vmul.f32 %v701, %v720
    %v723 = vmul.f32 %v706, %v720
    %v724 = vmul.f32 %v711, %v720
    %v725 = vadd.f32 %v618, %v722
    %v726 = vadd.f32 %v619, %v723
    %v727 = vadd.f32 %v620, %v724
    %s728 = scalar_lea.vmem %s3, 72
    %v729 = vld [vmem:[%s728] sm:$0xff]
    %v730 = vld [vmem:[%s728 + $0x8] sm:$0xff]
    %v731 = vld [vmem:[%s728 + $0x10] sm:$0x3]
    %v733 = vsel %vm414, %v729, 0
    %v736 = vsel %vm414, %v730, 0
    %v739 = vsel %vm414, %v731, 0
    %741 = vmatprep.subr.mxu0 0.0
    %742 = vmatpush1.msra.mxu0 %v407
    %743 = vmatprep.subr.mxu0 0.0
    %744 = vmatpush1.msra.mxu0 %v408
    %745 = vmatprep.subr.mxu0 0.0
    %746 = vmatpush1.msra.mxu0 %v409
    %747 = vmatprep.subr.mxu0 0.0
    %748 = vmatpush1.msra.mxu0 %v410
    %749 = vmatprep.subr.mxu0 0.0
    %750 = vmatpush1.msra.mxu0 0.0
    %751 = vmatprep.subr.mxu0 0.0
    %752 = vmatpush1.msra.mxu0 0.0
    %753 = vmatprep.subr.mxu0 0.0
    %754 = vmatpush1.msra.mxu0 0.0
    %755 = vmatprep.subr.mxu0 0.0
    %756 = vmatpush1.msra.mxu0 0.0
    %757 = vmatprep.subr.mxu0 0.0
    %758 = vmatpush1.msra.mxu0 0.0
    %759 = vmatprep.subr.mxu0 0.0
    %760 = vmatpush1.msra.mxu0 0.0
    %761 = vmatprep.subr.mxu0 0.0
    %762 = vmatpush1.msra.mxu0 0.0
    %763 = vmatprep.subr.mxu0 0.0
    %764 = vmatpush1.msra.mxu0 0.0
    %765 = vmatprep.subr.mxu0 0.0
    %766 = vmatpush1.msra.mxu0 0.0
    %767 = vmatprep.subr.mxu0 0.0
    %768 = vmatpush1.msra.mxu0 0.0
    %769 = vmatprep.subr.mxu0 0.0
    %770 = vmatpush1.msra.mxu0 0.0
    %771 = vmatprep.subr.mxu0 0.0
    %772 = vmatpush1.msra.mxu0 0.0
    %773 = vmatprep.subr.mxu0 0.0
    %774 = vmatpush1.msra.mxu0 0.0
    %775 = vmatprep.subr.mxu0 0.0
    %776 = vmatpush1.msra.mxu0 0.0
    %777 = vmatprep.subr.mxu0 0.0
    %778 = vmatpush1.msra.mxu0 0.0
    %779 = vmatprep.subr.mxu0 0.0
    %780 = vmatpush1.msra.mxu0 0.0
    %781 = vmatprep.subr.mxu0 0.0
    %782 = vmatpush1.msra.mxu0 0.0
    %783 = vmatprep.subr.mxu0 0.0
    %784 = vmatpush1.msra.mxu0 0.0
    %785 = vmatprep.subr.mxu0 0.0
    %786 = vmatpush1.msra.mxu0 0.0
    %787 = vmatprep.subr.mxu0 0.0
    %788 = vmatpush1.msra.mxu0 0.0
    %789 = vmatprep.subr.mxu0 0.0
    %790 = vmatpush1.msra.mxu0 0.0
    %791 = vmatprep.subr.mxu0 0.0
    %792 = vmatpush1.msra.mxu0 0.0
    %793 = vmatprep.subr.mxu0 0.0
    %794 = vmatpush1.msra.mxu0 0.0
    %795 = vmatprep.subr.mxu0 0.0
    %796 = vmatpush1.msra.mxu0 0.0
    %797 = vmatprep.subr.mxu0 0.0
    %798 = vmatpush1.msra.mxu0 0.0
    %799 = vmatprep.subr.mxu0 0.0
    %800 = vmatpush1.msra.mxu0 0.0
    %801 = vmatprep.subr.mxu0 0.0
    %802 = vmatpush1.msra.mxu0 0.0
    %803 = vmatprep.subr.mxu0 0.0
    %804 = vmatpush1.msra.mxu0 0.0
    %805 = vmatprep.mubr.f32.mxu0 0.0
    %806 = vmatmul.mubr.f32.gmra.mrb[0].mxu0 %v733
    %v807 = vpop.f32.mrb[0].mxu0
    %v808 = vadd.f32 0.0, %v807
    %v809 = vpop.f32.mrb[0].mxu0
    %810 = vmatprep.mubr.f32.mxu0 0.0
    %811 = vmatmul.mubr.f32.gmra.mrb[0].mxu0 %v736
    %v812 = vpop.f32.mrb[0].mxu0
    %v813 = vadd.f32 0.0, %v812
    %v814 = vpop.f32.mrb[0].mxu0
    %815 = vmatprep.mubr.f32.mxu0 0.0
    %816 = vmatmul.mubr.f32.gmra.mrb[0].mxu0 %v739
    %v817 = vpop.f32.mrb[0].mxu0
    %v818 = vadd.f32 0.0, %v817
    %v819 = vpop.f32.mrb[0].mxu0
    %820 = vdwg.mxu0
    %s821 = scalar_lea.vmem %s5, 3
    %v822 = vld [vmem:[%s821] sm:$0x1]
    %v824 = vlaneseq
    %v825 = vshrl.u32 %v824, 7
    %v826 = vsub.s32 0, %v825
    %v827 = vrot.slane %v822, %v826
    %v829 = vmul.f32 %v808, %v827
    %v830 = vmul.f32 %v813, %v827
    %v831 = vmul.f32 %v818, %v827
    %v832 = vadd.f32 %v725, %v829
    %v833 = vadd.f32 %v726, %v830
    %v834 = vadd.f32 %v727, %v831
    %s835 = scalar_lea.vmem %s3, 96
    %v836 = vld [vmem:[%s835] sm:$0xff]
    %v837 = vld [vmem:[%s835 + $0x8] sm:$0xff]
    %v838 = vld [vmem:[%s835 + $0x10] sm:$0x3]
    %v840 = vsel %vm414, %v836, 0
    %v843 = vsel %vm414, %v837, 0
    %v846 = vsel %vm414, %v838, 0
    %848 = vmatprep.subr.mxu0 0.0
    %849 = vmatpush1.msra.mxu0 %v407
    %850 = vmatprep.subr.mxu0 0.0
    %851 = vmatpush1.msra.mxu0 %v408
    %852 = vmatprep.subr.mxu0 0.0
    %853 = vmatpush1.msra.mxu0 %v409
    %854 = vmatprep.subr.mxu0 0.0
    %855 = vmatpush1.msra.mxu0 %v410
    %856 = vmatprep.subr.mxu0 0.0
    %857 = vmatpush1.msra.mxu0 0.0
    %858 = vmatprep.subr.mxu0 0.0
    %859 = vmatpush1.msra.mxu0 0.0
    %860 = vmatprep.subr.mxu0 0.0
    %861 = vmatpush1.msra.mxu0 0.0
    %862 = vmatprep.subr.mxu0 0.0
    %863 = vmatpush1.msra.mxu0 0.0
    %864 = vmatprep.subr.mxu0 0.0
    %865 = vmatpush1.msra.mxu0 0.0
    %866 = vmatprep.subr.mxu0 0.0
    %867 = vmatpush1.msra.mxu0 0.0
    %868 = vmatprep.subr.mxu0 0.0
    %869 = vmatpush1.msra.mxu0 0.0
    %870 = vmatprep.subr.mxu0 0.0
    %871 = vmatpush1.msra.mxu0 0.0
    %872 = vmatprep.subr.mxu0 0.0
    %873 = vmatpush1.msra.mxu0 0.0
    %874 = vmatprep.subr.mxu0 0.0
    %875 = vmatpush1.msra.mxu0 0.0
    %876 = vmatprep.subr.mxu0 0.0
    %877 = vmatpush1.msra.mxu0 0.0
    %878 = vmatprep.subr.mxu0 0.0
    %879 = vmatpush1.msra.mxu0 0.0
    %880 = vmatprep.subr.mxu0 0.0
    %881 = vmatpush1.msra.mxu0 0.0
    %882 = vmatprep.subr.mxu0 0.0
    %883 = vmatpush1.msra.mxu0 0.0
    %884 = vmatprep.subr.mxu0 0.0
    %885 = vmatpush1.msra.mxu0 0.0
    %886 = vmatprep.subr.mxu0 0.0
    %887 = vmatpush1.msra.mxu0 0.0
    %888 = vmatprep.subr.mxu0 0.0
    %889 = vmatpush1.msra.mxu0 0.0
    %890 = vmatprep.subr.mxu0 0.0
    %891 = vmatpush1.msra.mxu0 0.0
    %892 = vmatprep.subr.mxu0 0.0
    %893 = vmatpush1.msra.mxu0 0.0
    %894 = vmatprep.subr.mxu0 0.0
    %895 = vmatpush1.msra.mxu0 0.0
    %896 = vmatprep.subr.mxu0 0.0
    %897 = vmatpush1.msra.mxu0 0.0
    %898 = vmatprep.subr.mxu0 0.0
    %899 = vmatpush1.msra.mxu0 0.0
    %900 = vmatprep.subr.mxu0 0.0
    %901 = vmatpush1.msra.mxu0 0.0
    %902 = vmatprep.subr.mxu0 0.0
    %903 = vmatpush1.msra.mxu0 0.0
    %904 = vmatprep.subr.mxu0 0.0
    %905 = vmatpush1.msra.mxu0 0.0
    %906 = vmatprep.subr.mxu0 0.0
    %907 = vmatpush1.msra.mxu0 0.0
    %908 = vmatprep.subr.mxu0 0.0
    %909 = vmatpush1.msra.mxu0 0.0
    %910 = vmatprep.subr.mxu0 0.0
    %911 = vmatpush1.msra.mxu0 0.0
    %912 = vmatprep.mubr.f32.mxu0 0.0
    %913 = vmatmul.mubr.f32.gmra.mrb[0].mxu0 %v840
    %v914 = vpop.f32.mrb[0].mxu0
    %v915 = vadd.f32 0.0, %v914
    %v916 = vpop.f32.mrb[0].mxu0
    %917 = vmatprep.mubr.f32.mxu0 0.0
    %918 = vmatmul.mubr.f32.gmra.mrb[0].mxu0 %v843
    %v919 = vpop.f32.mrb[0].mxu0
    %v920 = vadd.f32 0.0, %v919
    %v921 = vpop.f32.mrb[0].mxu0
    %922 = vmatprep.mubr.f32.mxu0 0.0
    %923 = vmatmul.mubr.f32.gmra.mrb[0].mxu0 %v846
    %v924 = vpop.f32.mrb[0].mxu0
    %v925 = vadd.f32 0.0, %v924
    %v926 = vpop.f32.mrb[0].mxu0
    %927 = vdwg.mxu0
    %s928 = scalar_lea.vmem %s5, 4
    %v929 = vld [vmem:[%s928] sm:$0x1]
    %v931 = vlaneseq
    %v932 = vshrl.u32 %v931, 7
    %v933 = vsub.s32 0, %v932
    %v934 = vrot.slane %v929, %v933
    %v936 = vmul.f32 %v915, %v934
    %v937 = vmul.f32 %v920, %v934
    %v938 = vmul.f32 %v925, %v934
    %v939 = vadd.f32 %v832, %v936
    %v940 = vadd.f32 %v833, %v937
    %v941 = vadd.f32 %v834, %v938
    %v942 = vpack.c.bf16 %v940, %v939
    %v943 = vpack.c.bf16 %v941, %v941
    %v944 = vld [vmem:[#allocation2] sm:$0x3]
    %v945 = vld [vmem:[#allocation5] sm:$0x1]
    %v947 = vlaneseq
    %v948 = vshrl.u32 %v947, 7
    %v949 = vsub.s32 0, %v948
    %v950 = vrot.slane %v945, %v949
    %vm952 = vcmask 31744
    %v954 = vsel %vm952, %v942, 0
    %v957 = vsel %vm952, %v943, 0
    %vm959 = vcmask 1041408
    %v961 = vsel %vm959, %v944, 0
    %963 = vmatprep.subr.bf16.mxu0 0
    %964 = vmatpush1.bf16.msra.mxu0 %v961
    %965 = vmatprep.subr.bf16.mxu0 0
    %966 = vmatpush1.bf16.msra.mxu0 0
    %967 = vmatprep.subr.bf16.mxu0 0
    %968 = vmatpush1.bf16.msra.mxu0 0
    %969 = vmatprep.subr.bf16.mxu0 0
    %970 = vmatpush1.bf16.msra.mxu0 0
    %971 = vmatprep.subr.bf16.mxu0 0
    %972 = vmatpush1.bf16.msra.mxu0 0
    %973 = vmatprep.subr.bf16.mxu0 0
    %974 = vmatpush1.bf16.msra.mxu0 0
    %975 = vmatprep.subr.bf16.mxu0 0
    %976 = vmatpush1.bf16.msra.mxu0 0
    %977 = vmatprep.subr.bf16.mxu0 0
    %978 = vmatpush1.bf16.msra.mxu0 0
    %979 = vmatprep.subr.bf16.mxu0 0
    %980 = vmatpush1.bf16.msra.mxu0 0
    %981 = vmatprep.subr.bf16.mxu0 0
    %982 = vmatpush1.bf16.msra.mxu0 0
    %983 = vmatprep.subr.bf16.mxu0 0
    %984 = vmatpush1.bf16.msra.mxu0 0
    %985 = vmatprep.subr.bf16.mxu0 0
    %986 = vmatpush1.bf16.msra.mxu0 0
    %987 = vmatprep.subr.bf16.mxu0 0
    %988 = vmatpush1.bf16.msra.mxu0 0
    %989 = vmatprep.subr.bf16.mxu0 0
    %990 = vmatpush1.bf16.msra.mxu0 0
    %991 = vmatprep.subr.bf16.mxu0 0
    %992 = vmatpush1.bf16.msra.mxu0 0
    %993 = vmatprep.subr.bf16.mxu0 0
    %994 = vmatpush1.bf16.msra.mxu0 0
    %995 = vmatprep.mubr.bf16.mxu0 0
    %996 = vmatmul.mubr.bf16.gmra.mrb[0].mxu0 %v954
    %v997 = vpop.f32.mrb[0].mxu0
    %v998 = vadd.f32 %v950, %v997
    %v999 = vpop.f32.mrb[0].mxu0
    %v1000 = vpop.f32.mrb[0].mxu0
    %v1001 = vadd.f32 %v950, %v1000
    %v1002 = vpop.f32.mrb[0].mxu0
    %1003 = vmatprep.mubr.bf16.mxu0 0
    %1004 = vmatmul.mubr.bf16.gmra.mrb[0].mxu0 %v957
    %v1005 = vpop.f32.mrb[0].mxu0
    %v1006 = vadd.f32 %v950, %v1005
    %v1007 = vpop.f32.mrb[0].mxu0
    %v1008 = vpop.f32.mrb[0].mxu0
    %v1009 = vpop.f32.mrb[0].mxu0
    %1010 = vdwg.mxu0
    %vm1011 = vcmp.ge.f32.partialorder %v998, 0.0
    %vm1012 = vcmp.ge.f32.partialorder %v1001, 0.0
    %vm1013 = vcmp.ge.f32.partialorder %v1006, 0.0
    %s1014 = scalar_lea.vmem [#allocation5], 1
    %v1015 = vld [vmem:[%s1014] sm:$0x1]
    %v1017 = vlaneseq
    %v1018 = vshrl.u32 %v1017, 7
    %v1019 = vsub.s32 0, %v1018
    %v1020 = vrot.slane %v1015, %v1019
    %v1022 = vmul.f32 %v998, %v1020
    %v1023 = vmul.f32 %v1001, %v1020
    %v1024 = vmul.f32 %v1006, %v1020
    %s1025 = scalar_lea.vmem [#allocation5], 2
    %v1026 = vld [vmem:[%s1025] sm:$0x1]
    %v1028 = vlaneseq
    %v1029 = vshrl.u32 %v1028, 7
    %v1030 = vsub.s32 0, %v1029
    %v1031 = vrot.slane %v1026, %v1030
    %v1033 = vmul.f32 %v998, %v1031
    %v1034 = vmul.f32 %v1001, %v1031
    %v1035 = vmul.f32 %v1006, %v1031
    %v1036 = vsel %vm1011, %v1022, %v1033
    %v1037 = vsel %vm1012, %v1023, %v1034
    %v1038 = vsel %vm1013, %v1024, %v1035
    %s1039 = scalar_lea.vmem [#allocation5], 3
    %v1040 = vld [vmem:[%s1039] sm:$0x1]
    %v1042 = vlaneseq
    %v1043 = vshrl.u32 %v1042, 7
    %v1044 = vsub.s32 0, %v1043
    %v1045 = vrot.slane %v1040, %v1044
    %v1047 = vadd.f32 %v1036, %v1045
    %v1048 = vadd.f32 %v1037, %v1045
    %v1049 = vadd.f32 %v1038, %v1045
    %v1050 = vld [vmem:[%s11] sm:$0xff]
    %v1051 = vld [vmem:[%s11 + $0x8] sm:$0xff]
    %v1052 = vld [vmem:[%s11 + $0x10] sm:$0x3]
    %vm1053 = vcmask 146432
    %v1055 = vsel %vm1053, %v1050, 0
    %v1058 = vsel %vm1053, %v1051, 0
    %v1061 = vsel %vm1053, %v1052, 0
    %v1064 = vsel %vm959, %v1049, 0
    %1066 = vmatprep.subr.mxu0 0.0
    %1067 = vmatpush1.msra.mxu0 %v1047
    %1068 = vmatprep.subr.mxu0 0.0
    %1069 = vmatpush1.msra.mxu0 %v1048
    %1070 = vmatprep.subr.mxu0 0.0
    %1071 = vmatpush1.msra.mxu0 %v1064
    %1072 = vmatprep.subr.mxu0 0.0
    %1073 = vmatpush1.msra.mxu0 0.0
    %1074 = vmatprep.subr.mxu0 0.0
    %1075 = vmatpush1.msra.mxu0 0.0
    %1076 = vmatprep.subr.mxu0 0.0
    %1077 = vmatpush1.msra.mxu0 0.0
    %1078 = vmatprep.subr.mxu0 0.0
    %1079 = vmatpush1.msra.mxu0 0.0
    %1080 = vmatprep.subr.mxu0 0.0
    %1081 = vmatpush1.msra.mxu0 0.0
    %1082 = vmatprep.subr.mxu0 0.0
    %1083 = vmatpush1.msra.mxu0 0.0
    %1084 = vmatprep.subr.mxu0 0.0
    %1085 = vmatpush1.msra.mxu0 0.0
    %1086 = vmatprep.subr.mxu0 0.0
    %1087 = vmatpush1.msra.mxu0 0.0
    %1088 = vmatprep.subr.mxu0 0.0
    %1089 = vmatpush1.msra.mxu0 0.0
    %1090 = vmatprep.subr.mxu0 0.0
    %1091 = vmatpush1.msra.mxu0 0.0
    %1092 = vmatprep.subr.mxu0 0.0
    %1093 = vmatpush1.msra.mxu0 0.0
    %1094 = vmatprep.subr.mxu0 0.0
    %1095 = vmatpush1.msra.mxu0 0.0
    %1096 = vmatprep.subr.mxu0 0.0
    %1097 = vmatpush1.msra.mxu0 0.0
    %1098 = vmatprep.subr.mxu0 0.0
    %1099 = vmatpush1.msra.mxu0 0.0
    %1100 = vmatprep.subr.mxu0 0.0
    %1101 = vmatpush1.msra.mxu0 0.0
    %1102 = vmatprep.subr.mxu0 0.0
    %1103 = vmatpush1.msra.mxu0 0.0
    %1104 = vmatprep.subr.mxu0 0.0
    %1105 = vmatpush1.msra.mxu0 0.0
    %1106 = vmatprep.subr.mxu0 0.0
    %1107 = vmatpush1.msra.mxu0 0.0
    %1108 = vmatprep.subr.mxu0 0.0
    %1109 = vmatpush1.msra.mxu0 0.0
    %1110 = vmatprep.subr.mxu0 0.0
    %1111 = vmatpush1.msra.mxu0 0.0
    %1112 = vmatprep.subr.mxu0 0.0
    %1113 = vmatpush1.msra.mxu0 0.0
    %1114 = vmatprep.subr.mxu0 0.0
    %1115 = vmatpush1.msra.mxu0 0.0
    %1116 = vmatprep.subr.mxu0 0.0
    %1117 = vmatpush1.msra.mxu0 0.0
    %1118 = vmatprep.subr.mxu0 0.0
    %1119 = vmatpush1.msra.mxu0 0.0
    %1120 = vmatprep.subr.mxu0 0.0
    %1121 = vmatpush1.msra.mxu0 0.0
    %1122 = vmatprep.subr.mxu0 0.0
    %1123 = vmatpush1.msra.mxu0 0.0
    %1124 = vmatprep.subr.mxu0 0.0
    %1125 = vmatpush1.msra.mxu0 0.0
    %1126 = vmatprep.subr.mxu0 0.0
    %1127 = vmatpush1.msra.mxu0 0.0
    %1128 = vmatprep.subr.mxu0 0.0
    %1129 = vmatpush1.msra.mxu0 0.0
    %1130 = vmatprep.mubr.f32.mxu0 0.0
    %1131 = vmatmul.mubr.f32.gmra.mrb[0].mxu0 %v1055
    %v1132 = vpop.f32.mrb[0].mxu0
    %v1133 = vadd.f32 0.0, %v1132
    %v1134 = vpop.f32.mrb[0].mxu0
    %1135 = vmatprep.mubr.f32.mxu0 0.0
    %1136 = vmatmul.mubr.f32.gmra.mrb[0].mxu0 %v1058
    %v1137 = vpop.f32.mrb[0].mxu0
    %v1138 = vadd.f32 0.0, %v1137
    %v1139 = vpop.f32.mrb[0].mxu0
    %1140 = vmatprep.mubr.f32.mxu0 0.0
    %1141 = vmatmul.mubr.f32.gmra.mrb[0].mxu0 %v1061
    %v1142 = vpop.f32.mrb[0].mxu0
    %v1143 = vadd.f32 0.0, %v1142
    %v1144 = vpop.f32.mrb[0].mxu0
    %1145 = vdwg.mxu0
    %v1146 = vld [vmem:[#allocation7] sm:$0x1]
    %v1148 = vlaneseq
    %v1149 = vshrl.u32 %v1148, 7
    %v1150 = vsub.s32 0, %v1149
    %v1151 = vrot.slane %v1146, %v1150
    %v1153 = vmul.f32 %v1133, %v1151
    %v1154 = vmul.f32 %v1138, %v1151
    %v1155 = vmul.f32 %v1143, %v1151
    %s1156 = scalar_lea.vmem %s11, 24
    %v1157 = vld [vmem:[%s1156] sm:$0xff]
    %v1158 = vld [vmem:[%s1156 + $0x8] sm:$0xff]
    %v1159 = vld [vmem:[%s1156 + $0x10] sm:$0x3]
    %v1161 = vsel %vm1053, %v1157, 0
    %v1164 = vsel %vm1053, %v1158, 0
    %v1167 = vsel %vm1053, %v1159, 0
    %1169 = vmatprep.subr.mxu0 0.0
    %1170 = vmatpush1.msra.mxu0 %v1047
    %1171 = vmatprep.subr.mxu0 0.0
    %1172 = vmatpush1.msra.mxu0 %v1048
    %1173 = vmatprep.subr.mxu0 0.0
    %1174 = vmatpush1.msra.mxu0 %v1064
    %1175 = vmatprep.subr.mxu0 0.0
    %1176 = vmatpush1.msra.mxu0 0.0
    %1177 = vmatprep.subr.mxu0 0.0
    %1178 = vmatpush1.msra.mxu0 0.0
    %1179 = vmatprep.subr.mxu0 0.0
    %1180 = vmatpush1.msra.mxu0 0.0
    %1181 = vmatprep.subr.mxu0 0.0
    %1182 = vmatpush1.msra.mxu0 0.0
    %1183 = vmatprep.subr.mxu0 0.0
    %1184 = vmatpush1.msra.mxu0 0.0
    %1185 = vmatprep.subr.mxu0 0.0
    %1186 = vmatpush1.msra.mxu0 0.0
    %1187 = vmatprep.subr.mxu0 0.0
    %1188 = vmatpush1.msra.mxu0 0.0
    %1189 = vmatprep.subr.mxu0 0.0
    %1190 = vmatpush1.msra.mxu0 0.0
    %1191 = vmatprep.subr.mxu0 0.0
    %1192 = vmatpush1.msra.mxu0 0.0
    %1193 = vmatprep.subr.mxu0 0.0
    %1194 = vmatpush1.msra.mxu0 0.0
    %1195 = vmatprep.subr.mxu0 0.0
    %1196 = vmatpush1.msra.mxu0 0.0
    %1197 = vmatprep.subr.mxu0 0.0
    %1198 = vmatpush1.msra.mxu0 0.0
    %1199 = vmatprep.subr.mxu0 0.0
    %1200 = vmatpush1.msra.mxu0 0.0
    %1201 = vmatprep.subr.mxu0 0.0
    %1202 = vmatpush1.msra.mxu0 0.0
    %1203 = vmatprep.subr.mxu0 0.0
    %1204 = vmatpush1.msra.mxu0 0.0
    %1205 = vmatprep.subr.mxu0 0.0
    %1206 = vmatpush1.msra.mxu0 0.0
    %1207 = vmatprep.subr.mxu0 0.0
    %1208 = vmatpush1.msra.mxu0 0.0
    %1209 = vmatprep.subr.mxu0 0.0
    %1210 = vmatpush1.msra.mxu0 0.0
    %1211 = vmatprep.subr.mxu0 0.0
    %1212 = vmatpush1.msra.mxu0 0.0
    %1213 = vmatprep.subr.mxu0 0.0
    %1214 = vmatpush1.msra.mxu0 0.0
    %1215 = vmatprep.subr.mxu0 0.0
    %1216 = vmatpush1.msra.mxu0 0.0
    %1217 = vmatprep.subr.mxu0 0.0
    %1218 = vmatpush1.msra.mxu0 0.0
    %1219 = vmatprep.subr.mxu0 0.0
    %1220 = vmatpush1.msra.mxu0 0.0
    %1221 = vmatprep.subr.mxu0 0.0
    %1222 = vmatpush1.msra.mxu0 0.0
    %1223 = vmatprep.subr.mxu0 0.0
    %1224 = vmatpush1.msra.mxu0 0.0
    %1225 = vmatprep.subr.mxu0 0.0
    %1226 = vmatpush1.msra.mxu0 0.0
    %1227 = vmatprep.subr.mxu0 0.0
    %1228 = vmatpush1.msra.mxu0 0.0
    %1229 = vmatprep.subr.mxu0 0.0
    %1230 = vmatpush1.msra.mxu0 0.0
    %1231 = vmatprep.subr.mxu0 0.0
    %1232 = vmatpush1.msra.mxu0 0.0
    %1233 = vmatprep.mubr.f32.mxu0 0.0
    %1234 = vmatmul.mubr.f32.gmra.mrb[0].mxu0 %v1161
    %v1235 = vpop.f32.mrb[0].mxu0
    %v1236 = vadd.f32 0.0, %v1235
    %v1237 = vpop.f32.mrb[0].mxu0
    %1238 = vmatprep.mubr.f32.mxu0 0.0
    %1239 = vmatmul.mubr.f32.gmra.mrb[0].mxu0 %v1164
    %v1240 = vpop.f32.mrb[0].mxu0
    %v1241 = vadd.f32 0.0, %v1240
    %v1242 = vpop.f32.mrb[0].mxu0
    %1243 = vmatprep.mubr.f32.mxu0 0.0
    %1244 = vmatmul.mubr.f32.gmra.mrb[0].mxu0 %v1167
    %v1245 = vpop.f32.mrb[0].mxu0
    %v1246 = vadd.f32 0.0, %v1245
    %v1247 = vpop.f32.mrb[0].mxu0
    %1248 = vdwg.mxu0
    %s1249 = scalar_lea.vmem [#allocation7], 1
    %v1250 = vld [vmem:[%s1249] sm:$0x1]
    %v1252 = vlaneseq
    %v1253 = vshrl.u32 %v1252, 7
    %v1254 = vsub.s32 0, %v1253
    %v1255 = vrot.slane %v1250, %v1254
    %v1257 = vmul.f32 %v1236, %v1255
    %v1258 = vmul.f32 %v1241, %v1255
    %v1259 = vmul.f32 %v1246, %v1255
    %v1260 = vadd.f32 %v1153, %v1257
    %v1261 = vadd.f32 %v1154, %v1258
    %v1262 = vadd.f32 %v1155, %v1259
    %s1263 = scalar_lea.vmem %s11, 48
    %v1264 = vld [vmem:[%s1263] sm:$0xff]
    %v1265 = vld [vmem:[%s1263 + $0x8] sm:$0xff]
    %v1266 = vld [vmem:[%s1263 + $0x10] sm:$0x3]
    %v1268 = vsel %vm1053, %v1264, 0
    %v1271 = vsel %vm1053, %v1265, 0
    %v1274 = vsel %vm1053, %v1266, 0
    %1276 = vmatprep.subr.mxu0 0.0
    %1277 = vmatpush1.msra.mxu0 %v1047
    %1278 = vmatprep.subr.mxu0 0.0
    %1279 = vmatpush1.msra.mxu0 %v1048
    %1280 = vmatprep.subr.mxu0 0.0
    %1281 = vmatpush1.msra.mxu0 %v1064
    %1282 = vmatprep.subr.mxu0 0.0
    %1283 = vmatpush1.msra.mxu0 0.0
    %1284 = vmatprep.subr.mxu0 0.0
    %1285 = vmatpush1.msra.mxu0 0.0
    %1286 = vmatprep.subr.mxu0 0.0
    %1287 = vmatpush1.msra.mxu0 0.0
    %1288 = vmatprep.subr.mxu0 0.0
    %1289 = vmatpush1.msra.mxu0 0.0
    %1290 = vmatprep.subr.mxu0 0.0
    %1291 = vmatpush1.msra.mxu0 0.0
    %1292 = vmatprep.subr.mxu0 0.0
    %1293 = vmatpush1.msra.mxu0 0.0
    %1294 = vmatprep.subr.mxu0 0.0
    %1295 = vmatpush1.msra.mxu0 0.0
    %1296 = vmatprep.subr.mxu0 0.0
    %1297 = vmatpush1.msra.mxu0 0.0
    %1298 = vmatprep.subr.mxu0 0.0
    %1299 = vmatpush1.msra.mxu0 0.0
    %1300 = vmatprep.subr.mxu0 0.0
    %1301 = vmatpush1.msra.mxu0 0.0
    %1302 = vmatprep.subr.mxu0 0.0
    %1303 = vmatpush1.msra.mxu0 0.0
    %1304 = vmatprep.subr.mxu0 0.0
    %1305 = vmatpush1.msra.mxu0 0.0
    %1306 = vmatprep.subr.mxu0 0.0
    %1307 = vmatpush1.msra.mxu0 0.0
    %1308 = vmatprep.subr.mxu0 0.0
    %1309 = vmatpush1.msra.mxu0 0.0
    %1310 = vmatprep.subr.mxu0 0.0
    %1311 = vmatpush1.msra.mxu0 0.0
    %1312 = vmatprep.subr.mxu0 0.0
    %1313 = vmatpush1.msra.mxu0 0.0
    %1314 = vmatprep.subr.mxu0 0.0
    %1315 = vmatpush1.msra.mxu0 0.0
    %1316 = vmatprep.subr.mxu0 0.0
    %1317 = vmatpush1.msra.mxu0 0.0
    %1318 = vmatprep.subr.mxu0 0.0
    %1319 = vmatpush1.msra.mxu0 0.0
    %1320 = vmatprep.subr.mxu0 0.0
    %1321 = vmatpush1.msra.mxu0 0.0
    %1322 = vmatprep.subr.mxu0 0.0
    %1323 = vmatpush1.msra.mxu0 0.0
    %1324 = vmatprep.subr.mxu0 0.0
    %1325 = vmatpush1.msra.mxu0 0.0
    %1326 = vmatprep.subr.mxu0 0.0
    %1327 = vmatpush1.msra.mxu0 0.0
    %1328 = vmatprep.subr.mxu0 0.0
    %1329 = vmatpush1.msra.mxu0 0.0
    %1330 = vmatprep.subr.mxu0 0.0
    %1331 = vmatpush1.msra.mxu0 0.0
    %1332 = vmatprep.subr.mxu0 0.0
    %1333 = vmatpush1.msra.mxu0 0.0
    %1334 = vmatprep.subr.mxu0 0.0
    %1335 = vmatpush1.msra.mxu0 0.0
    %1336 = vmatprep.subr.mxu0 0.0
    %1337 = vmatpush1.msra.mxu0 0.0
    %1338 = vmatprep.subr.mxu0 0.0
    %1339 = vmatpush1.msra.mxu0 0.0
    %1340 = vmatprep.mubr.f32.mxu0 0.0
    %1341 = vmatmul.mubr.f32.gmra.mrb[0].mxu0 %v1268
    %v1342 = vpop.f32.mrb[0].mxu0
    %v1343 = vadd.f32 0.0, %v1342
    %v1344 = vpop.f32.mrb[0].mxu0
    %1345 = vmatprep.mubr.f32.mxu0 0.0
    %1346 = vmatmul.mubr.f32.gmra.mrb[0].mxu0 %v1271
    %v1347 = vpop.f32.mrb[0].mxu0
    %v1348 = vadd.f32 0.0, %v1347
    %v1349 = vpop.f32.mrb[0].mxu0
    %1350 = vmatprep.mubr.f32.mxu0 0.0
    %1351 = vmatmul.mubr.f32.gmra.mrb[0].mxu0 %v1274
    %v1352 = vpop.f32.mrb[0].mxu0
    %v1353 = vadd.f32 0.0, %v1352
    %v1354 = vpop.f32.mrb[0].mxu0
    %1355 = vdwg.mxu0
    %s1356 = scalar_lea.vmem [#allocation7], 2
    %v1357 = vld [vmem:[%s1356] sm:$0x1]
    %v1359 = vlaneseq
    %v1360 = vshrl.u32 %v1359, 7
    %v1361 = vsub.s32 0, %v1360
    %v1362 = vrot.slane %v1357, %v1361
    %v1364 = vmul.f32 %v1343, %v1362
    %v1365 = vmul.f32 %v1348, %v1362
    %v1366 = vmul.f32 %v1353, %v1362
    %v1367 = vadd.f32 %v1260, %v1364
    %v1368 = vadd.f32 %v1261, %v1365
    %v1369 = vadd.f32 %v1262, %v1366
    %v1370 = vpack.c.bf16 %v1368, %v1367
    %v1371 = vpack.c.bf16 %v1369, %v1369
    %v1372 = vld [vmem:[#allocation8] sm:$0xf]
    %v1373 = vld [vmem:[#allocation8 + $0x4] sm:$0xf]
    %v1374 = vld [vmem:[#allocation8 + $0x8] sm:$0xf]
    %v1375 = vld [vmem:[#allocation8 + $0xc] sm:$0xf]
    %v1376 = vld [vmem:[#allocation10] sm:$0x1]
    %v1378 = vlaneseq
    %v1379 = vshrl.u32 %v1378, 7
    %v1380 = vsub.s32 0, %v1379
    %v1381 = vrot.slane %v1376, %v1380
    %v1387 = vunpack.c.l.b16 %v1372
    %v1388 = vunpack.c.l.b16 %v1373
    %v1389 = vunpack.c.l.b16 %v1374
    %v1390 = vunpack.c.l.b16 %v1375
    %v1391 = vpack.c.b16 %v1388, %v1387
    %v1392 = vpack.c.b16 %v1390, %v1389
    %v1396 = vsel %vm414, %v1370, 0
    %v1399 = vsel %vm414, %v1371, 0
    %1401 = vmatprep.subr.bf16.mxu0 0
    %1402 = vmatpush1.bf16.msra.mxu0 %v1391
    %1403 = vmatprep.subr.bf16.mxu0 0
    %1404 = vmatpush1.bf16.msra.mxu0 %v1392
    %1405 = vmatprep.subr.bf16.mxu0 0
    %1406 = vmatpush1.bf16.msra.mxu0 0
    %1407 = vmatprep.subr.bf16.mxu0 0
    %1408 = vmatpush1.bf16.msra.mxu0 0
    %1409 = vmatprep.subr.bf16.mxu0 0
    %1410 = vmatpush1.bf16.msra.mxu0 0
    %1411 = vmatprep.subr.bf16.mxu0 0
    %1412 = vmatpush1.bf16.msra.mxu0 0
    %1413 = vmatprep.subr.bf16.mxu0 0
    %1414 = vmatpush1.bf16.msra.mxu0 0
    %1415 = vmatprep.subr.bf16.mxu0 0
    %1416 = vmatpush1.bf16.msra.mxu0 0
    %1417 = vmatprep.subr.bf16.mxu0 0
    %1418 = vmatpush1.bf16.msra.mxu0 0
    %1419 = vmatprep.subr.bf16.mxu0 0
    %1420 = vmatpush1.bf16.msra.mxu0 0
    %1421 = vmatprep.subr.bf16.mxu0 0
    %1422 = vmatpush1.bf16.msra.mxu0 0
    %1423 = vmatprep.subr.bf16.mxu0 0
    %1424 = vmatpush1.bf16.msra.mxu0 0
    %1425 = vmatprep.subr.bf16.mxu0 0
    %1426 = vmatpush1.bf16.msra.mxu0 0
    %1427 = vmatprep.subr.bf16.mxu0 0
    %1428 = vmatpush1.bf16.msra.mxu0 0
    %1429 = vmatprep.subr.bf16.mxu0 0
    %1430 = vmatpush1.bf16.msra.mxu0 0
    %1431 = vmatprep.subr.bf16.mxu0 0
    %1432 = vmatpush1.bf16.msra.mxu0 0
    %1433 = vmatprep.mubr.bf16.mxu0 0
    %1434 = vmatmul.mubr.bf16.gmra.mrb[0].mxu0 %v1396
    %v1435 = vpop.f32.mrb[0].mxu0
    %v1436 = vadd.f32 %v1381, %v1435
    %v1437 = vpop.f32.mrb[0].mxu0
    %v1438 = vpop.f32.mrb[0].mxu0
    %v1439 = vadd.f32 %v1381, %v1438
    %v1440 = vpop.f32.mrb[0].mxu0
    %1441 = vmatprep.mubr.bf16.mxu0 0
    %1442 = vmatmul.mubr.bf16.gmra.mrb[0].mxu0 %v1399
    %v1443 = vpop.f32.mrb[0].mxu0
    %v1444 = vadd.f32 %v1381, %v1443
    %v1445 = vpop.f32.mrb[0].mxu0
    %v1446 = vpop.f32.mrb[0].mxu0
    %v1447 = vpop.f32.mrb[0].mxu0
    %1448 = vdwg.mxu0
    %vm1449 = vcmp.ge.f32.partialorder %v1436, 0.0
    %vm1450 = vcmp.ge.f32.partialorder %v1439, 0.0
    %vm1451 = vcmp.ge.f32.partialorder %v1444, 0.0
    %s1452 = scalar_lea.vmem [#allocation10], 1
    %v1453 = vld [vmem:[%s1452] sm:$0x1]
    %v1455 = vlaneseq
    %v1456 = vshrl.u32 %v1455, 7
    %v1457 = vsub.s32 0, %v1456
    %v1458 = vrot.slane %v1453, %v1457
    %v1460 = vmul.f32 %v1436, %v1458
    %v1461 = vmul.f32 %v1439, %v1458
    %v1462 = vmul.f32 %v1444, %v1458
    %s1463 = scalar_lea.vmem [#allocation10], 2
    %v1464 = vld [vmem:[%s1463] sm:$0x1]
    %v1466 = vlaneseq
    %v1467 = vshrl.u32 %v1466, 7
    %v1468 = vsub.s32 0, %v1467
    %v1469 = vrot.slane %v1464, %v1468
    %v1471 = vmul.f32 %v1436, %v1469
    %v1472 = vmul.f32 %v1439, %v1469
    %v1473 = vmul.f32 %v1444, %v1469
    %v1474 = vsel %vm1449, %v1460, %v1471
    %v1475 = vsel %vm1450, %v1461, %v1472
    %v1476 = vsel %vm1451, %v1462, %v1473
    %s1477 = scalar_lea.vmem [#allocation10], 3
    %v1478 = vld [vmem:[%s1477] sm:$0x1]
    %v1480 = vlaneseq
    %v1481 = vshrl.u32 %v1480, 7
    %v1482 = vsub.s32 0, %v1481
    %v1483 = vrot.slane %v1478, %v1482
    %v1485 = vadd.f32 %v1474, %v1483
    %v1486 = vadd.f32 %v1475, %v1483
    %v1487 = vadd.f32 %v1476, %v1483
    %v1488 = vld [vmem:[%s19] sm:$0x3f]
    %v1490 = vsel %vm1053, %v1488, 0
    %v1493 = vsel %vm959, %v1487, 0
    %1495 = vmatprep.subr.mxu0 0.0
    %1496 = vmatpush1.msra.mxu0 %v1485
    %1497 = vmatprep.subr.mxu0 0.0
    %1498 = vmatpush1.msra.mxu0 %v1486
    %1499 = vmatprep.subr.mxu0 0.0
    %1500 = vmatpush1.msra.mxu0 %v1493
    %1501 = vmatprep.subr.mxu0 0.0
    %1502 = vmatpush1.msra.mxu0 0.0
    %1503 = vmatprep.subr.mxu0 0.0
    %1504 = vmatpush1.msra.mxu0 0.0
    %1505 = vmatprep.subr.mxu0 0.0
    %1506 = vmatpush1.msra.mxu0 0.0
    %1507 = vmatprep.subr.mxu0 0.0
    %1508 = vmatpush1.msra.mxu0 0.0
    %1509 = vmatprep.subr.mxu0 0.0
    %1510 = vmatpush1.msra.mxu0 0.0
    %1511 = vmatprep.subr.mxu0 0.0
    %1512 = vmatpush1.msra.mxu0 0.0
    %1513 = vmatprep.subr.mxu0 0.0
    %1514 = vmatpush1.msra.mxu0 0.0
    %1515 = vmatprep.subr.mxu0 0.0
    %1516 = vmatpush1.msra.mxu0 0.0
    %1517 = vmatprep.subr.mxu0 0.0
    %1518 = vmatpush1.msra.mxu0 0.0
    %1519 = vmatprep.subr.mxu0 0.0
    %1520 = vmatpush1.msra.mxu0 0.0
    %1521 = vmatprep.subr.mxu0 0.0
    %1522 = vmatpush1.msra.mxu0 0.0
    %1523 = vmatprep.subr.mxu0 0.0
    %1524 = vmatpush1.msra.mxu0 0.0
    %1525 = vmatprep.subr.mxu0 0.0
    %1526 = vmatpush1.msra.mxu0 0.0
    %1527 = vmatprep.subr.mxu0 0.0
    %1528 = vmatpush1.msra.mxu0 0.0
    %1529 = vmatprep.subr.mxu0 0.0
    %1530 = vmatpush1.msra.mxu0 0.0
    %1531 = vmatprep.subr.mxu0 0.0
    %1532 = vmatpush1.msra.mxu0 0.0
    %1533 = vmatprep.subr.mxu0 0.0
    %1534 = vmatpush1.msra.mxu0 0.0
    %1535 = vmatprep.subr.mxu0 0.0
    %1536 = vmatpush1.msra.mxu0 0.0
    %1537 = vmatprep.subr.mxu0 0.0
    %1538 = vmatpush1.msra.mxu0 0.0
    %1539 = vmatprep.subr.mxu0 0.0
    %1540 = vmatpush1.msra.mxu0 0.0
    %1541 = vmatprep.subr.mxu0 0.0
    %1542 = vmatpush1.msra.mxu0 0.0
    %1543 = vmatprep.subr.mxu0 0.0
    %1544 = vmatpush1.msra.mxu0 0.0
    %1545 = vmatprep.subr.mxu0 0.0
    %1546 = vmatpush1.msra.mxu0 0.0
    %1547 = vmatprep.subr.mxu0 0.0
    %1548 = vmatpush1.msra.mxu0 0.0
    %1549 = vmatprep.subr.mxu0 0.0
    %1550 = vmatpush1.msra.mxu0 0.0
    %1551 = vmatprep.subr.mxu0 0.0
    %1552 = vmatpush1.msra.mxu0 0.0
    %1553 = vmatprep.subr.mxu0 0.0
    %1554 = vmatpush1.msra.mxu0 0.0
    %1555 = vmatprep.subr.mxu0 0.0
    %1556 = vmatpush1.msra.mxu0 0.0
    %1557 = vmatprep.subr.mxu0 0.0
    %1558 = vmatpush1.msra.mxu0 0.0
    %1559 = vmatprep.mubr.f32.mxu0 0.0
    %1560 = vmatmul.mubr.f32.gmra.mrb[0].mxu0 %v1490
    %v1561 = vpop.f32.mrb[0].mxu0
    %v1562 = vadd.f32 0.0, %v1561
    %v1563 = vpop.f32.mrb[0].mxu0
    %1564 = vdwg.mxu0
    %v1565 = vld [vmem:[%s21] sm:$0x1]
    %v1567 = vlaneseq
    %v1568 = vshrl.u32 %v1567, 7
    %v1569 = vsub.s32 0, %v1568
    %v1570 = vrot.slane %v1565, %v1569
    %v1572 = vmul.f32 %v1562, %v1570
    %s1573 = scalar_lea.vmem %s19, 8
    %v1574 = vld [vmem:[%s1573] sm:$0x3f]
    %v1576 = vsel %vm1053, %v1574, 0
    %1578 = vmatprep.subr.mxu0 0.0
    %1579 = vmatpush1.msra.mxu0 %v1485
    %1580 = vmatprep.subr.mxu0 0.0
    %1581 = vmatpush1.msra.mxu0 %v1486
    %1582 = vmatprep.subr.mxu0 0.0
    %1583 = vmatpush1.msra.mxu0 %v1493
    %1584 = vmatprep.subr.mxu0 0.0
    %1585 = vmatpush1.msra.mxu0 0.0
    %1586 = vmatprep.subr.mxu0 0.0
    %1587 = vmatpush1.msra.mxu0 0.0
    %1588 = vmatprep.subr.mxu0 0.0
    %1589 = vmatpush1.msra.mxu0 0.0
    %1590 = vmatprep.subr.mxu0 0.0
    %1591 = vmatpush1.msra.mxu0 0.0
    %1592 = vmatprep.subr.mxu0 0.0
    %1593 = vmatpush1.msra.mxu0 0.0
    %1594 = vmatprep.subr.mxu0 0.0
    %1595 = vmatpush1.msra.mxu0 0.0
    %1596 = vmatprep.subr.mxu0 0.0
    %1597 = vmatpush1.msra.mxu0 0.0
    %1598 = vmatprep.subr.mxu0 0.0
    %1599 = vmatpush1.msra.mxu0 0.0
    %1600 = vmatprep.subr.mxu0 0.0
    %1601 = vmatpush1.msra.mxu0 0.0
    %1602 = vmatprep.subr.mxu0 0.0
    %1603 = vmatpush1.msra.mxu0 0.0
    %1604 = vmatprep.subr.mxu0 0.0
    %1605 = vmatpush1.msra.mxu0 0.0
    %1606 = vmatprep.subr.mxu0 0.0
    %1607 = vmatpush1.msra.mxu0 0.0
    %1608 = vmatprep.subr.mxu0 0.0
    %1609 = vmatpush1.msra.mxu0 0.0
    %1610 = vmatprep.subr.mxu0 0.0
    %1611 = vmatpush1.msra.mxu0 0.0
    %1612 = vmatprep.subr.mxu0 0.0
    %1613 = vmatpush1.msra.mxu0 0.0
    %1614 = vmatprep.subr.mxu0 0.0
    %1615 = vmatpush1.msra.mxu0 0.0
    %1616 = vmatprep.subr.mxu0 0.0
    %1617 = vmatpush1.msra.mxu0 0.0
    %1618 = vmatprep.subr.mxu0 0.0
    %1619 = vmatpush1.msra.mxu0 0.0
    %1620 = vmatprep.subr.mxu0 0.0
    %1621 = vmatpush1.msra.mxu0 0.0
    %1622 = vmatprep.subr.mxu0 0.0
    %1623 = vmatpush1.msra.mxu0 0.0
    %1624 = vmatprep.subr.mxu0 0.0
    %1625 = vmatpush1.msra.mxu0 0.0
    %1626 = vmatprep.subr.mxu0 0.0
    %1627 = vmatpush1.msra.mxu0 0.0
    %1628 = vmatprep.subr.mxu0 0.0
    %1629 = vmatpush1.msra.mxu0 0.0
    %1630 = vmatprep.subr.mxu0 0.0
    %1631 = vmatpush1.msra.mxu0 0.0
    %1632 = vmatprep.subr.mxu0 0.0
    %1633 = vmatpush1.msra.mxu0 0.0
    %1634 = vmatprep.subr.mxu0 0.0
    %1635 = vmatpush1.msra.mxu0 0.0
    %1636 = vmatprep.subr.mxu0 0.0
    %1637 = vmatpush1.msra.mxu0 0.0
    %1638 = vmatprep.subr.mxu0 0.0
    %1639 = vmatpush1.msra.mxu0 0.0
    %1640 = vmatprep.subr.mxu0 0.0
    %1641 = vmatpush1.msra.mxu0 0.0
    %1642 = vmatprep.mubr.f32.mxu0 0.0
    %1643 = vmatmul.mubr.f32.gmra.mrb[0].mxu0 %v1576
    %v1644 = vpop.f32.mrb[0].mxu0
    %v1645 = vadd.f32 0.0, %v1644
    %v1646 = vpop.f32.mrb[0].mxu0
    %1647 = vdwg.mxu0
    %s1648 = scalar_lea.vmem %s21, 1
    %v1649 = vld [vmem:[%s1648] sm:$0x1]
    %v1651 = vlaneseq
    %v1652 = vshrl.u32 %v1651, 7
    %v1653 = vsub.s32 0, %v1652
    %v1654 = vrot.slane %v1649, %v1653
    %v1656 = vmul.f32 %v1645, %v1654
    %v1657 = vadd.f32 %v1572, %v1656
    %s1658 = scalar_lea.vmem %s19, 16
    %v1659 = vld [vmem:[%s1658] sm:$0x3f]
    %v1661 = vsel %vm1053, %v1659, 0
    %1663 = vmatprep.subr.mxu0 0.0
    %1664 = vmatpush1.msra.mxu0 %v1485
    %1665 = vmatprep.subr.mxu0 0.0
    %1666 = vmatpush1.msra.mxu0 %v1486
    %1667 = vmatprep.subr.mxu0 0.0
    %1668 = vmatpush1.msra.mxu0 %v1493
    %1669 = vmatprep.subr.mxu0 0.0
    %1670 = vmatpush1.msra.mxu0 0.0
    %1671 = vmatprep.subr.mxu0 0.0
    %1672 = vmatpush1.msra.mxu0 0.0
    %1673 = vmatprep.subr.mxu0 0.0
    %1674 = vmatpush1.msra.mxu0 0.0
    %1675 = vmatprep.subr.mxu0 0.0
    %1676 = vmatpush1.msra.mxu0 0.0
    %1677 = vmatprep.subr.mxu0 0.0
    %1678 = vmatpush1.msra.mxu0 0.0
    %1679 = vmatprep.subr.mxu0 0.0
    %1680 = vmatpush1.msra.mxu0 0.0
    %1681 = vmatprep.subr.mxu0 0.0
    %1682 = vmatpush1.msra.mxu0 0.0
    %1683 = vmatprep.subr.mxu0 0.0
    %1684 = vmatpush1.msra.mxu0 0.0
    %1685 = vmatprep.subr.mxu0 0.0
    %1686 = vmatpush1.msra.mxu0 0.0
    %1687 = vmatprep.subr.mxu0 0.0
    %1688 = vmatpush1.msra.mxu0 0.0
    %1689 = vmatprep.subr.mxu0 0.0
    %1690 = vmatpush1.msra.mxu0 0.0
    %1691 = vmatprep.subr.mxu0 0.0
    %1692 = vmatpush1.msra.mxu0 0.0
    %1693 = vmatprep.subr.mxu0 0.0
    %1694 = vmatpush1.msra.mxu0 0.0
    %1695 = vmatprep.subr.mxu0 0.0
    %1696 = vmatpush1.msra.mxu0 0.0
    %1697 = vmatprep.subr.mxu0 0.0
    %1698 = vmatpush1.msra.mxu0 0.0
    %1699 = vmatprep.subr.mxu0 0.0
    %1700 = vmatpush1.msra.mxu0 0.0
    %1701 = vmatprep.subr.mxu0 0.0
    %1702 = vmatpush1.msra.mxu0 0.0
    %1703 = vmatprep.subr.mxu0 0.0
    %1704 = vmatpush1.msra.mxu0 0.0
    %1705 = vmatprep.subr.mxu0 0.0
    %1706 = vmatpush1.msra.mxu0 0.0
    %1707 = vmatprep.subr.mxu0 0.0
    %1708 = vmatpush1.msra.mxu0 0.0
    %1709 = vmatprep.subr.mxu0 0.0
    %1710 = vmatpush1.msra.mxu0 0.0
    %1711 = vmatprep.subr.mxu0 0.0
    %1712 = vmatpush1.msra.mxu0 0.0
    %1713 = vmatprep.subr.mxu0 0.0
    %1714 = vmatpush1.msra.mxu0 0.0
    %1715 = vmatprep.subr.mxu0 0.0
    %1716 = vmatpush1.msra.mxu0 0.0
    %1717 = vmatprep.subr.mxu0 0.0
    %1718 = vmatpush1.msra.mxu0 0.0
    %1719 = vmatprep.subr.mxu0 0.0
    %1720 = vmatpush1.msra.mxu0 0.0
    %1721 = vmatprep.subr.mxu0 0.0
    %1722 = vmatpush1.msra.mxu0 0.0
    %1723 = vmatprep.subr.mxu0 0.0
    %1724 = vmatpush1.msra.mxu0 0.0
    %1725 = vmatprep.subr.mxu0 0.0
    %1726 = vmatpush1.msra.mxu0 0.0
    %1727 = vmatprep.mubr.f32.mxu0 0.0
    %1728 = vmatmul.mubr.f32.gmra.mrb[0].mxu0 %v1661
    %v1729 = vpop.f32.mrb[0].mxu0
    %v1730 = vadd.f32 0.0, %v1729
    %v1731 = vpop.f32.mrb[0].mxu0
    %1732 = vdwg.mxu0
    %s1733 = scalar_lea.vmem %s21, 2
    %v1734 = vld [vmem:[%s1733] sm:$0x1]
    %v1736 = vlaneseq
    %v1737 = vshrl.u32 %v1736, 7
    %v1738 = vsub.s32 0, %v1737
    %v1739 = vrot.slane %v1734, %v1738
    %v1741 = vmul.f32 %v1730, %v1739
    %v1742 = vadd.f32 %v1657, %v1741
    %s1743 = scalar_lea.vmem %s19, 24
    %v1744 = vld [vmem:[%s1743] sm:$0x3f]
    %v1746 = vsel %vm1053, %v1744, 0
    %1748 = vmatprep.subr.mxu0 0.0
    %1749 = vmatpush1.msra.mxu0 %v1485
    %1750 = vmatprep.subr.mxu0 0.0
    %1751 = vmatpush1.msra.mxu0 %v1486
    %1752 = vmatprep.subr.mxu0 0.0
    %1753 = vmatpush1.msra.mxu0 %v1493
    %1754 = vmatprep.subr.mxu0 0.0
    %1755 = vmatpush1.msra.mxu0 0.0
    %1756 = vmatprep.subr.mxu0 0.0
    %1757 = vmatpush1.msra.mxu0 0.0
    %1758 = vmatprep.subr.mxu0 0.0
    %1759 = vmatpush1.msra.mxu0 0.0
    %1760 = vmatprep.subr.mxu0 0.0
    %1761 = vmatpush1.msra.mxu0 0.0
    %1762 = vmatprep.subr.mxu0 0.0
    %1763 = vmatpush1.msra.mxu0 0.0
    %1764 = vmatprep.subr.mxu0 0.0
    %1765 = vmatpush1.msra.mxu0 0.0
    %1766 = vmatprep.subr.mxu0 0.0
    %1767 = vmatpush1.msra.mxu0 0.0
    %1768 = vmatprep.subr.mxu0 0.0
    %1769 = vmatpush1.msra.mxu0 0.0
    %1770 = vmatprep.subr.mxu0 0.0
    %1771 = vmatpush1.msra.mxu0 0.0
    %1772 = vmatprep.subr.mxu0 0.0
    %1773 = vmatpush1.msra.mxu0 0.0
    %1774 = vmatprep.subr.mxu0 0.0
    %1775 = vmatpush1.msra.mxu0 0.0
    %1776 = vmatprep.subr.mxu0 0.0
    %1777 = vmatpush1.msra.mxu0 0.0
    %1778 = vmatprep.subr.mxu0 0.0
    %1779 = vmatpush1.msra.mxu0 0.0
    %1780 = vmatprep.subr.mxu0 0.0
    %1781 = vmatpush1.msra.mxu0 0.0
    %1782 = vmatprep.subr.mxu0 0.0
    %1783 = vmatpush1.msra.mxu0 0.0
    %1784 = vmatprep.subr.mxu0 0.0
    %1785 = vmatpush1.msra.mxu0 0.0
    %1786 = vmatprep.subr.mxu0 0.0
    %1787 = vmatpush1.msra.mxu0 0.0
    %1788 = vmatprep.subr.mxu0 0.0
    %1789 = vmatpush1.msra.mxu0 0.0
    %1790 = vmatprep.subr.mxu0 0.0
    %1791 = vmatpush1.msra.mxu0 0.0
    %1792 = vmatprep.subr.mxu0 0.0
    %1793 = vmatpush1.msra.mxu0 0.0
    %1794 = vmatprep.subr.mxu0 0.0
    %1795 = vmatpush1.msra.mxu0 0.0
    %1796 = vmatprep.subr.mxu0 0.0
    %1797 = vmatpush1.msra.mxu0 0.0
    %1798 = vmatprep.subr.mxu0 0.0
    %1799 = vmatpush1.msra.mxu0 0.0
    %1800 = vmatprep.subr.mxu0 0.0
    %1801 = vmatpush1.msra.mxu0 0.0
    %1802 = vmatprep.subr.mxu0 0.0
    %1803 = vmatpush1.msra.mxu0 0.0
    %1804 = vmatprep.subr.mxu0 0.0
    %1805 = vmatpush1.msra.mxu0 0.0
    %1806 = vmatprep.subr.mxu0 0.0
    %1807 = vmatpush1.msra.mxu0 0.0
    %1808 = vmatprep.subr.mxu0 0.0
    %1809 = vmatpush1.msra.mxu0 0.0
    %1810 = vmatprep.subr.mxu0 0.0
    %1811 = vmatpush1.msra.mxu0 0.0
    %1812 = vmatprep.mubr.f32.mxu0 0.0
    %1813 = vmatmul.mubr.f32.gmra.mrb[0].mxu0 %v1746
    %v1814 = vpop.f32.mrb[0].mxu0
    %v1815 = vadd.f32 0.0, %v1814
    %v1816 = vpop.f32.mrb[0].mxu0
    %1817 = vdwg.mxu0
    %s1818 = scalar_lea.vmem %s21, 3
    %v1819 = vld [vmem:[%s1818] sm:$0x1]
    %v1821 = vlaneseq
    %v1822 = vshrl.u32 %v1821, 7
    %v1823 = vsub.s32 0, %v1822
    %v1824 = vrot.slane %v1819, %v1823
    %v1826 = vmul.f32 %v1815, %v1824
    %v1827 = vadd.f32 %v1742, %v1826
    %s1828 = scalar_lea.vmem %s19, 32
    %v1829 = vld [vmem:[%s1828] sm:$0x3f]
    %v1831 = vsel %vm1053, %v1829, 0
    %1833 = vmatprep.subr.mxu0 0.0
    %1834 = vmatpush1.msra.mxu0 %v1485
    %1835 = vmatprep.subr.mxu0 0.0
    %1836 = vmatpush1.msra.mxu0 %v1486
    %1837 = vmatprep.subr.mxu0 0.0
    %1838 = vmatpush1.msra.mxu0 %v1493
    %1839 = vmatprep.subr.mxu0 0.0
    %1840 = vmatpush1.msra.mxu0 0.0
    %1841 = vmatprep.subr.mxu0 0.0
    %1842 = vmatpush1.msra.mxu0 0.0
    %1843 = vmatprep.subr.mxu0 0.0
    %1844 = vmatpush1.msra.mxu0 0.0
    %1845 = vmatprep.subr.mxu0 0.0
    %1846 = vmatpush1.msra.mxu0 0.0
    %1847 = vmatprep.subr.mxu0 0.0
    %1848 = vmatpush1.msra.mxu0 0.0
    %1849 = vmatprep.subr.mxu0 0.0
    %1850 = vmatpush1.msra.mxu0 0.0
    %1851 = vmatprep.subr.mxu0 0.0
    %1852 = vmatpush1.msra.mxu0 0.0
    %1853 = vmatprep.subr.mxu0 0.0
    %1854 = vmatpush1.msra.mxu0 0.0
    %1855 = vmatprep.subr.mxu0 0.0
    %1856 = vmatpush1.msra.mxu0 0.0
    %1857 = vmatprep.subr.mxu0 0.0
    %1858 = vmatpush1.msra.mxu0 0.0
    %1859 = vmatprep.subr.mxu0 0.0
    %1860 = vmatpush1.msra.mxu0 0.0
    %1861 = vmatprep.subr.mxu0 0.0
    %1862 = vmatpush1.msra.mxu0 0.0
    %1863 = vmatprep.subr.mxu0 0.0
    %1864 = vmatpush1.msra.mxu0 0.0
    %1865 = vmatprep.subr.mxu0 0.0
    %1866 = vmatpush1.msra.mxu0 0.0
    %1867 = vmatprep.subr.mxu0 0.0
    %1868 = vmatpush1.msra.mxu0 0.0
    %1869 = vmatprep.subr.mxu0 0.0
    %1870 = vmatpush1.msra.mxu0 0.0
    %1871 = vmatprep.subr.mxu0 0.0
    %1872 = vmatpush1.msra.mxu0 0.0
    %1873 = vmatprep.subr.mxu0 0.0
    %1874 = vmatpush1.msra.mxu0 0.0
    %1875 = vmatprep.subr.mxu0 0.0
    %1876 = vmatpush1.msra.mxu0 0.0
    %1877 = vmatprep.subr.mxu0 0.0
    %1878 = vmatpush1.msra.mxu0 0.0
    %1879 = vmatprep.subr.mxu0 0.0
    %1880 = vmatpush1.msra.mxu0 0.0
    %1881 = vmatprep.subr.mxu0 0.0
    %1882 = vmatpush1.msra.mxu0 0.0
    %1883 = vmatprep.subr.mxu0 0.0
    %1884 = vmatpush1.msra.mxu0 0.0
    %1885 = vmatprep.subr.mxu0 0.0
    %1886 = vmatpush1.msra.mxu0 0.0
    %1887 = vmatprep.subr.mxu0 0.0
    %1888 = vmatpush1.msra.mxu0 0.0
    %1889 = vmatprep.subr.mxu0 0.0
    %1890 = vmatpush1.msra.mxu0 0.0
    %1891 = vmatprep.subr.mxu0 0.0
    %1892 = vmatpush1.msra.mxu0 0.0
    %1893 = vmatprep.subr.mxu0 0.0
    %1894 = vmatpush1.msra.mxu0 0.0
    %1895 = vmatprep.subr.mxu0 0.0
    %1896 = vmatpush1.msra.mxu0 0.0
    %1897 = vmatprep.mubr.f32.mxu0 0.0
    %1898 = vmatmul.mubr.f32.gmra.mrb[0].mxu0 %v1831
    %v1899 = vpop.f32.mrb[0].mxu0
    %v1900 = vadd.f32 0.0, %v1899
    %v1901 = vpop.f32.mrb[0].mxu0
    %1902 = vdwg.mxu0
    %s1903 = scalar_lea.vmem %s21, 4
    %v1904 = vld [vmem:[%s1903] sm:$0x1]
    %v1906 = vlaneseq
    %v1907 = vshrl.u32 %v1906, 7
    %v1908 = vsub.s32 0, %v1907
    %v1909 = vrot.slane %v1904, %v1908
    %v1911 = vmul.f32 %v1900, %v1909
    %v1912 = vadd.f32 %v1827, %v1911
    %v1913 = vpack.c.bf16 %v1912, %v1912
    %v1914 = vld [vmem:[#allocation11] sm:$0xf]
    %v1915 = vld [vmem:[#allocation11 + $0x4] sm:$0xf]
    %v1916 = vld [vmem:[#allocation11 + $0x8] sm:$0xf]
    %v1917 = vld [vmem:[#allocation11 + $0xc] sm:$0xf]
    %v1918 = vld [vmem:[#allocation13] sm:$0x1]
    %v1920 = vlaneseq
    %v1921 = vshrl.u32 %v1920, 7
    %v1922 = vsub.s32 0, %v1921
    %v1923 = vrot.slane %v1918, %v1922
    %v1929 = vunpack.c.l.b16 %v1914
    %v1930 = vunpack.c.l.b16 %v1915
    %v1931 = vunpack.c.l.b16 %v1916
    %v1932 = vunpack.c.l.b16 %v1917
    %v1933 = vpack.c.b16 %v1930, %v1929
    %v1934 = vpack.c.b16 %v1932, %v1931
    %v1938 = vsel %vm414, %v1913, 0
    %1940 = vmatprep.subr.bf16.mxu0 0
    %1941 = vmatpush1.bf16.msra.mxu0 %v1933
    %1942 = vmatprep.subr.bf16.mxu0 0
    %1943 = vmatpush1.bf16.msra.mxu0 %v1934
    %1944 = vmatprep.subr.bf16.mxu0 0
    %1945 = vmatpush1.bf16.msra.mxu0 0
    %1946 = vmatprep.subr.bf16.mxu0 0
    %1947 = vmatpush1.bf16.msra.mxu0 0
    %1948 = vmatprep.subr.bf16.mxu0 0
    %1949 = vmatpush1.bf16.msra.mxu0 0
    %1950 = vmatprep.subr.bf16.mxu0 0
    %1951 = vmatpush1.bf16.msra.mxu0 0
    %1952 = vmatprep.subr.bf16.mxu0 0
    %1953 = vmatpush1.bf16.msra.mxu0 0
    %1954 = vmatprep.subr.bf16.mxu0 0
    %1955 = vmatpush1.bf16.msra.mxu0 0
    %1956 = vmatprep.subr.bf16.mxu0 0
    %1957 = vmatpush1.bf16.msra.mxu0 0
    %1958 = vmatprep.subr.bf16.mxu0 0
    %1959 = vmatpush1.bf16.msra.mxu0 0
    %1960 = vmatprep.subr.bf16.mxu0 0
    %1961 = vmatpush1.bf16.msra.mxu0 0
    %1962 = vmatprep.subr.bf16.mxu0 0
    %1963 = vmatpush1.bf16.msra.mxu0 0
    %1964 = vmatprep.subr.bf16.mxu0 0
    %1965 = vmatpush1.bf16.msra.mxu0 0
    %1966 = vmatprep.subr.bf16.mxu0 0
    %1967 = vmatpush1.bf16.msra.mxu0 0
    %1968 = vmatprep.subr.bf16.mxu0 0
    %1969 = vmatpush1.bf16.msra.mxu0 0
    %1970 = vmatprep.subr.bf16.mxu0 0
    %1971 = vmatpush1.bf16.msra.mxu0 0
    %1972 = vmatprep.mubr.bf16.mxu0 0
    %1973 = vmatmul.mubr.bf16.gmra.mrb[0].mxu0 %v1938
    %v1974 = vpop.f32.mrb[0].mxu0
    %v1975 = vadd.f32 %v1923, %v1974
    %v1976 = vpop.f32.mrb[0].mxu0
    %v1977 = vpop.f32.mrb[0].mxu0
    %v1978 = vpop.f32.mrb[0].mxu0
    %1979 = vdwg.mxu0
    %vm1980 = vcmp.ge.f32.partialorder %v1975, 0.0
    %s1981 = scalar_lea.vmem [#allocation13], 1
    %v1982 = vld [vmem:[%s1981] sm:$0x1]
    %v1984 = vlaneseq
    %v1985 = vshrl.u32 %v1984, 7
    %v1986 = vsub.s32 0, %v1985
    %v1987 = vrot.slane %v1982, %v1986
    %v1989 = vmul.f32 %v1975, %v1987
    %s1990 = scalar_lea.vmem [#allocation13], 2
    %v1991 = vld [vmem:[%s1990] sm:$0x1]
    %v1993 = vlaneseq
    %v1994 = vshrl.u32 %v1993, 7
    %v1995 = vsub.s32 0, %v1994
    %v1996 = vrot.slane %v1991, %v1995
    %v1998 = vmul.f32 %v1975, %v1996
    %v1999 = vsel %vm1980, %v1989, %v1998
    %s2000 = scalar_lea.vmem [#allocation13], 3
    %v2001 = vld [vmem:[%s2000] sm:$0x1]
    %v2003 = vlaneseq
    %v2004 = vshrl.u32 %v2003, 7
    %v2005 = vsub.s32 0, %v2004
    %v2006 = vrot.slane %v2001, %v2005
    %v2008 = vadd.f32 %v1999, %v2006
    %v2009 = vld [vmem:[%s27] sm:$0x3f]
    %vm2010 = vcmask 48128
    %v2012 = vsel %vm2010, %v2009, 0
    %vm2014 = vcmask 1045504
    %v2016 = vsel %vm2014, %v2008, 0
    %2018 = vmatprep.subr.mxu0 0.0
    %2019 = vmatpush1.msra.mxu0 %v2016
    %2020 = vmatprep.subr.mxu0 0.0
    %2021 = vmatpush1.msra.mxu0 0.0
    %2022 = vmatprep.subr.mxu0 0.0
    %2023 = vmatpush1.msra.mxu0 0.0
    %2024 = vmatprep.subr.mxu0 0.0
    %2025 = vmatpush1.msra.mxu0 0.0
    %2026 = vmatprep.subr.mxu0 0.0
    %2027 = vmatpush1.msra.mxu0 0.0
    %2028 = vmatprep.subr.mxu0 0.0
    %2029 = vmatpush1.msra.mxu0 0.0
    %2030 = vmatprep.subr.mxu0 0.0
    %2031 = vmatpush1.msra.mxu0 0.0
    %2032 = vmatprep.subr.mxu0 0.0
    %2033 = vmatpush1.msra.mxu0 0.0
    %2034 = vmatprep.subr.mxu0 0.0
    %2035 = vmatpush1.msra.mxu0 0.0
    %2036 = vmatprep.subr.mxu0 0.0
    %2037 = vmatpush1.msra.mxu0 0.0
    %2038 = vmatprep.subr.mxu0 0.0
    %2039 = vmatpush1.msra.mxu0 0.0
    %2040 = vmatprep.subr.mxu0 0.0
    %2041 = vmatpush1.msra.mxu0 0.0
    %2042 = vmatprep.subr.mxu0 0.0
    %2043 = vmatpush1.msra.mxu0 0.0
    %2044 = vmatprep.subr.mxu0 0.0
    %2045 = vmatpush1.msra.mxu0 0.0
    %2046 = vmatprep.subr.mxu0 0.0
    %2047 = vmatpush1.msra.mxu0 0.0
    %2048 = vmatprep.subr.mxu0 0.0
    %2049 = vmatpush1.msra.mxu0 0.0
    %2050 = vmatprep.subr.mxu0 0.0
    %2051 = vmatpush1.msra.mxu0 0.0
    %2052 = vmatprep.subr.mxu0 0.0
    %2053 = vmatpush1.msra.mxu0 0.0
    %2054 = vmatprep.subr.mxu0 0.0
    %2055 = vmatpush1.msra.mxu0 0.0
    %2056 = vmatprep.subr.mxu0 0.0
    %2057 = vmatpush1.msra.mxu0 0.0
    %2058 = vmatprep.subr.mxu0 0.0
    %2059 = vmatpush1.msra.mxu0 0.0
    %2060 = vmatprep.subr.mxu0 0.0
    %2061 = vmatpush1.msra.mxu0 0.0
    %2062 = vmatprep.subr.mxu0 0.0
    %2063 = vmatpush1.msra.mxu0 0.0
    %2064 = vmatprep.subr.mxu0 0.0
    %2065 = vmatpush1.msra.mxu0 0.0
    %2066 = vmatprep.subr.mxu0 0.0
    %2067 = vmatpush1.msra.mxu0 0.0
    %2068 = vmatprep.subr.mxu0 0.0
    %2069 = vmatpush1.msra.mxu0 0.0
    %2070 = vmatprep.subr.mxu0 0.0
    %2071 = vmatpush1.msra.mxu0 0.0
    %2072 = vmatprep.subr.mxu0 0.0
    %2073 = vmatpush1.msra.mxu0 0.0
    %2074 = vmatprep.subr.mxu0 0.0
    %2075 = vmatpush1.msra.mxu0 0.0
    %2076 = vmatprep.subr.mxu0 0.0
    %2077 = vmatpush1.msra.mxu0 0.0
    %2078 = vmatprep.subr.mxu0 0.0
    %2079 = vmatpush1.msra.mxu0 0.0
    %2080 = vmatprep.subr.mxu0 0.0
    %2081 = vmatpush1.msra.mxu0 0.0
    %2082 = vmatprep.mubr.f32.mxu0 0.0
    %2083 = vmatmul.mubr.f32.gmra.mrb[0].mxu0 %v2012
    %v2084 = vpop.f32.mrb[0].mxu0
    %v2085 = vadd.f32 0.0, %v2084
    %v2086 = vpop.f32.mrb[0].mxu0
    %2087 = vdwg.mxu0
    %v2088 = vld [vmem:[#allocation14] sm:$0x1]
    %v2090 = vlaneseq
    %v2091 = vshrl.u32 %v2090, 7
    %v2092 = vsub.s32 0, %v2091
    %v2093 = vrot.slane %v2088, %v2092
    %v2095 = vmul.f32 %v2085, %v2093
    %s2096 = scalar_lea.vmem %s27, 8
    %v2097 = vld [vmem:[%s2096] sm:$0x3f]
    %v2099 = vsel %vm2010, %v2097, 0
    %2101 = vmatprep.subr.mxu0 0.0
    %2102 = vmatpush1.msra.mxu0 %v2016
    %2103 = vmatprep.subr.mxu0 0.0
    %2104 = vmatpush1.msra.mxu0 0.0
    %2105 = vmatprep.subr.mxu0 0.0
    %2106 = vmatpush1.msra.mxu0 0.0
    %2107 = vmatprep.subr.mxu0 0.0
    %2108 = vmatpush1.msra.mxu0 0.0
    %2109 = vmatprep.subr.mxu0 0.0
    %2110 = vmatpush1.msra.mxu0 0.0
    %2111 = vmatprep.subr.mxu0 0.0
    %2112 = vmatpush1.msra.mxu0 0.0
    %2113 = vmatprep.subr.mxu0 0.0
    %2114 = vmatpush1.msra.mxu0 0.0
    %2115 = vmatprep.subr.mxu0 0.0
    %2116 = vmatpush1.msra.mxu0 0.0
    %2117 = vmatprep.subr.mxu0 0.0
    %2118 = vmatpush1.msra.mxu0 0.0
    %2119 = vmatprep.subr.mxu0 0.0
    %2120 = vmatpush1.msra.mxu0 0.0
    %2121 = vmatprep.subr.mxu0 0.0
    %2122 = vmatpush1.msra.mxu0 0.0
    %2123 = vmatprep.subr.mxu0 0.0
    %2124 = vmatpush1.msra.mxu0 0.0
    %2125 = vmatprep.subr.mxu0 0.0
    %2126 = vmatpush1.msra.mxu0 0.0
    %2127 = vmatprep.subr.mxu0 0.0
    %2128 = vmatpush1.msra.mxu0 0.0
    %2129 = vmatprep.subr.mxu0 0.0
    %2130 = vmatpush1.msra.mxu0 0.0
    %2131 = vmatprep.subr.mxu0 0.0
    %2132 = vmatpush1.msra.mxu0 0.0
    %2133 = vmatprep.subr.mxu0 0.0
    %2134 = vmatpush1.msra.mxu0 0.0
    %2135 = vmatprep.subr.mxu0 0.0
    %2136 = vmatpush1.msra.mxu0 0.0
    %2137 = vmatprep.subr.mxu0 0.0
    %2138 = vmatpush1.msra.mxu0 0.0
    %2139 = vmatprep.subr.mxu0 0.0
    %2140 = vmatpush1.msra.mxu0 0.0
    %2141 = vmatprep.subr.mxu0 0.0
    %2142 = vmatpush1.msra.mxu0 0.0
    %2143 = vmatprep.subr.mxu0 0.0
    %2144 = vmatpush1.msra.mxu0 0.0
    %2145 = vmatprep.subr.mxu0 0.0
    %2146 = vmatpush1.msra.mxu0 0.0
    %2147 = vmatprep.subr.mxu0 0.0
    %2148 = vmatpush1.msra.mxu0 0.0
    %2149 = vmatprep.subr.mxu0 0.0
    %2150 = vmatpush1.msra.mxu0 0.0
    %2151 = vmatprep.subr.mxu0 0.0
    %2152 = vmatpush1.msra.mxu0 0.0
    %2153 = vmatprep.subr.mxu0 0.0
    %2154 = vmatpush1.msra.mxu0 0.0
    %2155 = vmatprep.subr.mxu0 0.0
    %2156 = vmatpush1.msra.mxu0 0.0
    %2157 = vmatprep.subr.mxu0 0.0
    %2158 = vmatpush1.msra.mxu0 0.0
    %2159 = vmatprep.subr.mxu0 0.0
    %2160 = vmatpush1.msra.mxu0 0.0
    %2161 = vmatprep.subr.mxu0 0.0
    %2162 = vmatpush1.msra.mxu0 0.0
    %2163 = vmatprep.subr.mxu0 0.0
    %2164 = vmatpush1.msra.mxu0 0.0
    %2165 = vmatprep.mubr.f32.mxu0 0.0
    %2166 = vmatmul.mubr.f32.gmra.mrb[0].mxu0 %v2099
    %v2167 = vpop.f32.mrb[0].mxu0
    %v2168 = vadd.f32 0.0, %v2167
    %v2169 = vpop.f32.mrb[0].mxu0
    %2170 = vdwg.mxu0
    %s2171 = scalar_lea.vmem [#allocation14], 1
    %v2172 = vld [vmem:[%s2171] sm:$0x1]
    %v2174 = vlaneseq
    %v2175 = vshrl.u32 %v2174, 7
    %v2176 = vsub.s32 0, %v2175
    %v2177 = vrot.slane %v2172, %v2176
    %v2179 = vmul.f32 %v2168, %v2177
    %v2180 = vadd.f32 %v2095, %v2179
    %s2181 = scalar_lea.vmem %s27, 16
    %v2182 = vld [vmem:[%s2181] sm:$0x3f]
    %v2184 = vsel %vm2010, %v2182, 0
    %2186 = vmatprep.subr.mxu0 0.0
    %2187 = vmatpush1.msra.mxu0 %v2016
    %2188 = vmatprep.subr.mxu0 0.0
    %2189 = vmatpush1.msra.mxu0 0.0
    %2190 = vmatprep.subr.mxu0 0.0
    %2191 = vmatpush1.msra.mxu0 0.0
    %2192 = vmatprep.subr.mxu0 0.0
    %2193 = vmatpush1.msra.mxu0 0.0
    %2194 = vmatprep.subr.mxu0 0.0
    %2195 = vmatpush1.msra.mxu0 0.0
    %2196 = vmatprep.subr.mxu0 0.0
    %2197 = vmatpush1.msra.mxu0 0.0
    %2198 = vmatprep.subr.mxu0 0.0
    %2199 = vmatpush1.msra.mxu0 0.0
    %2200 = vmatprep.subr.mxu0 0.0
    %2201 = vmatpush1.msra.mxu0 0.0
    %2202 = vmatprep.subr.mxu0 0.0
    %2203 = vmatpush1.msra.mxu0 0.0
    %2204 = vmatprep.subr.mxu0 0.0
    %2205 = vmatpush1.msra.mxu0 0.0
    %2206 = vmatprep.subr.mxu0 0.0
    %2207 = vmatpush1.msra.mxu0 0.0
    %2208 = vmatprep.subr.mxu0 0.0
    %2209 = vmatpush1.msra.mxu0 0.0
    %2210 = vmatprep.subr.mxu0 0.0
    %2211 = vmatpush1.msra.mxu0 0.0
    %2212 = vmatprep.subr.mxu0 0.0
    %2213 = vmatpush1.msra.mxu0 0.0
    %2214 = vmatprep.subr.mxu0 0.0
    %2215 = vmatpush1.msra.mxu0 0.0
    %2216 = vmatprep.subr.mxu0 0.0
    %2217 = vmatpush1.msra.mxu0 0.0
    %2218 = vmatprep.subr.mxu0 0.0
    %2219 = vmatpush1.msra.mxu0 0.0
    %2220 = vmatprep.subr.mxu0 0.0
    %2221 = vmatpush1.msra.mxu0 0.0
    %2222 = vmatprep.subr.mxu0 0.0
    %2223 = vmatpush1.msra.mxu0 0.0
    %2224 = vmatprep.subr.mxu0 0.0
    %2225 = vmatpush1.msra.mxu0 0.0
    %2226 = vmatprep.subr.mxu0 0.0
    %2227 = vmatpush1.msra.mxu0 0.0
    %2228 = vmatprep.subr.mxu0 0.0
    %2229 = vmatpush1.msra.mxu0 0.0
    %2230 = vmatprep.subr.mxu0 0.0
    %2231 = vmatpush1.msra.mxu0 0.0
    %2232 = vmatprep.subr.mxu0 0.0
    %2233 = vmatpush1.msra.mxu0 0.0
    %2234 = vmatprep.subr.mxu0 0.0
    %2235 = vmatpush1.msra.mxu0 0.0
    %2236 = vmatprep.subr.mxu0 0.0
    %2237 = vmatpush1.msra.mxu0 0.0
    %2238 = vmatprep.subr.mxu0 0.0
    %2239 = vmatpush1.msra.mxu0 0.0
    %2240 = vmatprep.subr.mxu0 0.0
    %2241 = vmatpush1.msra.mxu0 0.0
    %2242 = vmatprep.subr.mxu0 0.0
    %2243 = vmatpush1.msra.mxu0 0.0
    %2244 = vmatprep.subr.mxu0 0.0
    %2245 = vmatpush1.msra.mxu0 0.0
    %2246 = vmatprep.subr.mxu0 0.0
    %2247 = vmatpush1.msra.mxu0 0.0
    %2248 = vmatprep.subr.mxu0 0.0
    %2249 = vmatpush1.msra.mxu0 0.0
    %2250 = vmatprep.mubr.f32.mxu0 0.0
    %2251 = vmatmul.mubr.f32.gmra.mrb[0].mxu0 %v2184
    %v2252 = vpop.f32.mrb[0].mxu0
    %v2253 = vadd.f32 0.0, %v2252
    %v2254 = vpop.f32.mrb[0].mxu0
    %2255 = vdwg.mxu0
    %s2256 = scalar_lea.vmem [#allocation14], 2
    %v2257 = vld [vmem:[%s2256] sm:$0x1]
    %v2259 = vlaneseq
    %v2260 = vshrl.u32 %v2259, 7
    %v2261 = vsub.s32 0, %v2260
    %v2262 = vrot.slane %v2257, %v2261
    %v2264 = vmul.f32 %v2253, %v2262
    %v2265 = vadd.f32 %v2180, %v2264
    %v2266 = vpack.c.bf16 %v2265, %v2265
    %v2267 = vld [vmem:[%s31] sm:$0xf]
    %v2268 = vld [vmem:[%s31 + $0x4] sm:$0xf]
    %v2269 = vld [vmem:[%s31 + $0x8] sm:$0xf]
    %v2270 = vld [vmem:[%s31 + $0xc] sm:$0xf]
    %v2271 = vld [vmem:[%s31 + $0x10] sm:$0xf]
    %v2272 = vld [vmem:[%s31 + $0x14] sm:$0xf]
    %v2273 = vld [vmem:[%s31 + $0x18] sm:$0xf]
    %v2274 = vld [vmem:[%s31 + $0x1c] sm:$0xf]
    %v2275 = vld [vmem:[#allocation16] sm:$0x1]
    %v2277 = vlaneseq
    %v2278 = vshrl.u32 %v2277, 7
    %v2279 = vsub.s32 0, %v2278
    %v2280 = vrot.slane %v2275, %v2279
    %v2290 = vunpack.c.l.b16 %v2267
    %v2291 = vunpack.c.l.b16 %v2268
    %v2292 = vunpack.c.l.b16 %v2269
    %v2293 = vunpack.c.l.b16 %v2270
    %v2294 = vunpack.c.l.b16 %v2271
    %v2295 = vunpack.c.l.b16 %v2272
    %v2296 = vunpack.c.l.b16 %v2273
    %v2297 = vunpack.c.l.b16 %v2274
    %v2298 = vpack.c.b16 %v2291, %v2290
    %v2299 = vpack.c.b16 %v2293, %v2292
    %v2300 = vpack.c.b16 %v2295, %v2294
    %v2301 = vpack.c.b16 %v2297, %v2296
    %vm2306 = vcmask 523264
    %v2308 = vsel %vm2306, %v2266, 0
    %2310 = vmatprep.subr.bf16.mxu0 0
    %2311 = vmatpush1.bf16.msra.mxu0 %v2298
    %2312 = vmatprep.subr.bf16.mxu0 0
    %2313 = vmatpush1.bf16.msra.mxu0 %v2299
    %2314 = vmatprep.subr.bf16.mxu0 0
    %2315 = vmatpush1.bf16.msra.mxu0 %v2300
    %2316 = vmatprep.subr.bf16.mxu0 0
    %2317 = vmatpush1.bf16.msra.mxu0 %v2301
    %2318 = vmatprep.subr.bf16.mxu0 0
    %2319 = vmatpush1.bf16.msra.mxu0 0
    %2320 = vmatprep.subr.bf16.mxu0 0
    %2321 = vmatpush1.bf16.msra.mxu0 0
    %2322 = vmatprep.subr.bf16.mxu0 0
    %2323 = vmatpush1.bf16.msra.mxu0 0
    %2324 = vmatprep.subr.bf16.mxu0 0
    %2325 = vmatpush1.bf16.msra.mxu0 0
    %2326 = vmatprep.subr.bf16.mxu0 0
    %2327 = vmatpush1.bf16.msra.mxu0 0
    %2328 = vmatprep.subr.bf16.mxu0 0
    %2329 = vmatpush1.bf16.msra.mxu0 0
    %2330 = vmatprep.subr.bf16.mxu0 0
    %2331 = vmatpush1.bf16.msra.mxu0 0
    %2332 = vmatprep.subr.bf16.mxu0 0
    %2333 = vmatpush1.bf16.msra.mxu0 0
    %2334 = vmatprep.subr.bf16.mxu0 0
    %2335 = vmatpush1.bf16.msra.mxu0 0
    %2336 = vmatprep.subr.bf16.mxu0 0
    %2337 = vmatpush1.bf16.msra.mxu0 0
    %2338 = vmatprep.subr.bf16.mxu0 0
    %2339 = vmatpush1.bf16.msra.mxu0 0
    %2340 = vmatprep.subr.bf16.mxu0 0
    %2341 = vmatpush1.bf16.msra.mxu0 0
    %2342 = vmatprep.mubr.bf16.mxu0 0
    %2343 = vmatmul.mubr.bf16.gmra.mrb[0].mxu0 %v2308
    %v2344 = vpop.f32.mrb[0].mxu0
    %v2345 = vadd.f32 %v2280, %v2344
    %v2346 = vpop.f32.mrb[0].mxu0
    %v2347 = vpop.f32.mrb[0].mxu0
    %v2348 = vpop.f32.mrb[0].mxu0
    %2349 = vdwg.mxu0
    %vm2350 = vcmp.ge.f32.partialorder %v2345, 0.0
    %s2351 = scalar_lea.vmem [#allocation16], 1
    %v2352 = vld [vmem:[%s2351] sm:$0x1]
    %v2354 = vlaneseq
    %v2355 = vshrl.u32 %v2354, 7
    %v2356 = vsub.s32 0, %v2355
    %v2357 = vrot.slane %v2352, %v2356
    %v2359 = vmul.f32 %v2345, %v2357
    %s2360 = scalar_lea.vmem [#allocation16], 2
    %v2361 = vld [vmem:[%s2360] sm:$0x1]
    %v2363 = vlaneseq
    %v2364 = vshrl.u32 %v2363, 7
    %v2365 = vsub.s32 0, %v2364
    %v2366 = vrot.slane %v2361, %v2365
    %v2368 = vmul.f32 %v2345, %v2366
    %v2369 = vsel %vm2350, %v2359, %v2368
    %s2370 = scalar_lea.vmem [#allocation16], 3
    %v2371 = vld [vmem:[%s2370] sm:$0x1]
    %v2373 = vlaneseq
    %v2374 = vshrl.u32 %v2373, 7
    %v2375 = vsub.s32 0, %v2374
    %v2376 = vrot.slane %v2371, %v2375
    %v2378 = vadd.f32 %v2369, %v2376
    %v2379 = vld [vmem:[#allocation17] sm:$0x3]
    %v2381 = vsel %vm2010, %v2379, 0
    %v2384 = vsel %vm2014, %v2378, 0
    %2386 = vmatprep.subr.mxu0 0.0
    %2387 = vmatpush1.msra.mxu0 %v2384
    %2388 = vmatprep.subr.mxu0 0.0
    %2389 = vmatpush1.msra.mxu0 0.0
    %2390 = vmatprep.subr.mxu0 0.0
    %2391 = vmatpush1.msra.mxu0 0.0
    %2392 = vmatprep.subr.mxu0 0.0
    %2393 = vmatpush1.msra.mxu0 0.0
    %2394 = vmatprep.subr.mxu0 0.0
    %2395 = vmatpush1.msra.mxu0 0.0
    %2396 = vmatprep.subr.mxu0 0.0
    %2397 = vmatpush1.msra.mxu0 0.0
    %2398 = vmatprep.subr.mxu0 0.0
    %2399 = vmatpush1.msra.mxu0 0.0
    %2400 = vmatprep.subr.mxu0 0.0
    %2401 = vmatpush1.msra.mxu0 0.0
    %2402 = vmatprep.subr.mxu0 0.0
    %2403 = vmatpush1.msra.mxu0 0.0
    %2404 = vmatprep.subr.mxu0 0.0
    %2405 = vmatpush1.msra.mxu0 0.0
    %2406 = vmatprep.subr.mxu0 0.0
    %2407 = vmatpush1.msra.mxu0 0.0
    %2408 = vmatprep.subr.mxu0 0.0
    %2409 = vmatpush1.msra.mxu0 0.0
    %2410 = vmatprep.subr.mxu0 0.0
    %2411 = vmatpush1.msra.mxu0 0.0
    %2412 = vmatprep.subr.mxu0 0.0
    %2413 = vmatpush1.msra.mxu0 0.0
    %2414 = vmatprep.subr.mxu0 0.0
    %2415 = vmatpush1.msra.mxu0 0.0
    %2416 = vmatprep.subr.mxu0 0.0
    %2417 = vmatpush1.msra.mxu0 0.0
    %2418 = vmatprep.subr.mxu0 0.0
    %2419 = vmatpush1.msra.mxu0 0.0
    %2420 = vmatprep.subr.mxu0 0.0
    %2421 = vmatpush1.msra.mxu0 0.0
    %2422 = vmatprep.subr.mxu0 0.0
    %2423 = vmatpush1.msra.mxu0 0.0
    %2424 = vmatprep.subr.mxu0 0.0
    %2425 = vmatpush1.msra.mxu0 0.0
    %2426 = vmatprep.subr.mxu0 0.0
    %2427 = vmatpush1.msra.mxu0 0.0
    %2428 = vmatprep.subr.mxu0 0.0
    %2429 = vmatpush1.msra.mxu0 0.0
    %2430 = vmatprep.subr.mxu0 0.0
    %2431 = vmatpush1.msra.mxu0 0.0
    %2432 = vmatprep.subr.mxu0 0.0
    %2433 = vmatpush1.msra.mxu0 0.0
    %2434 = vmatprep.subr.mxu0 0.0
    %2435 = vmatpush1.msra.mxu0 0.0
    %2436 = vmatprep.subr.mxu0 0.0
    %2437 = vmatpush1.msra.mxu0 0.0
    %2438 = vmatprep.subr.mxu0 0.0
    %2439 = vmatpush1.msra.mxu0 0.0
    %2440 = vmatprep.subr.mxu0 0.0
    %2441 = vmatpush1.msra.mxu0 0.0
    %2442 = vmatprep.subr.mxu0 0.0
    %2443 = vmatpush1.msra.mxu0 0.0
    %2444 = vmatprep.subr.mxu0 0.0
    %2445 = vmatpush1.msra.mxu0 0.0
    %2446 = vmatprep.subr.mxu0 0.0
    %2447 = vmatpush1.msra.mxu0 0.0
    %2448 = vmatprep.subr.mxu0 0.0
    %2449 = vmatpush1.msra.mxu0 0.0
    %2450 = vmatprep.mubr.f32.mxu0 0.0
    %2451 = vmatmul.mubr.f32.gmra.mrb[0].mxu0 %v2381
    %v2452 = vpop.f32.mrb[0].mxu0
    %v2453 = vadd.f32 0.0, %v2452
    %v2454 = vpop.f32.mrb[0].mxu0
    %2455 = vdwg.mxu0
    %v2456 = vld [vmem:[#allocation19] sm:$0x1]
    %v2458 = vlaneseq
    %v2459 = vshrl.u32 %v2458, 7
    %v2460 = vsub.s32 0, %v2459
    %v2461 = vrot.slane %v2456, %v2460
    %v2463 = vmul.f32 %v2453, %v2461
    %s2464 = scalar_lea.vmem [#allocation17], 2
    %v2465 = vld [vmem:[%s2464] sm:$0x3]
    %v2467 = vsel %vm2010, %v2465, 0
    %2469 = vmatprep.subr.mxu0 0.0
    %2470 = vmatpush1.msra.mxu0 %v2384
    %2471 = vmatprep.subr.mxu0 0.0
    %2472 = vmatpush1.msra.mxu0 0.0
    %2473 = vmatprep.subr.mxu0 0.0
    %2474 = vmatpush1.msra.mxu0 0.0
    %2475 = vmatprep.subr.mxu0 0.0
    %2476 = vmatpush1.msra.mxu0 0.0
    %2477 = vmatprep.subr.mxu0 0.0
    %2478 = vmatpush1.msra.mxu0 0.0
    %2479 = vmatprep.subr.mxu0 0.0
    %2480 = vmatpush1.msra.mxu0 0.0
    %2481 = vmatprep.subr.mxu0 0.0
    %2482 = vmatpush1.msra.mxu0 0.0
    %2483 = vmatprep.subr.mxu0 0.0
    %2484 = vmatpush1.msra.mxu0 0.0
    %2485 = vmatprep.subr.mxu0 0.0
    %2486 = vmatpush1.msra.mxu0 0.0
    %2487 = vmatprep.subr.mxu0 0.0
    %2488 = vmatpush1.msra.mxu0 0.0
    %2489 = vmatprep.subr.mxu0 0.0
    %2490 = vmatpush1.msra.mxu0 0.0
    %2491 = vmatprep.subr.mxu0 0.0
    %2492 = vmatpush1.msra.mxu0 0.0
    %2493 = vmatprep.subr.mxu0 0.0
    %2494 = vmatpush1.msra.mxu0 0.0
    %2495 = vmatprep.subr.mxu0 0.0
    %2496 = vmatpush1.msra.mxu0 0.0
    %2497 = vmatprep.subr.mxu0 0.0
    %2498 = vmatpush1.msra.mxu0 0.0
    %2499 = vmatprep.subr.mxu0 0.0
    %2500 = vmatpush1.msra.mxu0 0.0
    %2501 = vmatprep.subr.mxu0 0.0
    %2502 = vmatpush1.msra.mxu0 0.0
    %2503 = vmatprep.subr.mxu0 0.0
    %2504 = vmatpush1.msra.mxu0 0.0
    %2505 = vmatprep.subr.mxu0 0.0
    %2506 = vmatpush1.msra.mxu0 0.0
    %2507 = vmatprep.subr.mxu0 0.0
    %2508 = vmatpush1.msra.mxu0 0.0
    %2509 = vmatprep.subr.mxu0 0.0
    %2510 = vmatpush1.msra.mxu0 0.0
    %2511 = vmatprep.subr.mxu0 0.0
    %2512 = vmatpush1.msra.mxu0 0.0
    %2513 = vmatprep.subr.mxu0 0.0
    %2514 = vmatpush1.msra.mxu0 0.0
    %2515 = vmatprep.subr.mxu0 0.0
    %2516 = vmatpush1.msra.mxu0 0.0
    %2517 = vmatprep.subr.mxu0 0.0
    %2518 = vmatpush1.msra.mxu0 0.0
    %2519 = vmatprep.subr.mxu0 0.0
    %2520 = vmatpush1.msra.mxu0 0.0
    %2521 = vmatprep.subr.mxu0 0.0
    %2522 = vmatpush1.msra.mxu0 0.0
    %2523 = vmatprep.subr.mxu0 0.0
    %2524 = vmatpush1.msra.mxu0 0.0
    %2525 = vmatprep.subr.mxu0 0.0
    %2526 = vmatpush1.msra.mxu0 0.0
    %2527 = vmatprep.subr.mxu0 0.0
    %2528 = vmatpush1.msra.mxu0 0.0
    %2529 = vmatprep.subr.mxu0 0.0
    %2530 = vmatpush1.msra.mxu0 0.0
    %2531 = vmatprep.subr.mxu0 0.0
    %2532 = vmatpush1.msra.mxu0 0.0
    %2533 = vmatprep.mubr.f32.mxu0 0.0
    %2534 = vmatmul.mubr.f32.gmra.mrb[0].mxu0 %v2467
    %v2535 = vpop.f32.mrb[0].mxu0
    %v2536 = vadd.f32 0.0, %v2535
    %v2537 = vpop.f32.mrb[0].mxu0
    %2538 = vdwg.mxu0
    %s2539 = scalar_lea.vmem [#allocation19], 1
    %v2540 = vld [vmem:[%s2539] sm:$0x1]
    %v2542 = vlaneseq
    %v2543 = vshrl.u32 %v2542, 7
    %v2544 = vsub.s32 0, %v2543
    %v2545 = vrot.slane %v2540, %v2544
    %v2547 = vmul.f32 %v2536, %v2545
    %v2548 = vadd.f32 %v2463, %v2547
    %s2549 = scalar_lea.vmem [#allocation17], 4
    %v2550 = vld [vmem:[%s2549] sm:$0x3]
    %v2552 = vsel %vm2010, %v2550, 0
    %2554 = vmatprep.subr.mxu0 0.0
    %2555 = vmatpush1.msra.mxu0 %v2384
    %2556 = vmatprep.subr.mxu0 0.0
    %2557 = vmatpush1.msra.mxu0 0.0
    %2558 = vmatprep.subr.mxu0 0.0
    %2559 = vmatpush1.msra.mxu0 0.0
    %2560 = vmatprep.subr.mxu0 0.0
    %2561 = vmatpush1.msra.mxu0 0.0
    %2562 = vmatprep.subr.mxu0 0.0
    %2563 = vmatpush1.msra.mxu0 0.0
    %2564 = vmatprep.subr.mxu0 0.0
    %2565 = vmatpush1.msra.mxu0 0.0
    %2566 = vmatprep.subr.mxu0 0.0
    %2567 = vmatpush1.msra.mxu0 0.0
    %2568 = vmatprep.subr.mxu0 0.0
    %2569 = vmatpush1.msra.mxu0 0.0
    %2570 = vmatprep.subr.mxu0 0.0
    %2571 = vmatpush1.msra.mxu0 0.0
    %2572 = vmatprep.subr.mxu0 0.0
    %2573 = vmatpush1.msra.mxu0 0.0
    %2574 = vmatprep.subr.mxu0 0.0
    %2575 = vmatpush1.msra.mxu0 0.0
    %2576 = vmatprep.subr.mxu0 0.0
    %2577 = vmatpush1.msra.mxu0 0.0
    %2578 = vmatprep.subr.mxu0 0.0
    %2579 = vmatpush1.msra.mxu0 0.0
    %2580 = vmatprep.subr.mxu0 0.0
    %2581 = vmatpush1.msra.mxu0 0.0
    %2582 = vmatprep.subr.mxu0 0.0
    %2583 = vmatpush1.msra.mxu0 0.0
    %2584 = vmatprep.subr.mxu0 0.0
    %2585 = vmatpush1.msra.mxu0 0.0
    %2586 = vmatprep.subr.mxu0 0.0
    %2587 = vmatpush1.msra.mxu0 0.0
    %2588 = vmatprep.subr.mxu0 0.0
    %2589 = vmatpush1.msra.mxu0 0.0
    %2590 = vmatprep.subr.mxu0 0.0
    %2591 = vmatpush1.msra.mxu0 0.0
    %2592 = vmatprep.subr.mxu0 0.0
    %2593 = vmatpush1.msra.mxu0 0.0
    %2594 = vmatprep.subr.mxu0 0.0
    %2595 = vmatpush1.msra.mxu0 0.0
    %2596 = vmatprep.subr.mxu0 0.0
    %2597 = vmatpush1.msra.mxu0 0.0
    %2598 = vmatprep.subr.mxu0 0.0
    %2599 = vmatpush1.msra.mxu0 0.0
    %2600 = vmatprep.subr.mxu0 0.0
    %2601 = vmatpush1.msra.mxu0 0.0
    %2602 = vmatprep.subr.mxu0 0.0
    %2603 = vmatpush1.msra.mxu0 0.0
    %2604 = vmatprep.subr.mxu0 0.0
    %2605 = vmatpush1.msra.mxu0 0.0
    %2606 = vmatprep.subr.mxu0 0.0
    %2607 = vmatpush1.msra.mxu0 0.0
    %2608 = vmatprep.subr.mxu0 0.0
    %2609 = vmatpush1.msra.mxu0 0.0
    %2610 = vmatprep.subr.mxu0 0.0
    %2611 = vmatpush1.msra.mxu0 0.0
    %2612 = vmatprep.subr.mxu0 0.0
    %2613 = vmatpush1.msra.mxu0 0.0
    %2614 = vmatprep.subr.mxu0 0.0
    %2615 = vmatpush1.msra.mxu0 0.0
    %2616 = vmatprep.subr.mxu0 0.0
    %2617 = vmatpush1.msra.mxu0 0.0
    %2618 = vmatprep.mubr.f32.mxu0 0.0
    %2619 = vmatmul.mubr.f32.gmra.mrb[0].mxu0 %v2552
    %v2620 = vpop.f32.mrb[0].mxu0
    %v2621 = vadd.f32 0.0, %v2620
    %v2622 = vpop.f32.mrb[0].mxu0
    %2623 = vdwg.mxu0
    %s2624 = scalar_lea.vmem [#allocation19], 2
    %v2625 = vld [vmem:[%s2624] sm:$0x1]
    %v2627 = vlaneseq
    %v2628 = vshrl.u32 %v2627, 7
    %v2629 = vsub.s32 0, %v2628
    %v2630 = vrot.slane %v2625, %v2629
    %v2632 = vmul.f32 %v2621, %v2630
    %v2633 = vadd.f32 %v2548, %v2632
    %s2634 = scalar_lea.vmem [#allocation17], 6
    %v2635 = vld [vmem:[%s2634] sm:$0x3]
    %v2637 = vsel %vm2010, %v2635, 0
    %2639 = vmatprep.subr.mxu0 0.0
    %2640 = vmatpush1.msra.mxu0 %v2384
    %2641 = vmatprep.subr.mxu0 0.0
    %2642 = vmatpush1.msra.mxu0 0.0
    %2643 = vmatprep.subr.mxu0 0.0
    %2644 = vmatpush1.msra.mxu0 0.0
    %2645 = vmatprep.subr.mxu0 0.0
    %2646 = vmatpush1.msra.mxu0 0.0
    %2647 = vmatprep.subr.mxu0 0.0
    %2648 = vmatpush1.msra.mxu0 0.0
    %2649 = vmatprep.subr.mxu0 0.0
    %2650 = vmatpush1.msra.mxu0 0.0
    %2651 = vmatprep.subr.mxu0 0.0
    %2652 = vmatpush1.msra.mxu0 0.0
    %2653 = vmatprep.subr.mxu0 0.0
    %2654 = vmatpush1.msra.mxu0 0.0
    %2655 = vmatprep.subr.mxu0 0.0
    %2656 = vmatpush1.msra.mxu0 0.0
    %2657 = vmatprep.subr.mxu0 0.0
    %2658 = vmatpush1.msra.mxu0 0.0
    %2659 = vmatprep.subr.mxu0 0.0
    %2660 = vmatpush1.msra.mxu0 0.0
    %2661 = vmatprep.subr.mxu0 0.0
    %2662 = vmatpush1.msra.mxu0 0.0
    %2663 = vmatprep.subr.mxu0 0.0
    %2664 = vmatpush1.msra.mxu0 0.0
    %2665 = vmatprep.subr.mxu0 0.0
    %2666 = vmatpush1.msra.mxu0 0.0
    %2667 = vmatprep.subr.mxu0 0.0
    %2668 = vmatpush1.msra.mxu0 0.0
    %2669 = vmatprep.subr.mxu0 0.0
    %2670 = vmatpush1.msra.mxu0 0.0
    %2671 = vmatprep.subr.mxu0 0.0
    %2672 = vmatpush1.msra.mxu0 0.0
    %2673 = vmatprep.subr.mxu0 0.0
    %2674 = vmatpush1.msra.mxu0 0.0
    %2675 = vmatprep.subr.mxu0 0.0
    %2676 = vmatpush1.msra.mxu0 0.0
    %2677 = vmatprep.subr.mxu0 0.0
    %2678 = vmatpush1.msra.mxu0 0.0
    %2679 = vmatprep.subr.mxu0 0.0
    %2680 = vmatpush1.msra.mxu0 0.0
    %2681 = vmatprep.subr.mxu0 0.0
    %2682 = vmatpush1.msra.mxu0 0.0
    %2683 = vmatprep.subr.mxu0 0.0
    %2684 = vmatpush1.msra.mxu0 0.0
    %2685 = vmatprep.subr.mxu0 0.0
    %2686 = vmatpush1.msra.mxu0 0.0
    %2687 = vmatprep.subr.mxu0 0.0
    %2688 = vmatpush1.msra.mxu0 0.0
    %2689 = vmatprep.subr.mxu0 0.0
    %2690 = vmatpush1.msra.mxu0 0.0
    %2691 = vmatprep.subr.mxu0 0.0
    %2692 = vmatpush1.msra.mxu0 0.0
    %2693 = vmatprep.subr.mxu0 0.0
    %2694 = vmatpush1.msra.mxu0 0.0
    %2695 = vmatprep.subr.mxu0 0.0
    %2696 = vmatpush1.msra.mxu0 0.0
    %2697 = vmatprep.subr.mxu0 0.0
    %2698 = vmatpush1.msra.mxu0 0.0
    %2699 = vmatprep.subr.mxu0 0.0
    %2700 = vmatpush1.msra.mxu0 0.0
    %2701 = vmatprep.subr.mxu0 0.0
    %2702 = vmatpush1.msra.mxu0 0.0
    %2703 = vmatprep.mubr.f32.mxu0 0.0
    %2704 = vmatmul.mubr.f32.gmra.mrb[0].mxu0 %v2637
    %v2705 = vpop.f32.mrb[0].mxu0
    %v2706 = vadd.f32 0.0, %v2705
    %v2707 = vpop.f32.mrb[0].mxu0
    %2708 = vdwg.mxu0
    %s2709 = scalar_lea.vmem [#allocation19], 3
    %v2710 = vld [vmem:[%s2709] sm:$0x1]
    %v2712 = vlaneseq
    %v2713 = vshrl.u32 %v2712, 7
    %v2714 = vsub.s32 0, %v2713
    %v2715 = vrot.slane %v2710, %v2714
    %v2717 = vmul.f32 %v2706, %v2715
    %v2718 = vadd.f32 %v2633, %v2717
    %s2719 = scalar_lea.vmem [#allocation17], 8
    %v2720 = vld [vmem:[%s2719] sm:$0x3]
    %v2722 = vsel %vm2010, %v2720, 0
    %2724 = vmatprep.subr.mxu0 0.0
    %2725 = vmatpush1.msra.mxu0 %v2384
    %2726 = vmatprep.subr.mxu0 0.0
    %2727 = vmatpush1.msra.mxu0 0.0
    %2728 = vmatprep.subr.mxu0 0.0
    %2729 = vmatpush1.msra.mxu0 0.0
    %2730 = vmatprep.subr.mxu0 0.0
    %2731 = vmatpush1.msra.mxu0 0.0
    %2732 = vmatprep.subr.mxu0 0.0
    %2733 = vmatpush1.msra.mxu0 0.0
    %2734 = vmatprep.subr.mxu0 0.0
    %2735 = vmatpush1.msra.mxu0 0.0
    %2736 = vmatprep.subr.mxu0 0.0
    %2737 = vmatpush1.msra.mxu0 0.0
    %2738 = vmatprep.subr.mxu0 0.0
    %2739 = vmatpush1.msra.mxu0 0.0
    %2740 = vmatprep.subr.mxu0 0.0
    %2741 = vmatpush1.msra.mxu0 0.0
    %2742 = vmatprep.subr.mxu0 0.0
    %2743 = vmatpush1.msra.mxu0 0.0
    %2744 = vmatprep.subr.mxu0 0.0
    %2745 = vmatpush1.msra.mxu0 0.0
    %2746 = vmatprep.subr.mxu0 0.0
    %2747 = vmatpush1.msra.mxu0 0.0
    %2748 = vmatprep.subr.mxu0 0.0
    %2749 = vmatpush1.msra.mxu0 0.0
    %2750 = vmatprep.subr.mxu0 0.0
    %2751 = vmatpush1.msra.mxu0 0.0
    %2752 = vmatprep.subr.mxu0 0.0
    %2753 = vmatpush1.msra.mxu0 0.0
    %2754 = vmatprep.subr.mxu0 0.0
    %2755 = vmatpush1.msra.mxu0 0.0
    %2756 = vmatprep.subr.mxu0 0.0
    %2757 = vmatpush1.msra.mxu0 0.0
    %2758 = vmatprep.subr.mxu0 0.0
    %2759 = vmatpush1.msra.mxu0 0.0
    %2760 = vmatprep.subr.mxu0 0.0
    %2761 = vmatpush1.msra.mxu0 0.0
    %2762 = vmatprep.subr.mxu0 0.0
    %2763 = vmatpush1.msra.mxu0 0.0
    %2764 = vmatprep.subr.mxu0 0.0
    %2765 = vmatpush1.msra.mxu0 0.0
    %2766 = vmatprep.subr.mxu0 0.0
    %2767 = vmatpush1.msra.mxu0 0.0
    %2768 = vmatprep.subr.mxu0 0.0
    %2769 = vmatpush1.msra.mxu0 0.0
    %2770 = vmatprep.subr.mxu0 0.0
    %2771 = vmatpush1.msra.mxu0 0.0
    %2772 = vmatprep.subr.mxu0 0.0
    %2773 = vmatpush1.msra.mxu0 0.0
    %2774 = vmatprep.subr.mxu0 0.0
    %2775 = vmatpush1.msra.mxu0 0.0
    %2776 = vmatprep.subr.mxu0 0.0
    %2777 = vmatpush1.msra.mxu0 0.0
    %2778 = vmatprep.subr.mxu0 0.0
    %2779 = vmatpush1.msra.mxu0 0.0
    %2780 = vmatprep.subr.mxu0 0.0
    %2781 = vmatpush1.msra.mxu0 0.0
    %2782 = vmatprep.subr.mxu0 0.0
    %2783 = vmatpush1.msra.mxu0 0.0
    %2784 = vmatprep.subr.mxu0 0.0
    %2785 = vmatpush1.msra.mxu0 0.0
    %2786 = vmatprep.subr.mxu0 0.0
    %2787 = vmatpush1.msra.mxu0 0.0
    %2788 = vmatprep.mubr.f32.mxu0 0.0
    %2789 = vmatmul.mubr.f32.gmra.mrb[0].mxu0 %v2722
    %v2790 = vpop.f32.mrb[0].mxu0
    %v2791 = vadd.f32 0.0, %v2790
    %v2792 = vpop.f32.mrb[0].mxu0
    %2793 = vdwg.mxu0
    %s2794 = scalar_lea.vmem [#allocation19], 4
    %v2795 = vld [vmem:[%s2794] sm:$0x1]
    %v2797 = vlaneseq
    %v2798 = vshrl.u32 %v2797, 7
    %v2799 = vsub.s32 0, %v2798
    %v2800 = vrot.slane %v2795, %v2799
    %v2802 = vmul.f32 %v2791, %v2800
    %v2803 = vadd.f32 %v2718, %v2802
    %v2804 = vpack.c.bf16 %v2803, %v2803
    %v2805 = vld [vmem:[#allocation20] sm:$0xf]
    %v2806 = vld [vmem:[#allocation20 + $0x4] sm:$0xf]
    %v2807 = vld [vmem:[#allocation20 + $0x8] sm:$0xf]
    %v2808 = vld [vmem:[#allocation20 + $0xc] sm:$0xf]
    %v2809 = vld [vmem:[#allocation20 + $0x10] sm:$0xf]
    %v2810 = vld [vmem:[#allocation20 + $0x14] sm:$0xf]
    %v2811 = vld [vmem:[#allocation20 + $0x18] sm:$0xf]
    %v2812 = vld [vmem:[#allocation20 + $0x1c] sm:$0xf]
    %v2813 = vld [vmem:[#allocation22] sm:$0x1]
    %v2815 = vlaneseq
    %v2816 = vshrl.u32 %v2815, 7
    %v2817 = vsub.s32 0, %v2816
    %v2818 = vrot.slane %v2813, %v2817
    %v2828 = vunpack.c.l.b16 %v2805
    %v2829 = vunpack.c.l.b16 %v2806
    %v2830 = vunpack.c.l.b16 %v2807
    %v2831 = vunpack.c.l.b16 %v2808
    %v2832 = vunpack.c.l.b16 %v2809
    %v2833 = vunpack.c.l.b16 %v2810
    %v2834 = vunpack.c.l.b16 %v2811
    %v2835 = vunpack.c.l.b16 %v2812
    %v2836 = vpack.c.b16 %v2829, %v2828
    %v2837 = vpack.c.b16 %v2831, %v2830
    %v2838 = vpack.c.b16 %v2833, %v2832
    %v2839 = vpack.c.b16 %v2835, %v2834
    %v2845 = vsel %vm2306, %v2804, 0
    %2847 = vmatprep.subr.bf16.mxu0 0
    %2848 = vmatpush1.bf16.msra.mxu0 %v2836
    %2849 = vmatprep.subr.bf16.mxu0 0
    %2850 = vmatpush1.bf16.msra.mxu0 %v2837
    %2851 = vmatprep.subr.bf16.mxu0 0
    %2852 = vmatpush1.bf16.msra.mxu0 %v2838
    %2853 = vmatprep.subr.bf16.mxu0 0
    %2854 = vmatpush1.bf16.msra.mxu0 %v2839
    %2855 = vmatprep.subr.bf16.mxu0 0
    %2856 = vmatpush1.bf16.msra.mxu0 0
    %2857 = vmatprep.subr.bf16.mxu0 0
    %2858 = vmatpush1.bf16.msra.mxu0 0
    %2859 = vmatprep.subr.bf16.mxu0 0
    %2860 = vmatpush1.bf16.msra.mxu0 0
    %2861 = vmatprep.subr.bf16.mxu0 0
    %2862 = vmatpush1.bf16.msra.mxu0 0
    %2863 = vmatprep.subr.bf16.mxu0 0
    %2864 = vmatpush1.bf16.msra.mxu0 0
    %2865 = vmatprep.subr.bf16.mxu0 0
    %2866 = vmatpush1.bf16.msra.mxu0 0
    %2867 = vmatprep.subr.bf16.mxu0 0
    %2868 = vmatpush1.bf16.msra.mxu0 0
    %2869 = vmatprep.subr.bf16.mxu0 0
    %2870 = vmatpush1.bf16.msra.mxu0 0
    %2871 = vmatprep.subr.bf16.mxu0 0
    %2872 = vmatpush1.bf16.msra.mxu0 0
    %2873 = vmatprep.subr.bf16.mxu0 0
    %2874 = vmatpush1.bf16.msra.mxu0 0
    %2875 = vmatprep.subr.bf16.mxu0 0
    %2876 = vmatpush1.bf16.msra.mxu0 0
    %2877 = vmatprep.subr.bf16.mxu0 0
    %2878 = vmatpush1.bf16.msra.mxu0 0
    %2879 = vmatprep.mubr.bf16.mxu0 0
    %2880 = vmatmul.mubr.bf16.gmra.mrb[0].mxu0 %v2845
    %v2881 = vpop.f32.mrb[0].mxu0
    %v2882 = vadd.f32 %v2818, %v2881
    %v2883 = vpop.f32.mrb[0].mxu0
    %v2884 = vpop.f32.mrb[0].mxu0
    %v2885 = vpop.f32.mrb[0].mxu0
    %2886 = vdwg.mxu0
    %vm2887 = vcmp.ge.f32.partialorder %v2882, 0.0
    %s2888 = scalar_lea.vmem [#allocation22], 1
    %v2889 = vld [vmem:[%s2888] sm:$0x1]
    %v2891 = vlaneseq
    %v2892 = vshrl.u32 %v2891, 7
    %v2893 = vsub.s32 0, %v2892
    %v2894 = vrot.slane %v2889, %v2893
    %v2896 = vmul.f32 %v2882, %v2894
    %s2897 = scalar_lea.vmem [#allocation22], 2
    %v2898 = vld [vmem:[%s2897] sm:$0x1]
    %v2900 = vlaneseq
    %v2901 = vshrl.u32 %v2900, 7
    %v2902 = vsub.s32 0, %v2901
    %v2903 = vrot.slane %v2898, %v2902
    %v2905 = vmul.f32 %v2882, %v2903
    %v2906 = vsel %vm2887, %v2896, %v2905
    %s2907 = scalar_lea.vmem [#allocation22], 3
    %v2908 = vld [vmem:[%s2907] sm:$0x1]
    %v2910 = vlaneseq
    %v2911 = vshrl.u32 %v2910, 7
    %v2912 = vsub.s32 0, %v2911
    %v2913 = vrot.slane %v2908, %v2912
    %v2915 = vadd.f32 %v2906, %v2913
    %v2916 = vld [vmem:[%s43] sm:$0x3]
    %vm2917 = vcmask 15360
    %v2919 = vsel %vm2917, %v2916, 0
    %v2922 = vsel %vm959, %v2915, 0
    %2924 = vmatprep.subr.mxu0 0.0
    %2925 = vmatpush1.msra.mxu0 %v2922
    %2926 = vmatprep.subr.mxu0 0.0
    %2927 = vmatpush1.msra.mxu0 0.0
    %2928 = vmatprep.subr.mxu0 0.0
    %2929 = vmatpush1.msra.mxu0 0.0
    %2930 = vmatprep.subr.mxu0 0.0
    %2931 = vmatpush1.msra.mxu0 0.0
    %2932 = vmatprep.subr.mxu0 0.0
    %2933 = vmatpush1.msra.mxu0 0.0
    %2934 = vmatprep.subr.mxu0 0.0
    %2935 = vmatpush1.msra.mxu0 0.0
    %2936 = vmatprep.subr.mxu0 0.0
    %2937 = vmatpush1.msra.mxu0 0.0
    %2938 = vmatprep.subr.mxu0 0.0
    %2939 = vmatpush1.msra.mxu0 0.0
    %2940 = vmatprep.subr.mxu0 0.0
    %2941 = vmatpush1.msra.mxu0 0.0
    %2942 = vmatprep.subr.mxu0 0.0
    %2943 = vmatpush1.msra.mxu0 0.0
    %2944 = vmatprep.subr.mxu0 0.0
    %2945 = vmatpush1.msra.mxu0 0.0
    %2946 = vmatprep.subr.mxu0 0.0
    %2947 = vmatpush1.msra.mxu0 0.0
    %2948 = vmatprep.subr.mxu0 0.0
    %2949 = vmatpush1.msra.mxu0 0.0
    %2950 = vmatprep.subr.mxu0 0.0
    %2951 = vmatpush1.msra.mxu0 0.0
    %2952 = vmatprep.subr.mxu0 0.0
    %2953 = vmatpush1.msra.mxu0 0.0
    %2954 = vmatprep.subr.mxu0 0.0
    %2955 = vmatpush1.msra.mxu0 0.0
    %2956 = vmatprep.subr.mxu0 0.0
    %2957 = vmatpush1.msra.mxu0 0.0
    %2958 = vmatprep.subr.mxu0 0.0
    %2959 = vmatpush1.msra.mxu0 0.0
    %2960 = vmatprep.subr.mxu0 0.0
    %2961 = vmatpush1.msra.mxu0 0.0
    %2962 = vmatprep.subr.mxu0 0.0
    %2963 = vmatpush1.msra.mxu0 0.0
    %2964 = vmatprep.subr.mxu0 0.0
    %2965 = vmatpush1.msra.mxu0 0.0
    %2966 = vmatprep.subr.mxu0 0.0
    %2967 = vmatpush1.msra.mxu0 0.0
    %2968 = vmatprep.subr.mxu0 0.0
    %2969 = vmatpush1.msra.mxu0 0.0
    %2970 = vmatprep.subr.mxu0 0.0
    %2971 = vmatpush1.msra.mxu0 0.0
    %2972 = vmatprep.subr.mxu0 0.0
    %2973 = vmatpush1.msra.mxu0 0.0
    %2974 = vmatprep.subr.mxu0 0.0
    %2975 = vmatpush1.msra.mxu0 0.0
    %2976 = vmatprep.subr.mxu0 0.0
    %2977 = vmatpush1.msra.mxu0 0.0
    %2978 = vmatprep.subr.mxu0 0.0
    %2979 = vmatpush1.msra.mxu0 0.0
    %2980 = vmatprep.subr.mxu0 0.0
    %2981 = vmatpush1.msra.mxu0 0.0
    %2982 = vmatprep.subr.mxu0 0.0
    %2983 = vmatpush1.msra.mxu0 0.0
    %2984 = vmatprep.subr.mxu0 0.0
    %2985 = vmatpush1.msra.mxu0 0.0
    %2986 = vmatprep.subr.mxu0 0.0
    %2987 = vmatpush1.msra.mxu0 0.0
    %2988 = vmatprep.mubr.f32.mxu0 0.0
    %2989 = vmatmul.mubr.f32.gmra.mrb[0].mxu0 %v2919
    %v2990 = vpop.f32.mrb[0].mxu0
    %v2991 = vadd.f32 0.0, %v2990
    %v2992 = vpop.f32.mrb[0].mxu0
    %2993 = vdwg.mxu0
    %v2994 = vld [vmem:[#allocation23] sm:$0x1]
    %v2996 = vlaneseq
    %v2997 = vshrl.u32 %v2996, 7
    %v2998 = vsub.s32 0, %v2997
    %v2999 = vrot.slane %v2994, %v2998
    %v3001 = vmul.f32 %v2991, %v2999
    %s3002 = scalar_lea.vmem %s43, 2
    %v3003 = vld [vmem:[%s3002] sm:$0x3]
    %v3005 = vsel %vm2917, %v3003, 0
    %3007 = vmatprep.subr.mxu0 0.0
    %3008 = vmatpush1.msra.mxu0 %v2922
    %3009 = vmatprep.subr.mxu0 0.0
    %3010 = vmatpush1.msra.mxu0 0.0
    %3011 = vmatprep.subr.mxu0 0.0
    %3012 = vmatpush1.msra.mxu0 0.0
    %3013 = vmatprep.subr.mxu0 0.0
    %3014 = vmatpush1.msra.mxu0 0.0
    %3015 = vmatprep.subr.mxu0 0.0
    %3016 = vmatpush1.msra.mxu0 0.0
    %3017 = vmatprep.subr.mxu0 0.0
    %3018 = vmatpush1.msra.mxu0 0.0
    %3019 = vmatprep.subr.mxu0 0.0
    %3020 = vmatpush1.msra.mxu0 0.0
    %3021 = vmatprep.subr.mxu0 0.0
    %3022 = vmatpush1.msra.mxu0 0.0
    %3023 = vmatprep.subr.mxu0 0.0
    %3024 = vmatpush1.msra.mxu0 0.0
    %3025 = vmatprep.subr.mxu0 0.0
    %3026 = vmatpush1.msra.mxu0 0.0
    %3027 = vmatprep.subr.mxu0 0.0
    %3028 = vmatpush1.msra.mxu0 0.0
    %3029 = vmatprep.subr.mxu0 0.0
    %3030 = vmatpush1.msra.mxu0 0.0
    %3031 = vmatprep.subr.mxu0 0.0
    %3032 = vmatpush1.msra.mxu0 0.0
    %3033 = vmatprep.subr.mxu0 0.0
    %3034 = vmatpush1.msra.mxu0 0.0
    %3035 = vmatprep.subr.mxu0 0.0
    %3036 = vmatpush1.msra.mxu0 0.0
    %3037 = vmatprep.subr.mxu0 0.0
    %3038 = vmatpush1.msra.mxu0 0.0
    %3039 = vmatprep.subr.mxu0 0.0
    %3040 = vmatpush1.msra.mxu0 0.0
    %3041 = vmatprep.subr.mxu0 0.0
    %3042 = vmatpush1.msra.mxu0 0.0
    %3043 = vmatprep.subr.mxu0 0.0
    %3044 = vmatpush1.msra.mxu0 0.0
    %3045 = vmatprep.subr.mxu0 0.0
    %3046 = vmatpush1.msra.mxu0 0.0
    %3047 = vmatprep.subr.mxu0 0.0
    %3048 = vmatpush1.msra.mxu0 0.0
    %3049 = vmatprep.subr.mxu0 0.0
    %3050 = vmatpush1.msra.mxu0 0.0
    %3051 = vmatprep.subr.mxu0 0.0
    %3052 = vmatpush1.msra.mxu0 0.0
    %3053 = vmatprep.subr.mxu0 0.0
    %3054 = vmatpush1.msra.mxu0 0.0
    %3055 = vmatprep.subr.mxu0 0.0
    %3056 = vmatpush1.msra.mxu0 0.0
    %3057 = vmatprep.subr.mxu0 0.0
    %3058 = vmatpush1.msra.mxu0 0.0
    %3059 = vmatprep.subr.mxu0 0.0
    %3060 = vmatpush1.msra.mxu0 0.0
    %3061 = vmatprep.subr.mxu0 0.0
    %3062 = vmatpush1.msra.mxu0 0.0
    %3063 = vmatprep.subr.mxu0 0.0
    %3064 = vmatpush1.msra.mxu0 0.0
    %3065 = vmatprep.subr.mxu0 0.0
    %3066 = vmatpush1.msra.mxu0 0.0
    %3067 = vmatprep.subr.mxu0 0.0
    %3068 = vmatpush1.msra.mxu0 0.0
    %3069 = vmatprep.subr.mxu0 0.0
    %3070 = vmatpush1.msra.mxu0 0.0
    %3071 = vmatprep.mubr.f32.mxu0 0.0
    %3072 = vmatmul.mubr.f32.gmra.mrb[0].mxu0 %v3005
    %v3073 = vpop.f32.mrb[0].mxu0
    %v3074 = vadd.f32 0.0, %v3073
    %v3075 = vpop.f32.mrb[0].mxu0
    %3076 = vdwg.mxu0
    %s3077 = scalar_lea.vmem [#allocation23], 1
    %v3078 = vld [vmem:[%s3077] sm:$0x1]
    %v3080 = vlaneseq
    %v3081 = vshrl.u32 %v3080, 7
    %v3082 = vsub.s32 0, %v3081
    %v3083 = vrot.slane %v3078, %v3082
    %v3085 = vmul.f32 %v3074, %v3083
    %v3086 = vadd.f32 %v3001, %v3085
    %s3087 = scalar_lea.vmem %s43, 4
    %v3088 = vld [vmem:[%s3087] sm:$0x3]
    %v3090 = vsel %vm2917, %v3088, 0
    %3092 = vmatprep.subr.mxu0 0.0
    %3093 = vmatpush1.msra.mxu0 %v2922
    %3094 = vmatprep.subr.mxu0 0.0
    %3095 = vmatpush1.msra.mxu0 0.0
    %3096 = vmatprep.subr.mxu0 0.0
    %3097 = vmatpush1.msra.mxu0 0.0
    %3098 = vmatprep.subr.mxu0 0.0
    %3099 = vmatpush1.msra.mxu0 0.0
    %3100 = vmatprep.subr.mxu0 0.0
    %3101 = vmatpush1.msra.mxu0 0.0
    %3102 = vmatprep.subr.mxu0 0.0
    %3103 = vmatpush1.msra.mxu0 0.0
    %3104 = vmatprep.subr.mxu0 0.0
    %3105 = vmatpush1.msra.mxu0 0.0
    %3106 = vmatprep.subr.mxu0 0.0
    %3107 = vmatpush1.msra.mxu0 0.0
    %3108 = vmatprep.subr.mxu0 0.0
    %3109 = vmatpush1.msra.mxu0 0.0
    %3110 = vmatprep.subr.mxu0 0.0
    %3111 = vmatpush1.msra.mxu0 0.0
    %3112 = vmatprep.subr.mxu0 0.0
    %3113 = vmatpush1.msra.mxu0 0.0
    %3114 = vmatprep.subr.mxu0 0.0
    %3115 = vmatpush1.msra.mxu0 0.0
    %3116 = vmatprep.subr.mxu0 0.0
    %3117 = vmatpush1.msra.mxu0 0.0
    %3118 = vmatprep.subr.mxu0 0.0
    %3119 = vmatpush1.msra.mxu0 0.0
    %3120 = vmatprep.subr.mxu0 0.0
    %3121 = vmatpush1.msra.mxu0 0.0
    %3122 = vmatprep.subr.mxu0 0.0
    %3123 = vmatpush1.msra.mxu0 0.0
    %3124 = vmatprep.subr.mxu0 0.0
    %3125 = vmatpush1.msra.mxu0 0.0
    %3126 = vmatprep.subr.mxu0 0.0
    %3127 = vmatpush1.msra.mxu0 0.0
    %3128 = vmatprep.subr.mxu0 0.0
    %3129 = vmatpush1.msra.mxu0 0.0
    %3130 = vmatprep.subr.mxu0 0.0
    %3131 = vmatpush1.msra.mxu0 0.0
    %3132 = vmatprep.subr.mxu0 0.0
    %3133 = vmatpush1.msra.mxu0 0.0
    %3134 = vmatprep.subr.mxu0 0.0
    %3135 = vmatpush1.msra.mxu0 0.0
    %3136 = vmatprep.subr.mxu0 0.0
    %3137 = vmatpush1.msra.mxu0 0.0
    %3138 = vmatprep.subr.mxu0 0.0
    %3139 = vmatpush1.msra.mxu0 0.0
    %3140 = vmatprep.subr.mxu0 0.0
    %3141 = vmatpush1.msra.mxu0 0.0
    %3142 = vmatprep.subr.mxu0 0.0
    %3143 = vmatpush1.msra.mxu0 0.0
    %3144 = vmatprep.subr.mxu0 0.0
    %3145 = vmatpush1.msra.mxu0 0.0
    %3146 = vmatprep.subr.mxu0 0.0
    %3147 = vmatpush1.msra.mxu0 0.0
    %3148 = vmatprep.subr.mxu0 0.0
    %3149 = vmatpush1.msra.mxu0 0.0
    %3150 = vmatprep.subr.mxu0 0.0
    %3151 = vmatpush1.msra.mxu0 0.0
    %3152 = vmatprep.subr.mxu0 0.0
    %3153 = vmatpush1.msra.mxu0 0.0
    %3154 = vmatprep.subr.mxu0 0.0
    %3155 = vmatpush1.msra.mxu0 0.0
    %3156 = vmatprep.mubr.f32.mxu0 0.0
    %3157 = vmatmul.mubr.f32.gmra.mrb[0].mxu0 %v3090
    %v3158 = vpop.f32.mrb[0].mxu0
    %v3159 = vadd.f32 0.0, %v3158
    %v3160 = vpop.f32.mrb[0].mxu0
    %3161 = vdwg.mxu0
    %s3162 = scalar_lea.vmem [#allocation23], 2
    %v3163 = vld [vmem:[%s3162] sm:$0x1]
    %v3165 = vlaneseq
    %v3166 = vshrl.u32 %v3165, 7
    %v3167 = vsub.s32 0, %v3166
    %v3168 = vrot.slane %v3163, %v3167
    %v3170 = vmul.f32 %v3159, %v3168
    %v3171 = vadd.f32 %v3086, %v3170
    %v3172 = vpack.c.bf16 %v3171, %v3171
    %v3173 = vld [vmem:[%s47] sm:$0xf]
    %v3174 = vld [vmem:[%s47 + $0x4] sm:$0xf]
    %v3175 = vld [vmem:[%s47 + $0x8] sm:$0xf]
    %v3176 = vld [vmem:[%s47 + $0xc] sm:$0xf]
    %v3177 = vld [vmem:[%s47 + $0x10] sm:$0xf]
    %v3178 = vld [vmem:[%s47 + $0x14] sm:$0xf]
    %v3179 = vld [vmem:[%s47 + $0x18] sm:$0xf]
    %v3180 = vld [vmem:[%s47 + $0x1c] sm:$0xf]
    %v3181 = vld [vmem:[%s47 + $0x20] sm:$0xf]
    %v3182 = vld [vmem:[%s47 + $0x24] sm:$0xf]
    %v3183 = vld [vmem:[%s47 + $0x28] sm:$0xf]
    %v3184 = vld [vmem:[%s47 + $0x2c] sm:$0xf]
    %v3185 = vld [vmem:[%s47 + $0x30] sm:$0xf]
    %v3186 = vld [vmem:[%s47 + $0x34] sm:$0xf]
    %v3187 = vld [vmem:[%s47 + $0x38] sm:$0xf]
    %v3188 = vld [vmem:[%s47 + $0x3c] sm:$0xf]
    %v3189 = vld [vmem:[#allocation25] sm:$0x1]
    %v3191 = vlaneseq
    %v3192 = vshrl.u32 %v3191, 7
    %v3193 = vsub.s32 0, %v3192
    %v3194 = vrot.slane %v3189, %v3193
    %v3212 = vunpack.c.l.b16 %v3173
    %v3213 = vunpack.c.l.b16 %v3174
    %v3214 = vunpack.c.l.b16 %v3175
    %v3215 = vunpack.c.l.b16 %v3176
    %v3216 = vunpack.c.l.b16 %v3177
    %v3217 = vunpack.c.l.b16 %v3178
    %v3218 = vunpack.c.l.b16 %v3179
    %v3219 = vunpack.c.l.b16 %v3180
    %v3220 = vunpack.c.l.b16 %v3181
    %v3221 = vunpack.c.l.b16 %v3182
    %v3222 = vunpack.c.l.b16 %v3183
    %v3223 = vunpack.c.l.b16 %v3184
    %v3224 = vunpack.c.l.b16 %v3185
    %v3225 = vunpack.c.l.b16 %v3186
    %v3226 = vunpack.c.l.b16 %v3187
    %v3227 = vunpack.c.l.b16 %v3188
    %v3228 = vpack.c.b16 %v3213, %v3212
    %v3229 = vpack.c.b16 %v3215, %v3214
    %v3230 = vpack.c.b16 %v3217, %v3216
    %v3231 = vpack.c.b16 %v3219, %v3218
    %v3232 = vpack.c.b16 %v3221, %v3220
    %v3233 = vpack.c.b16 %v3223, %v3222
    %v3234 = vpack.c.b16 %v3225, %v3224
    %v3235 = vpack.c.b16 %v3227, %v3226
    %3244 = vmatprep.subr.bf16.mxu0 0
    %3245 = vmatpush1.bf16.msra.mxu0 %v3228
    %3246 = vmatprep.subr.bf16.mxu0 0
    %3247 = vmatpush1.bf16.msra.mxu0 %v3229
    %3248 = vmatprep.subr.bf16.mxu0 0
    %3249 = vmatpush1.bf16.msra.mxu0 %v3230
    %3250 = vmatprep.subr.bf16.mxu0 0
    %3251 = vmatpush1.bf16.msra.mxu0 %v3231
    %3252 = vmatprep.subr.bf16.mxu0 0
    %3253 = vmatpush1.bf16.msra.mxu0 %v3232
    %3254 = vmatprep.subr.bf16.mxu0 0
    %3255 = vmatpush1.bf16.msra.mxu0 %v3233
    %3256 = vmatprep.subr.bf16.mxu0 0
    %3257 = vmatpush1.bf16.msra.mxu0 %v3234
    %3258 = vmatprep.subr.bf16.mxu0 0
    %3259 = vmatpush1.bf16.msra.mxu0 %v3235
    %3260 = vmatprep.subr.bf16.mxu0 0
    %3261 = vmatpush1.bf16.msra.mxu0 0
    %3262 = vmatprep.subr.bf16.mxu0 0
    %3263 = vmatpush1.bf16.msra.mxu0 0
    %3264 = vmatprep.subr.bf16.mxu0 0
    %3265 = vmatpush1.bf16.msra.mxu0 0
    %3266 = vmatprep.subr.bf16.mxu0 0
    %3267 = vmatpush1.bf16.msra.mxu0 0
    %3268 = vmatprep.subr.bf16.mxu0 0
    %3269 = vmatpush1.bf16.msra.mxu0 0
    %3270 = vmatprep.subr.bf16.mxu0 0
    %3271 = vmatpush1.bf16.msra.mxu0 0
    %3272 = vmatprep.subr.bf16.mxu0 0
    %3273 = vmatpush1.bf16.msra.mxu0 0
    %3274 = vmatprep.subr.bf16.mxu0 0
    %3275 = vmatpush1.bf16.msra.mxu0 0
    %3276 = vmatprep.mubr.bf16.mxu0 0
    %3277 = vmatmul.mubr.bf16.gmra.mrb[0].mxu0 %v3172
    %v3278 = vpop.f32.mrb[0].mxu0
    %v3279 = vadd.f32 %v3194, %v3278
    %v3280 = vpop.f32.mrb[0].mxu0
    %v3281 = vpop.f32.mrb[0].mxu0
    %v3282 = vpop.f32.mrb[0].mxu0
    %3283 = vdwg.mxu0
    %vm3284 = vcmp.ge.f32.partialorder %v3279, 0.0
    %s3285 = scalar_lea.vmem [#allocation25], 1
    %v3286 = vld [vmem:[%s3285] sm:$0x1]
    %v3288 = vlaneseq
    %v3289 = vshrl.u32 %v3288, 7
    %v3290 = vsub.s32 0, %v3289
    %v3291 = vrot.slane %v3286, %v3290
    %v3293 = vmul.f32 %v3279, %v3291
    %s3294 = scalar_lea.vmem [#allocation25], 2
    %v3295 = vld [vmem:[%s3294] sm:$0x1]
    %v3297 = vlaneseq
    %v3298 = vshrl.u32 %v3297, 7
    %v3299 = vsub.s32 0, %v3298
    %v3300 = vrot.slane %v3295, %v3299
    %v3302 = vmul.f32 %v3279, %v3300
    %v3303 = vsel %vm3284, %v3293, %v3302
    %s3304 = scalar_lea.vmem [#allocation25], 3
    %v3305 = vld [vmem:[%s3304] sm:$0x1]
    %v3307 = vlaneseq
    %v3308 = vshrl.u32 %v3307, 7
    %v3309 = vsub.s32 0, %v3308
    %v3310 = vrot.slane %v3305, %v3309
    %v3312 = vadd.f32 %v3303, %v3310
    %v3313 = vld [vmem:[%s51] sm:$0xf]
    %v3315 = vsel %vm2917, %v3313, 0
    %v3318 = vsel %vm959, %v3312, 0
    %3320 = vmatprep.subr.mxu0 0.0
    %3321 = vmatpush1.msra.mxu0 %v3318
    %3322 = vmatprep.subr.mxu0 0.0
    %3323 = vmatpush1.msra.mxu0 0.0
    %3324 = vmatprep.subr.mxu0 0.0
    %3325 = vmatpush1.msra.mxu0 0.0
    %3326 = vmatprep.subr.mxu0 0.0
    %3327 = vmatpush1.msra.mxu0 0.0
    %3328 = vmatprep.subr.mxu0 0.0
    %3329 = vmatpush1.msra.mxu0 0.0
    %3330 = vmatprep.subr.mxu0 0.0
    %3331 = vmatpush1.msra.mxu0 0.0
    %3332 = vmatprep.subr.mxu0 0.0
    %3333 = vmatpush1.msra.mxu0 0.0
    %3334 = vmatprep.subr.mxu0 0.0
    %3335 = vmatpush1.msra.mxu0 0.0
    %3336 = vmatprep.subr.mxu0 0.0
    %3337 = vmatpush1.msra.mxu0 0.0
    %3338 = vmatprep.subr.mxu0 0.0
    %3339 = vmatpush1.msra.mxu0 0.0
    %3340 = vmatprep.subr.mxu0 0.0
    %3341 = vmatpush1.msra.mxu0 0.0
    %3342 = vmatprep.subr.mxu0 0.0
    %3343 = vmatpush1.msra.mxu0 0.0
    %3344 = vmatprep.subr.mxu0 0.0
    %3345 = vmatpush1.msra.mxu0 0.0
    %3346 = vmatprep.subr.mxu0 0.0
    %3347 = vmatpush1.msra.mxu0 0.0
    %3348 = vmatprep.subr.mxu0 0.0
    %3349 = vmatpush1.msra.mxu0 0.0
    %3350 = vmatprep.subr.mxu0 0.0
    %3351 = vmatpush1.msra.mxu0 0.0
    %3352 = vmatprep.subr.mxu0 0.0
    %3353 = vmatpush1.msra.mxu0 0.0
    %3354 = vmatprep.subr.mxu0 0.0
    %3355 = vmatpush1.msra.mxu0 0.0
    %3356 = vmatprep.subr.mxu0 0.0
    %3357 = vmatpush1.msra.mxu0 0.0
    %3358 = vmatprep.subr.mxu0 0.0
    %3359 = vmatpush1.msra.mxu0 0.0
    %3360 = vmatprep.subr.mxu0 0.0
    %3361 = vmatpush1.msra.mxu0 0.0
    %3362 = vmatprep.subr.mxu0 0.0
    %3363 = vmatpush1.msra.mxu0 0.0
    %3364 = vmatprep.subr.mxu0 0.0
    %3365 = vmatpush1.msra.mxu0 0.0
    %3366 = vmatprep.subr.mxu0 0.0
    %3367 = vmatpush1.msra.mxu0 0.0
    %3368 = vmatprep.subr.mxu0 0.0
    %3369 = vmatpush1.msra.mxu0 0.0
    %3370 = vmatprep.subr.mxu0 0.0
    %3371 = vmatpush1.msra.mxu0 0.0
    %3372 = vmatprep.subr.mxu0 0.0
    %3373 = vmatpush1.msra.mxu0 0.0
    %3374 = vmatprep.subr.mxu0 0.0
    %3375 = vmatpush1.msra.mxu0 0.0
    %3376 = vmatprep.subr.mxu0 0.0
    %3377 = vmatpush1.msra.mxu0 0.0
    %3378 = vmatprep.subr.mxu0 0.0
    %3379 = vmatpush1.msra.mxu0 0.0
    %3380 = vmatprep.subr.mxu0 0.0
    %3381 = vmatpush1.msra.mxu0 0.0
    %3382 = vmatprep.subr.mxu0 0.0
    %3383 = vmatpush1.msra.mxu0 0.0
    %3384 = vmatprep.mubr.f32.mxu0 0.0
    %3385 = vmatmul.mubr.f32.gmra.mrb[0].mxu0 %v3315
    %v3386 = vpop.f32.mrb[0].mxu0
    %v3387 = vadd.f32 0.0, %v3386
    %v3388 = vpop.f32.mrb[0].mxu0
    %3389 = vdwg.mxu0
    %v3390 = vld [vmem:[#allocation26] sm:$0x1]
    %v3392 = vlaneseq
    %v3393 = vshrl.u32 %v3392, 7
    %v3394 = vsub.s32 0, %v3393
    %v3395 = vrot.slane %v3390, %v3394
    %v3397 = vmul.f32 %v3387, %v3395
    %v3398 = vpack.c.bf16 %v3397, %v3397
    %v3399 = vld [vmem:[%s55] sm:$0xff]
    %v3400 = vld [vmem:[%s55 + $0x8] sm:$0xff]
    %v3401 = vld [vmem:[%s55 + $0x10] sm:$0xff]
    %v3402 = vld [vmem:[%s55 + $0x18] sm:$0xff]
    %v3403 = vld [vmem:[%s55 + $0x20] sm:$0xff]
    %v3404 = vld [vmem:[%s55 + $0x28] sm:$0xff]
    %v3405 = vld [vmem:[%s55 + $0x30] sm:$0xff]
    %v3406 = vld [vmem:[%s55 + $0x38] sm:$0xff]
    %v3407 = vld [vmem:[%s55 + $0x40] sm:$0xff]
    %v3408 = vld [vmem:[%s55 + $0x48] sm:$0xff]
    %v3409 = vld [vmem:[%s55 + $0x50] sm:$0xff]
    %v3410 = vld [vmem:[%s55 + $0x58] sm:$0xff]
    %v3411 = vld [vmem:[%s55 + $0x60] sm:$0xff]
    %v3412 = vld [vmem:[%s55 + $0x68] sm:$0xff]
    %v3413 = vld [vmem:[%s55 + $0x70] sm:$0xff]
    %v3414 = vld [vmem:[%s55 + $0x78] sm:$0xff]
    %v3415 = vld [vmem:[#allocation28] sm:$0x3]
    %v3417 = vlaneseq
    %v3418 = vshrl.u32 %v3417, 7
    %v3419 = vsub.s32 0, %v3418
    %v3420 = vrot.slane %v3415, %v3419
    %v3421 = vlaneseq
    %v3422 = vshrl.u32 %v3421, 7
    %v3423 = vsub.s32 1, %v3422
    %v3424 = vrot.slane %v3415, %v3423
    %v3443 = vunpack.c.l.b16 %v3399
    %v3444 = vunpack.c.h.b16 %v3399
    %v3445 = vunpack.c.l.b16 %v3400
    %v3446 = vunpack.c.h.b16 %v3400
    %v3447 = vunpack.c.l.b16 %v3401
    %v3448 = vunpack.c.h.b16 %v3401
    %v3449 = vunpack.c.l.b16 %v3402
    %v3450 = vunpack.c.h.b16 %v3402
    %v3451 = vunpack.c.l.b16 %v3403
    %v3452 = vunpack.c.h.b16 %v3403
    %v3453 = vunpack.c.l.b16 %v3404
    %v3454 = vunpack.c.h.b16 %v3404
    %v3455 = vunpack.c.l.b16 %v3405
    %v3456 = vunpack.c.h.b16 %v3405
    %v3457 = vunpack.c.l.b16 %v3406
    %v3458 = vunpack.c.h.b16 %v3406
    %v3459 = vunpack.c.l.b16 %v3407
    %v3460 = vunpack.c.h.b16 %v3407
    %v3461 = vunpack.c.l.b16 %v3408
    %v3462 = vunpack.c.h.b16 %v3408
    %v3463 = vunpack.c.l.b16 %v3409
    %v3464 = vunpack.c.h.b16 %v3409
    %v3465 = vunpack.c.l.b16 %v3410
    %v3466 = vunpack.c.h.b16 %v3410
    %v3467 = vunpack.c.l.b16 %v3411
    %v3468 = vunpack.c.h.b16 %v3411
    %v3469 = vunpack.c.l.b16 %v3412
    %v3470 = vunpack.c.h.b16 %v3412
    %v3471 = vunpack.c.l.b16 %v3413
    %v3472 = vunpack.c.h.b16 %v3413
    %v3473 = vunpack.c.l.b16 %v3414
    %v3474 = vunpack.c.h.b16 %v3414
    %v3475 = vpack.c.b16 %v3445, %v3443
    %v3476 = vpack.c.b16 %v3446, %v3444
    %v3477 = vpack.c.b16 %v3449, %v3447
    %v3478 = vpack.c.b16 %v3450, %v3448
    %v3479 = vpack.c.b16 %v3453, %v3451
    %v3480 = vpack.c.b16 %v3454, %v3452
    %v3481 = vpack.c.b16 %v3457, %v3455
    %v3482 = vpack.c.b16 %v3458, %v3456
    %v3483 = vpack.c.b16 %v3461, %v3459
    %v3484 = vpack.c.b16 %v3462, %v3460
    %v3485 = vpack.c.b16 %v3465, %v3463
    %v3486 = vpack.c.b16 %v3466, %v3464
    %v3487 = vpack.c.b16 %v3469, %v3467
    %v3488 = vpack.c.b16 %v3470, %v3468
    %v3489 = vpack.c.b16 %v3473, %v3471
    %v3490 = vpack.c.b16 %v3474, %v3472
    %3507 = vmatprep.subr.bf16.mxu0 %v3476
    %3508 = vmatpush1.bf16.msra.mxu0 %v3475
    %3509 = vmatprep.subr.bf16.mxu0 %v3478
    %3510 = vmatpush1.bf16.msra.mxu0 %v3477
    %3511 = vmatprep.subr.bf16.mxu0 %v3480
    %3512 = vmatpush1.bf16.msra.mxu0 %v3479
    %3513 = vmatprep.subr.bf16.mxu0 %v3482
    %3514 = vmatpush1.bf16.msra.mxu0 %v3481
    %3515 = vmatprep.subr.bf16.mxu0 %v3484
    %3516 = vmatpush1.bf16.msra.mxu0 %v3483
    %3517 = vmatprep.subr.bf16.mxu0 %v3486
    %3518 = vmatpush1.bf16.msra.mxu0 %v3485
    %3519 = vmatprep.subr.bf16.mxu0 %v3488
    %3520 = vmatpush1.bf16.msra.mxu0 %v3487
    %3521 = vmatprep.subr.bf16.mxu0 %v3490
    %3522 = vmatpush1.bf16.msra.mxu0 %v3489
    %3523 = vmatprep.subr.bf16.mxu0 0
    %3524 = vmatpush1.bf16.msra.mxu0 0
    %3525 = vmatprep.subr.bf16.mxu0 0
    %3526 = vmatpush1.bf16.msra.mxu0 0
    %3527 = vmatprep.subr.bf16.mxu0 0
    %3528 = vmatpush1.bf16.msra.mxu0 0
    %3529 = vmatprep.subr.bf16.mxu0 0
    %3530 = vmatpush1.bf16.msra.mxu0 0
    %3531 = vmatprep.subr.bf16.mxu0 0
    %3532 = vmatpush1.bf16.msra.mxu0 0
    %3533 = vmatprep.subr.bf16.mxu0 0
    %3534 = vmatpush1.bf16.msra.mxu0 0
    %3535 = vmatprep.subr.bf16.mxu0 0
    %3536 = vmatpush1.bf16.msra.mxu0 0
    %3537 = vmatprep.subr.bf16.mxu0 0
    %3538 = vmatpush1.bf16.msra.mxu0 0
    %3539 = vmatprep.mubr.bf16.mxu0 0
    %3540 = vmatmul.mubr.bf16.gmra.mrb[0].mxu0 %v3398
    %v3541 = vpop.f32.mrb[0].mxu0
    %v3542 = vadd.f32 %v3420, %v3541
    %v3543 = vpop.f32.mrb[0].mxu0
    %v3544 = vadd.f32 %v3424, %v3543
    %v3545 = vpop.f32.mrb[0].mxu0
    %v3546 = vpop.f32.mrb[0].mxu0
    %3547 = vdwg.mxu0
    %vm3548 = vcmp.ge.f32.partialorder %v3542, 0.0
    %vm3549 = vcmp.ge.f32.partialorder %v3544, 0.0
    %s3550 = scalar_lea.vmem [#allocation28], 2
    %v3551 = vld [vmem:[%s3550] sm:$0x3]
    %v3553 = vlaneseq
    %v3554 = vshrl.u32 %v3553, 7
    %v3555 = vsub.s32 0, %v3554
    %v3556 = vrot.slane %v3551, %v3555
    %v3557 = vlaneseq
    %v3558 = vshrl.u32 %v3557, 7
    %v3559 = vsub.s32 1, %v3558
    %v3560 = vrot.slane %v3551, %v3559
    %v3563 = vmul.f32 %v3542, %v3556
    %v3564 = vmul.f32 %v3544, %v3560
    %s3565 = scalar_lea.vmem [#allocation28], 4
    %v3566 = vld [vmem:[%s3565] sm:$0x3]
    %v3568 = vlaneseq
    %v3569 = vshrl.u32 %v3568, 7
    %v3570 = vsub.s32 0, %v3569
    %v3571 = vrot.slane %v3566, %v3570
    %v3572 = vlaneseq
    %v3573 = vshrl.u32 %v3572, 7
    %v3574 = vsub.s32 1, %v3573
    %v3575 = vrot.slane %v3566, %v3574
    %v3578 = vmul.f32 %v3542, %v3571
    %v3579 = vmul.f32 %v3544, %v3575
    %v3580 = vsel %vm3548, %v3563, %v3578
    %v3581 = vsel %vm3549, %v3564, %v3579
    %s3582 = scalar_lea.vmem [#allocation28], 6
    %v3583 = vld [vmem:[%s3582] sm:$0x3]
    %v3585 = vlaneseq
    %v3586 = vshrl.u32 %v3585, 7
    %v3587 = vsub.s32 0, %v3586
    %v3588 = vrot.slane %v3583, %v3587
    %v3589 = vlaneseq
    %v3590 = vshrl.u32 %v3589, 7
    %v3591 = vsub.s32 1, %v3590
    %v3592 = vrot.slane %v3583, %v3591
    %v3595 = vadd.f32 %v3580, %v3588
    %v3596 = vadd.f32 %v3581, %v3592
    %v3597 = vld [vmem:[#allocation29] sm:$0x3]
    %v3599 = vsel %vm952, %v3597, 0
    %vm3601 = vcmask 1043456
    %v3603 = vsel %vm3601, %v3595, 0
    %v3606 = vsel %vm3601, %v3596, 0
    %3608 = vmatprep.subr.mxu0 %v3606
    %3609 = vmatpush1.msra.mxu0 %v3603
    %3610 = vmatprep.subr.mxu0 0.0
    %3611 = vmatpush1.msra.mxu0 0.0
    %3612 = vmatprep.subr.mxu0 0.0
    %3613 = vmatpush1.msra.mxu0 0.0
    %3614 = vmatprep.subr.mxu0 0.0
    %3615 = vmatpush1.msra.mxu0 0.0
    %3616 = vmatprep.subr.mxu0 0.0
    %3617 = vmatpush1.msra.mxu0 0.0
    %3618 = vmatprep.subr.mxu0 0.0
    %3619 = vmatpush1.msra.mxu0 0.0
    %3620 = vmatprep.subr.mxu0 0.0
    %3621 = vmatpush1.msra.mxu0 0.0
    %3622 = vmatprep.subr.mxu0 0.0
    %3623 = vmatpush1.msra.mxu0 0.0
    %3624 = vmatprep.subr.mxu0 0.0
    %3625 = vmatpush1.msra.mxu0 0.0
    %3626 = vmatprep.subr.mxu0 0.0
    %3627 = vmatpush1.msra.mxu0 0.0
    %3628 = vmatprep.subr.mxu0 0.0
    %3629 = vmatpush1.msra.mxu0 0.0
    %3630 = vmatprep.subr.mxu0 0.0
    %3631 = vmatpush1.msra.mxu0 0.0
    %3632 = vmatprep.subr.mxu0 0.0
    %3633 = vmatpush1.msra.mxu0 0.0
    %3634 = vmatprep.subr.mxu0 0.0
    %3635 = vmatpush1.msra.mxu0 0.0
    %3636 = vmatprep.subr.mxu0 0.0
    %3637 = vmatpush1.msra.mxu0 0.0
    %3638 = vmatprep.subr.mxu0 0.0
    %3639 = vmatpush1.msra.mxu0 0.0
    %3640 = vmatprep.subr.mxu0 0.0
    %3641 = vmatpush1.msra.mxu0 0.0
    %3642 = vmatprep.subr.mxu0 0.0
    %3643 = vmatpush1.msra.mxu0 0.0
    %3644 = vmatprep.subr.mxu0 0.0
    %3645 = vmatpush1.msra.mxu0 0.0
    %3646 = vmatprep.subr.mxu0 0.0
    %3647 = vmatpush1.msra.mxu0 0.0
    %3648 = vmatprep.subr.mxu0 0.0
    %3649 = vmatpush1.msra.mxu0 0.0
    %3650 = vmatprep.subr.mxu0 0.0
    %3651 = vmatpush1.msra.mxu0 0.0
    %3652 = vmatprep.subr.mxu0 0.0
    %3653 = vmatpush1.msra.mxu0 0.0
    %3654 = vmatprep.subr.mxu0 0.0
    %3655 = vmatpush1.msra.mxu0 0.0
    %3656 = vmatprep.subr.mxu0 0.0
    %3657 = vmatpush1.msra.mxu0 0.0
    %3658 = vmatprep.subr.mxu0 0.0
    %3659 = vmatpush1.msra.mxu0 0.0
    %3660 = vmatprep.subr.mxu0 0.0
    %3661 = vmatpush1.msra.mxu0 0.0
    %3662 = vmatprep.subr.mxu0 0.0
    %3663 = vmatpush1.msra.mxu0 0.0
    %3664 = vmatprep.subr.mxu0 0.0
    %3665 = vmatpush1.msra.mxu0 0.0
    %3666 = vmatprep.subr.mxu0 0.0
    %3667 = vmatpush1.msra.mxu0 0.0
    %3668 = vmatprep.subr.mxu0 0.0
    %3669 = vmatpush1.msra.mxu0 0.0
    %3670 = vmatprep.subr.mxu0 0.0
    %3671 = vmatpush1.msra.mxu0 0.0
    %3672 = vmatprep.mubr.f32.mxu0 0.0
    %3673 = vmatmul.mubr.f32.gmra.mrb[0].mxu0 %v3599
    %v3674 = vpop.f32.mrb[0].mxu0
    %v3675 = vadd.f32 0.0, %v3674
    %v3676 = vpop.f32.mrb[0].mxu0
    %v3677 = vadd.f32 0.0, %v3676
    %3678 = vdwg.mxu0
    %v3679 = vpack.c.bf16 %v3675, %v3675
    %v3680 = vpack.c.bf16 %v3677, %v3677
    %v3681 = vld [vmem:[%s61] sm:$0xf]
    %v3682 = vld [vmem:[%s61 + $0x4] sm:$0xf]
    %v3683 = vld [vmem:[%s61 + $0x8] sm:$0xf]
    %v3684 = vld [vmem:[%s61 + $0xc] sm:$0xf]
    %v3685 = vld [vmem:[%s61 + $0x10] sm:$0xf]
    %v3686 = vld [vmem:[%s61 + $0x14] sm:$0xf]
    %v3687 = vld [vmem:[%s61 + $0x18] sm:$0xf]
    %v3688 = vld [vmem:[%s61 + $0x1c] sm:$0xf]
    %v3689 = vld [vmem:[%s61 + $0x20] sm:$0xf]
    %v3690 = vld [vmem:[%s61 + $0x24] sm:$0xf]
    %v3691 = vld [vmem:[%s61 + $0x28] sm:$0xf]
    %v3692 = vld [vmem:[%s61 + $0x2c] sm:$0xf]
    %v3693 = vld [vmem:[%s61 + $0x30] sm:$0xf]
    %v3694 = vld [vmem:[%s61 + $0x34] sm:$0xf]
    %v3695 = vld [vmem:[%s61 + $0x38] sm:$0xf]
    %v3696 = vld [vmem:[%s61 + $0x3c] sm:$0xf]
    %v3697 = vld [vmem:[%s61 + $0x40] sm:$0xf]
    %v3698 = vld [vmem:[%s61 + $0x44] sm:$0xf]
    %v3699 = vld [vmem:[%s61 + $0x48] sm:$0xf]
    %v3700 = vld [vmem:[%s61 + $0x4c] sm:$0xf]
    %v3701 = vld [vmem:[%s61 + $0x50] sm:$0xf]
    %v3702 = vld [vmem:[%s61 + $0x54] sm:$0xf]
    %v3703 = vld [vmem:[%s61 + $0x58] sm:$0xf]
    %v3704 = vld [vmem:[%s61 + $0x5c] sm:$0xf]
    %v3705 = vld [vmem:[%s61 + $0x60] sm:$0xf]
    %v3706 = vld [vmem:[%s61 + $0x64] sm:$0xf]
    %v3707 = vld [vmem:[%s61 + $0x68] sm:$0xf]
    %v3708 = vld [vmem:[%s61 + $0x6c] sm:$0xf]
    %v3709 = vld [vmem:[%s61 + $0x70] sm:$0xf]
    %v3710 = vld [vmem:[%s61 + $0x74] sm:$0xf]
    %v3711 = vld [vmem:[%s61 + $0x78] sm:$0xf]
    %v3712 = vld [vmem:[%s61 + $0x7c] sm:$0xf]
    %s3713 = scalar_lea.vmem [#allocation29], 2
    %v3714 = vld [vmem:[%s3713] sm:$0x3]
    %v3716 = vsel %vm952, %v3714, 0
    %3718 = vmatprep.subr.mxu0 %v3606
    %3719 = vmatpush1.msra.mxu0 %v3603
    %3720 = vmatprep.subr.mxu0 0.0
    %3721 = vmatpush1.msra.mxu0 0.0
    %3722 = vmatprep.subr.mxu0 0.0
    %3723 = vmatpush1.msra.mxu0 0.0
    %3724 = vmatprep.subr.mxu0 0.0
    %3725 = vmatpush1.msra.mxu0 0.0
    %3726 = vmatprep.subr.mxu0 0.0
    %3727 = vmatpush1.msra.mxu0 0.0
    %3728 = vmatprep.subr.mxu0 0.0
    %3729 = vmatpush1.msra.mxu0 0.0
    %3730 = vmatprep.subr.mxu0 0.0
    %3731 = vmatpush1.msra.mxu0 0.0
    %3732 = vmatprep.subr.mxu0 0.0
    %3733 = vmatpush1.msra.mxu0 0.0
    %3734 = vmatprep.subr.mxu0 0.0
    %3735 = vmatpush1.msra.mxu0 0.0
    %3736 = vmatprep.subr.mxu0 0.0
    %3737 = vmatpush1.msra.mxu0 0.0
    %3738 = vmatprep.subr.mxu0 0.0
    %3739 = vmatpush1.msra.mxu0 0.0
    %3740 = vmatprep.subr.mxu0 0.0
    %3741 = vmatpush1.msra.mxu0 0.0
    %3742 = vmatprep.subr.mxu0 0.0
    %3743 = vmatpush1.msra.mxu0 0.0
    %3744 = vmatprep.subr.mxu0 0.0
    %3745 = vmatpush1.msra.mxu0 0.0
    %3746 = vmatprep.subr.mxu0 0.0
    %3747 = vmatpush1.msra.mxu0 0.0
    %3748 = vmatprep.subr.mxu0 0.0
    %3749 = vmatpush1.msra.mxu0 0.0
    %3750 = vmatprep.subr.mxu0 0.0
    %3751 = vmatpush1.msra.mxu0 0.0
    %3752 = vmatprep.subr.mxu0 0.0
    %3753 = vmatpush1.msra.mxu0 0.0
    %3754 = vmatprep.subr.mxu0 0.0
    %3755 = vmatpush1.msra.mxu0 0.0
    %3756 = vmatprep.subr.mxu0 0.0
    %3757 = vmatpush1.msra.mxu0 0.0
    %3758 = vmatprep.subr.mxu0 0.0
    %3759 = vmatpush1.msra.mxu0 0.0
    %3760 = vmatprep.subr.mxu0 0.0
    %3761 = vmatpush1.msra.mxu0 0.0
    %3762 = vmatprep.subr.mxu0 0.0
    %3763 = vmatpush1.msra.mxu0 0.0
    %3764 = vmatprep.subr.mxu0 0.0
    %3765 = vmatpush1.msra.mxu0 0.0
    %3766 = vmatprep.subr.mxu0 0.0
    %3767 = vmatpush1.msra.mxu0 0.0
    %3768 = vmatprep.subr.mxu0 0.0
    %3769 = vmatpush1.msra.mxu0 0.0
    %3770 = vmatprep.subr.mxu0 0.0
    %3771 = vmatpush1.msra.mxu0 0.0
    %3772 = vmatprep.subr.mxu0 0.0
    %3773 = vmatpush1.msra.mxu0 0.0
    %3774 = vmatprep.subr.mxu0 0.0
    %3775 = vmatpush1.msra.mxu0 0.0
    %3776 = vmatprep.subr.mxu0 0.0
    %3777 = vmatpush1.msra.mxu0 0.0
    %3778 = vmatprep.subr.mxu0 0.0
    %3779 = vmatpush1.msra.mxu0 0.0
    %3780 = vmatprep.subr.mxu0 0.0
    %3781 = vmatpush1.msra.mxu0 0.0
    %3782 = vmatprep.mubr.f32.mxu0 0.0
    %3783 = vmatmul.mubr.f32.gmra.mrb[0].mxu0 %v3716
    %v3784 = vpop.f32.mrb[0].mxu0
    %v3785 = vadd.f32 0.0, %v3784
    %v3786 = vpop.f32.mrb[0].mxu0
    %v3787 = vadd.f32 0.0, %v3786
    %3788 = vdwg.mxu0
    %v3789 = vpack.c.bf16 %v3785, %v3785
    %v3790 = vpack.c.bf16 %v3787, %v3787
    %s3791 = scalar_lea.vmem %s61, 128
    %v3792 = vld [vmem:[%s3791] sm:$0xf]
    %v3793 = vld [vmem:[%s3791 + $0x4] sm:$0xf]
    %v3794 = vld [vmem:[%s3791 + $0x8] sm:$0xf]
    %v3795 = vld [vmem:[%s3791 + $0xc] sm:$0xf]
    %v3796 = vld [vmem:[%s3791 + $0x10] sm:$0xf]
    %v3797 = vld [vmem:[%s3791 + $0x14] sm:$0xf]
    %v3798 = vld [vmem:[%s3791 + $0x18] sm:$0xf]
    %v3799 = vld [vmem:[%s3791 + $0x1c] sm:$0xf]
    %v3800 = vld [vmem:[%s3791 + $0x20] sm:$0xf]
    %v3801 = vld [vmem:[%s3791 + $0x24] sm:$0xf]
    %v3802 = vld [vmem:[%s3791 + $0x28] sm:$0xf]
    %v3803 = vld [vmem:[%s3791 + $0x2c] sm:$0xf]
    %v3804 = vld [vmem:[%s3791 + $0x30] sm:$0xf]
    %v3805 = vld [vmem:[%s3791 + $0x34] sm:$0xf]
    %v3806 = vld [vmem:[%s3791 + $0x38] sm:$0xf]
    %v3807 = vld [vmem:[%s3791 + $0x3c] sm:$0xf]
    %v3808 = vld [vmem:[%s3791 + $0x40] sm:$0xf]
    %v3809 = vld [vmem:[%s3791 + $0x44] sm:$0xf]
    %v3810 = vld [vmem:[%s3791 + $0x48] sm:$0xf]
    %v3811 = vld [vmem:[%s3791 + $0x4c] sm:$0xf]
    %v3812 = vld [vmem:[%s3791 + $0x50] sm:$0xf]
    %v3813 = vld [vmem:[%s3791 + $0x54] sm:$0xf]
    %v3814 = vld [vmem:[%s3791 + $0x58] sm:$0xf]
    %v3815 = vld [vmem:[%s3791 + $0x5c] sm:$0xf]
    %v3816 = vld [vmem:[%s3791 + $0x60] sm:$0xf]
    %v3817 = vld [vmem:[%s3791 + $0x64] sm:$0xf]
    %v3818 = vld [vmem:[%s3791 + $0x68] sm:$0xf]
    %v3819 = vld [vmem:[%s3791 + $0x6c] sm:$0xf]
    %v3820 = vld [vmem:[%s3791 + $0x70] sm:$0xf]
    %v3821 = vld [vmem:[%s3791 + $0x74] sm:$0xf]
    %v3822 = vld [vmem:[%s3791 + $0x78] sm:$0xf]
    %v3823 = vld [vmem:[%s3791 + $0x7c] sm:$0xf]
    %v3856 = vunpack.c.l.b16 %v3792
    %v3857 = vunpack.c.l.b16 %v3793
    %v3858 = vunpack.c.l.b16 %v3794
    %v3859 = vunpack.c.l.b16 %v3795
    %v3860 = vunpack.c.l.b16 %v3796
    %v3861 = vunpack.c.l.b16 %v3797
    %v3862 = vunpack.c.l.b16 %v3798
    %v3863 = vunpack.c.l.b16 %v3799
    %v3864 = vunpack.c.l.b16 %v3800
    %v3865 = vunpack.c.l.b16 %v3801
    %v3866 = vunpack.c.l.b16 %v3802
    %v3867 = vunpack.c.l.b16 %v3803
    %v3868 = vunpack.c.l.b16 %v3804
    %v3869 = vunpack.c.l.b16 %v3805
    %v3870 = vunpack.c.l.b16 %v3806
    %v3871 = vunpack.c.l.b16 %v3807
    %v3872 = vunpack.c.l.b16 %v3808
    %v3873 = vunpack.c.l.b16 %v3809
    %v3874 = vunpack.c.l.b16 %v3810
    %v3875 = vunpack.c.l.b16 %v3811
    %v3876 = vunpack.c.l.b16 %v3812
    %v3877 = vunpack.c.l.b16 %v3813
    %v3878 = vunpack.c.l.b16 %v3814
    %v3879 = vunpack.c.l.b16 %v3815
    %v3880 = vunpack.c.l.b16 %v3816
    %v3881 = vunpack.c.l.b16 %v3817
    %v3882 = vunpack.c.l.b16 %v3818
    %v3883 = vunpack.c.l.b16 %v3819
    %v3884 = vunpack.c.l.b16 %v3820
    %v3885 = vunpack.c.l.b16 %v3821
    %v3886 = vunpack.c.l.b16 %v3822
    %v3887 = vunpack.c.l.b16 %v3823
    %v3888 = vpack.c.b16 %v3857, %v3856
    %v3889 = vpack.c.b16 %v3859, %v3858
    %v3890 = vpack.c.b16 %v3861, %v3860
    %v3891 = vpack.c.b16 %v3863, %v3862
    %v3892 = vpack.c.b16 %v3865, %v3864
    %v3893 = vpack.c.b16 %v3867, %v3866
    %v3894 = vpack.c.b16 %v3869, %v3868
    %v3895 = vpack.c.b16 %v3871, %v3870
    %v3896 = vpack.c.b16 %v3873, %v3872
    %v3897 = vpack.c.b16 %v3875, %v3874
    %v3898 = vpack.c.b16 %v3877, %v3876
    %v3899 = vpack.c.b16 %v3879, %v3878
    %v3900 = vpack.c.b16 %v3881, %v3880
    %v3901 = vpack.c.b16 %v3883, %v3882
    %v3902 = vpack.c.b16 %v3885, %v3884
    %v3903 = vpack.c.b16 %v3887, %v3886
    %3920 = vmatprep.subr.bf16.mxu0 0
    %3921 = vmatpush1.bf16.msra.mxu0 %v3888
    %3922 = vmatprep.subr.bf16.mxu0 0
    %3923 = vmatpush1.bf16.msra.mxu0 %v3889
    %3924 = vmatprep.subr.bf16.mxu0 0
    %3925 = vmatpush1.bf16.msra.mxu0 %v3890
    %3926 = vmatprep.subr.bf16.mxu0 0
    %3927 = vmatpush1.bf16.msra.mxu0 %v3891
    %3928 = vmatprep.subr.bf16.mxu0 0
    %3929 = vmatpush1.bf16.msra.mxu0 %v3892
    %3930 = vmatprep.subr.bf16.mxu0 0
    %3931 = vmatpush1.bf16.msra.mxu0 %v3893
    %3932 = vmatprep.subr.bf16.mxu0 0
    %3933 = vmatpush1.bf16.msra.mxu0 %v3894
    %3934 = vmatprep.subr.bf16.mxu0 0
    %3935 = vmatpush1.bf16.msra.mxu0 %v3895
    %3936 = vmatprep.subr.bf16.mxu0 0
    %3937 = vmatpush1.bf16.msra.mxu0 %v3896
    %3938 = vmatprep.subr.bf16.mxu0 0
    %3939 = vmatpush1.bf16.msra.mxu0 %v3897
    %3940 = vmatprep.subr.bf16.mxu0 0
    %3941 = vmatpush1.bf16.msra.mxu0 %v3898
    %3942 = vmatprep.subr.bf16.mxu0 0
    %3943 = vmatpush1.bf16.msra.mxu0 %v3899
    %3944 = vmatprep.subr.bf16.mxu0 0
    %3945 = vmatpush1.bf16.msra.mxu0 %v3900
    %3946 = vmatprep.subr.bf16.mxu0 0
    %3947 = vmatpush1.bf16.msra.mxu0 %v3901
    %3948 = vmatprep.subr.bf16.mxu0 0
    %3949 = vmatpush1.bf16.msra.mxu0 %v3902
    %3950 = vmatprep.subr.bf16.mxu0 0
    %3951 = vmatpush1.bf16.msra.mxu0 %v3903
    %3952 = vmatprep.mubr.bf16.mxu0 %v3790
    %3953 = vmatmul.mubr.bf16.gmra.mrb[0].mxu0 %v3789
    %v3954 = vpop.f32.mrb[0].mxu0
    %v3955 = vadd.f32 0.0, %v3954
    %v3956 = vpop.f32.mrb[0].mxu0
    %v3957 = vpop.f32.mrb[0].mxu0
    %v3958 = vpop.f32.mrb[0].mxu0
    %3959 = vdwg.mxu0
    %v3992 = vunpack.c.l.b16 %v3681
    %v3993 = vunpack.c.l.b16 %v3682
    %v3994 = vunpack.c.l.b16 %v3683
    %v3995 = vunpack.c.l.b16 %v3684
    %v3996 = vunpack.c.l.b16 %v3685
    %v3997 = vunpack.c.l.b16 %v3686
    %v3998 = vunpack.c.l.b16 %v3687
    %v3999 = vunpack.c.l.b16 %v3688
    %v4000 = vunpack.c.l.b16 %v3689
    %v4001 = vunpack.c.l.b16 %v3690
    %v4002 = vunpack.c.l.b16 %v3691
    %v4003 = vunpack.c.l.b16 %v3692
    %v4004 = vunpack.c.l.b16 %v3693
    %v4005 = vunpack.c.l.b16 %v3694
    %v4006 = vunpack.c.l.b16 %v3695
    %v4007 = vunpack.c.l.b16 %v3696
    %v4008 = vunpack.c.l.b16 %v3697
    %v4009 = vunpack.c.l.b16 %v3698
    %v4010 = vunpack.c.l.b16 %v3699
    %v4011 = vunpack.c.l.b16 %v3700
    %v4012 = vunpack.c.l.b16 %v3701
    %v4013 = vunpack.c.l.b16 %v3702
    %v4014 = vunpack.c.l.b16 %v3703
    %v4015 = vunpack.c.l.b16 %v3704
    %v4016 = vunpack.c.l.b16 %v3705
    %v4017 = vunpack.c.l.b16 %v3706
    %v4018 = vunpack.c.l.b16 %v3707
    %v4019 = vunpack.c.l.b16 %v3708
    %v4020 = vunpack.c.l.b16 %v3709
    %v4021 = vunpack.c.l.b16 %v3710
    %v4022 = vunpack.c.l.b16 %v3711
    %v4023 = vunpack.c.l.b16 %v3712
    %v4024 = vpack.c.b16 %v3993, %v3992
    %v4025 = vpack.c.b16 %v3995, %v3994
    %v4026 = vpack.c.b16 %v3997, %v3996
    %v4027 = vpack.c.b16 %v3999, %v3998
    %v4028 = vpack.c.b16 %v4001, %v4000
    %v4029 = vpack.c.b16 %v4003, %v4002
    %v4030 = vpack.c.b16 %v4005, %v4004
    %v4031 = vpack.c.b16 %v4007, %v4006
    %v4032 = vpack.c.b16 %v4009, %v4008
    %v4033 = vpack.c.b16 %v4011, %v4010
    %v4034 = vpack.c.b16 %v4013, %v4012
    %v4035 = vpack.c.b16 %v4015, %v4014
    %v4036 = vpack.c.b16 %v4017, %v4016
    %v4037 = vpack.c.b16 %v4019, %v4018
    %v4038 = vpack.c.b16 %v4021, %v4020
    %v4039 = vpack.c.b16 %v4023, %v4022
    %4056 = vmatprep.subr.bf16.mxu0 0
    %4057 = vmatpush1.bf16.msra.mxu0 %v4024
    %4058 = vmatprep.subr.bf16.mxu0 0
    %4059 = vmatpush1.bf16.msra.mxu0 %v4025
    %4060 = vmatprep.subr.bf16.mxu0 0
    %4061 = vmatpush1.bf16.msra.mxu0 %v4026
    %4062 = vmatprep.subr.bf16.mxu0 0
    %4063 = vmatpush1.bf16.msra.mxu0 %v4027
    %4064 = vmatprep.subr.bf16.mxu0 0
    %4065 = vmatpush1.bf16.msra.mxu0 %v4028
    %4066 = vmatprep.subr.bf16.mxu0 0
    %4067 = vmatpush1.bf16.msra.mxu0 %v4029
    %4068 = vmatprep.subr.bf16.mxu0 0
    %4069 = vmatpush1.bf16.msra.mxu0 %v4030
    %4070 = vmatprep.subr.bf16.mxu0 0
    %4071 = vmatpush1.bf16.msra.mxu0 %v4031
    %4072 = vmatprep.subr.bf16.mxu0 0
    %4073 = vmatpush1.bf16.msra.mxu0 %v4032
    %4074 = vmatprep.subr.bf16.mxu0 0
    %4075 = vmatpush1.bf16.msra.mxu0 %v4033
    %4076 = vmatprep.subr.bf16.mxu0 0
    %4077 = vmatpush1.bf16.msra.mxu0 %v4034
    %4078 = vmatprep.subr.bf16.mxu0 0
    %4079 = vmatpush1.bf16.msra.mxu0 %v4035
    %4080 = vmatprep.subr.bf16.mxu0 0
    %4081 = vmatpush1.bf16.msra.mxu0 %v4036
    %4082 = vmatprep.subr.bf16.mxu0 0
    %4083 = vmatpush1.bf16.msra.mxu0 %v4037
    %4084 = vmatprep.subr.bf16.mxu0 0
    %4085 = vmatpush1.bf16.msra.mxu0 %v4038
    %4086 = vmatprep.subr.bf16.mxu0 0
    %4087 = vmatpush1.bf16.msra.mxu0 %v4039
    %4088 = vmatprep.mubr.bf16.mxu0 %v3680
    %4089 = vmatmul.mubr.bf16.gmra.mrb[0].mxu0 %v3679
    %v4090 = vpop.f32.mrb[0].mxu0
    %v4091 = vadd.f32 %v3955, %v4090
    %v4092 = vpop.f32.mrb[0].mxu0
    %v4093 = vpop.f32.mrb[0].mxu0
    %v4094 = vpop.f32.mrb[0].mxu0
    %4095 = vdwg.mxu0
    %v4096 = vld [vmem:[#allocation31] sm:$0x1]
    %v4098 = vlaneseq
    %v4099 = vshrl.u32 %v4098, 7
    %v4100 = vsub.s32 0, %v4099
    %v4101 = vrot.slane %v4096, %v4100
    %v4103 = vadd.f32 %v4091, %v4101
    %v4104 = vmax.f32 %v4103, 0.0
    %v4105 = vpack.c.bf16 %v4104, %v4104
    %v4106 = vld [vmem:[%s65] sm:$0xf]
    %v4107 = vld [vmem:[%s65 + $0x4] sm:$0xf]
    %v4108 = vld [vmem:[%s65 + $0x8] sm:$0xf]
    %v4109 = vld [vmem:[%s65 + $0xc] sm:$0xf]
    %v4110 = vld [vmem:[%s65 + $0x10] sm:$0xf]
    %v4111 = vld [vmem:[%s65 + $0x14] sm:$0xf]
    %v4112 = vld [vmem:[%s65 + $0x18] sm:$0xf]
    %v4113 = vld [vmem:[%s65 + $0x1c] sm:$0xf]
    %v4114 = vld [vmem:[#allocation32] sm:$0x1]
    %v4116 = vlaneseq
    %v4117 = vshrl.u32 %v4116, 7
    %v4118 = vsub.s32 0, %v4117
    %v4119 = vrot.slane %v4114, %v4118
    %v4129 = vunpack.c.l.b16 %v4106
    %v4130 = vunpack.c.l.b16 %v4107
    %v4131 = vunpack.c.l.b16 %v4108
    %v4132 = vunpack.c.l.b16 %v4109
    %v4133 = vunpack.c.l.b16 %v4110
    %v4134 = vunpack.c.l.b16 %v4111
    %v4135 = vunpack.c.l.b16 %v4112
    %v4136 = vunpack.c.l.b16 %v4113
    %v4137 = vpack.c.b16 %v4130, %v4129
    %v4138 = vpack.c.b16 %v4132, %v4131
    %v4139 = vpack.c.b16 %v4134, %v4133
    %v4140 = vpack.c.b16 %v4136, %v4135
    %v4146 = vsel %vm2306, %v4105, 0
    %4148 = vmatprep.subr.bf16.mxu0 0
    %4149 = vmatpush1.bf16.msra.mxu0 %v4137
    %4150 = vmatprep.subr.bf16.mxu0 0
    %4151 = vmatpush1.bf16.msra.mxu0 %v4138
    %4152 = vmatprep.subr.bf16.mxu0 0
    %4153 = vmatpush1.bf16.msra.mxu0 %v4139
    %4154 = vmatprep.subr.bf16.mxu0 0
    %4155 = vmatpush1.bf16.msra.mxu0 %v4140
    %4156 = vmatprep.subr.bf16.mxu0 0
    %4157 = vmatpush1.bf16.msra.mxu0 0
    %4158 = vmatprep.subr.bf16.mxu0 0
    %4159 = vmatpush1.bf16.msra.mxu0 0
    %4160 = vmatprep.subr.bf16.mxu0 0
    %4161 = vmatpush1.bf16.msra.mxu0 0
    %4162 = vmatprep.subr.bf16.mxu0 0
    %4163 = vmatpush1.bf16.msra.mxu0 0
    %4164 = vmatprep.subr.bf16.mxu0 0
    %4165 = vmatpush1.bf16.msra.mxu0 0
    %4166 = vmatprep.subr.bf16.mxu0 0
    %4167 = vmatpush1.bf16.msra.mxu0 0
    %4168 = vmatprep.subr.bf16.mxu0 0
    %4169 = vmatpush1.bf16.msra.mxu0 0
    %4170 = vmatprep.subr.bf16.mxu0 0
    %4171 = vmatpush1.bf16.msra.mxu0 0
    %4172 = vmatprep.subr.bf16.mxu0 0
    %4173 = vmatpush1.bf16.msra.mxu0 0
    %4174 = vmatprep.subr.bf16.mxu0 0
    %4175 = vmatpush1.bf16.msra.mxu0 0
    %4176 = vmatprep.subr.bf16.mxu0 0
    %4177 = vmatpush1.bf16.msra.mxu0 0
    %4178 = vmatprep.subr.bf16.mxu0 0
    %4179 = vmatpush1.bf16.msra.mxu0 0
    %4180 = vmatprep.mubr.bf16.mxu0 0
    %4181 = vmatmul.mubr.bf16.gmra.mrb[0].mxu0 %v4146
    %v4182 = vpop.f32.mrb[0].mxu0
    %v4183 = vadd.f32 %v4119, %v4182
    %v4184 = vpop.f32.mrb[0].mxu0
    %v4185 = vpop.f32.mrb[0].mxu0
    %v4186 = vpop.f32.mrb[0].mxu0
    %4187 = vdwg.mxu0
    %vm4188 = vcmask 58368
    %4189 = vst.msk [vmem:[#allocation34] sm:$0x3] %vm4188, %v4183
    // Predicated region
    $region218: #{classifier3l_forward.1} parent=1 // pred_check
      _
    $region219: #{classifier3l_forward.1} parent=1 // pred_check_branch
      %4191 = sbr.rel (0) target = $region221
    $region220: #{classifier3l_forward.1} parent=1 // pred_region
      %s4193 = ssub.s32 32, 32
      %4194 = vsyncadd [#allocation4], %s4193
      %s4196 = sshll.u32 [#allocation34], 4
      %s4197 = int_to_ptr.vmem [resolvable:$true] %s4196
      %4199 = dma.vmem_to_hbm [thread:$0]  %s4197, 32, %s69, [#allocation4]
    $region221: #{classifier3l_forward.1} parent=1 // pred_fallthru
      _
    // Predicated region
    $region222: #{classifier3l_forward.1} parent=1 // pred_check
      _
    $region223: #{classifier3l_forward.1} parent=1 // pred_check_branch
      %4201 = sbr.rel (0) target = $region225
    $region224: #{classifier3l_forward.1} parent=1 // pred_region
      %4202 = dma.done [#allocation4], 32
    $region225: #{classifier3l_forward.1} parent=1 // pred_fallthru
      _
    %4203 = vsyncpa [#allocation3], 1
    %4204 = vsyncpa [#allocation6], 1
    %4205 = vsyncpa [#allocation9], 1
    %4206 = vsyncpa [#allocation12], 1
    %4207 = vsyncpa [#allocation15], 1
    %4208 = vsyncpa [#allocation18], 1
    %4209 = vsyncpa [#allocation21], 1
    %4210 = vsyncpa [#allocation24], 1
    %4211 = vsyncpa [#allocation27], 1
    %4212 = vsyncpa [#allocation30], 1
    %4213 = vsyncpa [#allocation33], 1
    %4214 = vsyncpa [#allocation4], 1

</llo_original>
